<compile_context>
chip_gen: v5e
topology: v5e:2x2
jax: 0.10.0
libtpu: 0.0.40
codegen_flags: <defaults>
</compile_context>

<pallas_src>
import functools

import jax
import jax.numpy as jnp
from jax.experimental import pallas as pl
from jax.experimental.pallas import tpu as pltpu


def _vmem_capacity_bytes():
    """Physical VMEM capacity of the current TPU generation (fallback 128 MiB)."""
    cap = None
    try:
        info = pltpu.get_tpu_info()
        for name in ("vmem_capacity_bytes", "vmem_size_bytes", "vmem_bytes"):
            cap = getattr(info, name, None)
            if cap:
                break
    except Exception:
        cap = None
    return int(cap) if cap else 128 * 1024 * 1024


def _pick_row_tile(n, c, ch, num_heads, head_dim, norm_groups, vmem_budget):
    """Largest row tile (divides N, multiple of 8) whose live VMEM fits the budget.

    With the head loop serialised the live score tile is (TQ, N) -- no H factor
    -- so the per-tile cost is TQ * (6*N  [f32 scores + bf16 probs]
    + 6*Ch [FFN f32 + bf16 copy] + ~24*C [f32 row-tile temporaries]).
    """
    d_pad = -(-head_dim // 128) * 128               # lane padding of (.., D) scratch
    fixed = (
        2 * n * c * 4                               # x input block (double-buffered)
        + 2 * n * c * 4                             # output block (double-buffered)
        + n * c * 2                                 # h1 scratch (bf16)
        + 3 * num_heads * n * d_pad * 2             # q/k/v scratch (bf16, padded)
        + n * c * 4                                 # x1 scratch (f32)
        + 2 * (3 * c * c + c * c + 2 * c * ch) * 2  # weights (assume double-buffered)
        + c * norm_groups * 4 + 64 * c * 4          # gmat / ss / stats (padded)
    )
    per_row = 6 * n + 6 * ch + 24 * c
    avail = vmem_budget - fixed
    candidates = sorted({t for t in (n, 2048, 1024, 512, 256, 128, 64, 32, 16, 8)
                         if 0 < t <= n and n % t == 0}, reverse=True)
    for t in candidates:
        if t * per_row * 1.25 <= avail:             # 1.25x headroom for compiler temps
            return t
    return candidates[-1]                           # smallest legal tile (correct, slow)


def _attention_block_kernel(x_ref, ss_ref, gmat_ref, wqkv_ref, wo_ref, w1_ref,
                            w2_ref, o_ref, h1_s, qkv_s, x1_s, *,
                            num_heads, head_dim, eps, row_tile):
    n, c = x_ref.shape[1], x_ref.shape[2]
    g = gmat_ref.shape[1]
    d = head_dim
    n_tiles = n // row_tile
    inv_count = 1.0 / float(n * (c // g))
    bdt = qkv_s.dtype                               # bf16: matmul-operand dtype only

    gmat = gmat_ref[...]                            # (C, G) one-hot group membership
    ss = ss_ref[0].astype(jnp.float32)              # (4, C): scale1, shift1, scale2, shift2

    def norm_coeffs(stats, scale, shift):
        # stats = [sum(x), sum(x*x)] per channel over all N rows -> per-channel a, b
        # such that cond_group_norm(x) == x * a + b.
        gstats = jnp.dot(stats, gmat, preferred_element_type=jnp.float32) * inv_count
        mean = gstats[0:1]
        var = jnp.maximum(gstats[1:2] - mean * mean, 0.0)   # guard E[x^2]-E[x]^2
        cstats = jnp.concatenate([mean, jax.lax.rsqrt(var + eps)], axis=0)   # (2, G)
        cc = jax.lax.dot_general(cstats, gmat, (((1,), (1,)), ((), ())),
                                 preferred_element_type=jnp.float32)          # (2, C)
        a = cc[1:2] * (1.0 + scale)                 # inv_std * (1 + scale)
        b = shift - cc[0:1] * a                     # shift - mean * a
        return a, b

    def row(i):
        return pl.ds(pl.multiple_of(i * row_tile, 8), row_tile)

    def chan_stats(t):
        return jnp.concatenate([jnp.sum(t, axis=0, keepdims=True),
                                jnp.sum(t * t, axis=0, keepdims=True)], axis=0)

    # ---- GroupNorm 1: row-tiled stats, then normalised activations -> h1 (bf16) ----
    def stats1_body(i, st):
        x_t = x_ref[0, row(i), :].astype(jnp.float32)
        return st + chan_stats(x_t)
    stats1 = jax.lax.fori_loop(0, n_tiles, stats1_body, jnp.zeros((2, c), jnp.float32))
    a1, b1 = norm_coeffs(stats1, ss[0:1], ss[1:2])

    @pl.loop(0, n_tiles)
    def _(i):
        x_t = x_ref[0, row(i), :].astype(jnp.float32)
        h1_s[row(i), :] = (x_t * a1 + b1).astype(bdt)

    # ---- QKV projection: one fused (C, 3D) dot per head (sm_scale folded in Wq) ----
    @pl.loop(0, num_heads)
    def _(h):
        qkv = jnp.dot(h1_s[...], wqkv_ref[h], preferred_element_type=jnp.float32)
        qkv_s[h, 0, :, :] = qkv[:, 0:d].astype(bdt)
        qkv_s[h, 1, :, :] = qkv[:, d:2 * d].astype(bdt)
        qkv_s[h, 2, :, :] = qkv[:, 2 * d:3 * d].astype(bdt)

    # ---- attention: row-tile outer, head inner; scores live only as (TQ, N) ----
    def attn_tile(i, stats):
        x_t = x_ref[0, row(i), :].astype(jnp.float32)

        def head_body(h, acc):
            q_t = qkv_s[h, 0, row(i), :]                              # (TQ, D) bf16
            s = jax.lax.dot_general(q_t, qkv_s[h, 1, :, :],
                                    (((1,), (1,)), ((), ())),
                                    preferred_element_type=jnp.float32)   # (TQ, N)
            m = jnp.max(s, axis=-1, keepdims=True)
            p = jnp.exp(s - m)                                        # unnormalised
            l = jnp.sum(p, axis=-1, keepdims=True)
            ot = jnp.dot(p.astype(bdt), qkv_s[h, 2, :, :],
                         preferred_element_type=jnp.float32)          # (TQ, D)
            ot = ot / l                                               # deferred softmax norm
            # fused output projection: per-head (TQ,D)@(D,C), accumulated in f32
            return acc + jnp.dot(ot.astype(bdt), wo_ref[h],
                                 preferred_element_type=jnp.float32)
        attn = jax.lax.fori_loop(0, num_heads, head_body,
                                 jnp.zeros((row_tile, c), jnp.float32))
        x1_t = x_t + attn                                             # residual in f32
        x1_s[row(i), :] = x1_t
        return stats + chan_stats(x1_t)                               # GroupNorm2 stats
    stats2 = jax.lax.fori_loop(0, n_tiles, attn_tile, jnp.zeros((2, c), jnp.float32))

    # ---- GroupNorm 2 + feed-forward, row-tiled (no (N, 4C) intermediate) ----
    a2, b2 = norm_coeffs(stats2, ss[2:3], ss[3:4])

    @pl.loop(0, n_tiles)
    def _(i):
        x1_t = x1_s[row(i), :]
        h2 = (x1_t * a2 + b2).astype(bdt)
        ff = jnp.dot(h2, w1_ref[...], preferred_element_type=jnp.float32)   # (TQ, Ch)
        ff = ff * jax.nn.sigmoid(ff)                                        # SiLU in f32
        ff = jnp.dot(ff.astype(bdt), w2_ref[...], preferred_element_type=jnp.float32)
        o_ref[0, row(i), :] = (x1_t + ff).astype(o_ref.dtype)


def attention_block_forward(x_nchw, time_embed, params, *, norm_groups, head_dim):
    B, C, H, W = x_nchw.shape
    N = H * W
    Ch = params['ff_w1'].shape[0]
    assert C % head_dim == 0
    num_heads = C // head_dim
    wdt = jnp.bfloat16                      # bf16 weights: MXU-native, half VMEM/DMA

    # --- time-conditioning MLPs (SiLU -> Linear -> chunk(scale, shift)); tiny glue ---
    t = jax.nn.silu(time_embed)
    cs1 = t @ params['in_norm_w'].T + params['in_norm_b']
    cs2 = t @ params['out_norm_w'].T + params['out_norm_b']
    # single fused (B, 4, C) conditioning block: [scale1, shift1, scale2, shift2]
    ss = jnp.stack([cs1[:, :C], cs1[:, C:], cs2[:, :C], cs2[:, C:]], axis=1)
    ss = ss.astype(jnp.float32)

    # channel -> group membership matrix for GroupNorm reductions inside the kernel
    cg = C // norm_groups
    gmat = (jnp.arange(C)[:, None] // cg ==
            jnp.arange(norm_groups)[None, :]).astype(jnp.float32)        # (C, G)

    # head-major weight layouts; sm_scale folded into Wq (one-time weight fold)
    sm_scale = head_dim ** -0.5
    wq3 = params['wq'].reshape(num_heads, head_dim, C).transpose(0, 2, 1) * sm_scale
    wk3 = params['wk'].reshape(num_heads, head_dim, C).transpose(0, 2, 1)
    wv3 = params['wv'].reshape(num_heads, head_dim, C).transpose(0, 2, 1)
    wqkv = jnp.concatenate([wq3, wk3, wv3], axis=-1).astype(wdt)         # (H, C, 3D)
    wo3 = params['wo'].T.reshape(num_heads, head_dim, C).astype(wdt)     # (H, D, C)
    w1 = params['ff_w1'].T.astype(wdt)                                   # (C, Ch)
    w2 = params['ff_w2'].T.astype(wdt)                                   # (Ch, C)

    # NCHW -> (B, N, C).  TODO(synk): keep UNet activations NHWC across blocks to
    # drop these two full HBM transpose passes around the kernel.
    x = jnp.transpose(x_nchw, (0, 2, 3, 1)).reshape(B, N, C)

    vmem_budget = int(0.75 * _vmem_capacity_bytes())
    row_tile = _pick_row_tile(N, C, Ch, num_heads, head_dim, norm_groups, vmem_budget)

    kernel = functools.partial(_attention_block_kernel, num_heads=num_heads,
                               head_dim=head_dim, eps=1e-5, row_tile=row_tile)

    flops = int(B * (8 * N * C * C + 4 * N * N * C + 4 * N * C * Ch))
    transcendentals = int(B * (num_heads * N * N + N * Ch))
    bytes_accessed = int(2 * B * N * C * 4 + (4 * C * C + 2 * C * Ch) * 2
                         + B * 4 * C * 4 + C * norm_groups * 4)

    def per_b(shape):
        return pl.BlockSpec(shape, lambda b: (b,) + (0,) * (len(shape) - 1))

    def run(single_buffer_weights):
        def const_spec(shape):
            idx = lambda b: (0,) * len(shape)
            if single_buffer_weights:
                # constants never change across the (B,) grid -> one VMEM copy
                return pl.BlockSpec(shape, idx, pipeline_mode=pl.Buffered(1))
            return pl.BlockSpec(shape, idx)

        return pl.pallas_call(
            kernel,
            out_shape=jax.ShapeDtypeStruct((B, N, C), x.dtype),
            grid=(B,),
            in_specs=[
                per_b((1, N, C)),                          # x
                per_b((1, 4, C)),                          # fused scale/shift
                const_spec((C, norm_groups)),              # gmat
                const_spec((num_heads, C, 3 * head_dim)),  # fused Wq|Wk|Wv
                const_spec((num_heads, head_dim, C)),      # Wo
                const_spec((C, Ch)),                       # ff w1
                const_spec((Ch, C)),                       # ff w2
            ],
            out_specs=per_b((1, N, C)),
            scratch_shapes=[
                pltpu.VMEM((N, C), jnp.bfloat16),                        # h1
                pltpu.VMEM((num_heads, 3, N, head_dim), jnp.bfloat16),   # q/k/v
                pltpu.VMEM((N, C), jnp.float32),                         # x1 = x + attn
            ],
            compiler_params=pltpu.CompilerParams(
                dimension_semantics=("parallel",),
                vmem_limit_bytes=vmem_budget),
            cost_estimate=pl.CostEstimate(flops=flops,
                                          transcendentals=transcendentals,
                                          bytes_accessed=bytes_accessed),
        )(x, ss, gmat, wqkv, wo3, w1, w2)

    try:
        out = run(single_buffer_weights=True)
    except Exception:
        # pipeline_mode=pl.Buffered(1) not available on this jax build -> default specs
        out = run(single_buffer_weights=False)

    # (B, N, C) -> NCHW   (== rearrange 'b (h w) c -> b c h w')
    return out.reshape(B, H, W, C).transpose(0, 3, 1, 2)


def reference_forward(x, time_embed, params, *, norm_groups, head_dim):
    """Plain-JAX (f32) mirror of the PyTorch forward, used only for validation."""
    B, C, H, W = x.shape
    N = H * W
    num_heads = C // head_dim
    cg = C // norm_groups

    def group_norm(h):
        hg = h.reshape(B, norm_groups, cg, H, W)
        mean = hg.mean(axis=(2, 3, 4), keepdims=True)
        var = ((hg - mean) ** 2).mean(axis=(2, 3, 4), keepdims=True)
        return ((hg - mean) / jnp.sqrt(var + 1e-5)).reshape(B, C, H, W)

    t = jax.nn.silu(time_embed)
    cs1 = t @ params['in_norm_w'].T + params['in_norm_b']
    cs2 = t @ params['out_norm_w'].T + params['out_norm_b']
    s1, sh1 = cs1[:, :C], cs1[:, C:]
    s2, sh2 = cs2[:, :C], cs2[:, C:]

    out = group_norm(x) * (s1 + 1.)[:, :, None, None] + sh1[:, :, None, None]
    out = out.transpose(0, 2, 3, 1).reshape(B, N, C)
    q = (out @ params['wq'].T).reshape(B, N, num_heads, head_dim).transpose(0, 2, 1, 3)
    k = (out @ params['wk'].T).reshape(B, N, num_heads, head_dim).transpose(0, 2, 1, 3)
    v = (out @ params['wv'].T).reshape(B, N, num_heads, head_dim).transpose(0, 2, 1, 3)
    a = jnp.einsum('bhid,bhjd->bhij', q, k) * head_dim ** -0.5
    a = jax.nn.softmax(a, axis=-1)
    o = jnp.einsum('bhij,bhjd->bhid', a, v)
    o = o.transpose(0, 2, 1, 3).reshape(B, N, C) @ params['wo'].T
    o = o.reshape(B, H, W, C).transpose(0, 3, 1, 2)
    x = x + o
    out = group_norm(x) * (s2 + 1.)[:, :, None, None] + sh2[:, :, None, None]
    ff = jnp.einsum('oi,bihw->bohw', params['ff_w1'], out)
    ff = ff * jax.nn.sigmoid(ff)
    ff = jnp.einsum('oi,bihw->bohw', params['ff_w2'], ff)
    return x + ff


if __name__ == "__main__":
    key = jax.random.PRNGKey(0)
    B, C, H, W = 2, 64, 8, 8                 # small: num_channels=64, spatial 8x8 -> seq 64
    T = 32                                   # time_embed_dim
    norm_groups, head_dim, expansion = 8, 32, 4
    Ch = expansion * C

    ks = jax.random.split(key, 12)
    # NOTE: PyTorch __init__ zero-inits the context_mlp Linear; here we use small
    # deterministic random values so the conditioning path is actually exercised.
    params = {
        'in_norm_w':  0.05 * jax.random.normal(ks[0], (2 * C, T), jnp.float32),
        'in_norm_b':  0.05 * jax.random.normal(ks[1], (2 * C,), jnp.float32),
        'out_norm_w': 0.05 * jax.random.normal(ks[2], (2 * C, T), jnp.float32),
        'out_norm_b': 0.05 * jax.random.normal(ks[3], (2 * C,), jnp.float32),
        'wq': jax.random.normal(ks[4], (C, C), jnp.float32) / jnp.sqrt(C),
        'wk': jax.random.normal(ks[5], (C, C), jnp.float32) / jnp.sqrt(C),
        'wv': jax.random.normal(ks[6], (C, C), jnp.float32) / jnp.sqrt(C),
        'wo': jax.random.normal(ks[7], (C, C), jnp.float32) / jnp.sqrt(C),
        'ff_w1': jax.random.normal(ks[8], (Ch, C), jnp.float32) / jnp.sqrt(C),
        'ff_w2': jax.random.normal(ks[9], (C, Ch), jnp.float32) / jnp.sqrt(Ch),
    }
    x = jax.random.normal(ks[10], (B, C, H, W), jnp.float32)
    time_embed = jax.random.normal(ks[11], (B, T), jnp.float32)

    out = attention_block_forward(x, time_embed, params,
                                  norm_groups=norm_groups, head_dim=head_dim)
    out = jax.block_until_ready(out)

    ref = reference_forward(x, time_embed, params,
                            norm_groups=norm_groups, head_dim=head_dim)
    assert out.shape == x.shape
    max_err = float(jnp.max(jnp.abs(out - ref)))
    ref_scale = float(jnp.max(jnp.abs(ref)))
    # bf16 matmul operands (f32 accumulation) vs the all-f32 reference -> relative tol.
    if max_err > 4e-2 * ref_scale + 2e-3:
        raise AssertionError(
            f"Pallas kernel mismatch vs reference: {max_err} (ref scale {ref_scale})")
    print("KERNEL_OK")
</pallas_src>

<mosaic_0001>
module attributes {stable_mosaic.version = 11 : i64} {
  func.func @_attention_block_kernel(%arg0: i32, %arg1: memref<1x64x64xf32, #tpu.memory_space<vmem>>, %arg2: memref<1x4x64xf32, #tpu.memory_space<vmem>>, %arg3: memref<64x8xf32, #tpu.memory_space<vmem>>, %arg4: memref<2x64x96xbf16, #tpu.memory_space<vmem>>, %arg5: memref<2x32x64xbf16, #tpu.memory_space<vmem>>, %arg6: memref<64x256xbf16, #tpu.memory_space<vmem>>, %arg7: memref<256x64xbf16, #tpu.memory_space<vmem>>, %arg8: memref<1x64x64xf32, #tpu.memory_space<vmem>>, %arg9: memref<64x64xbf16, #tpu.memory_space<vmem>>, %arg10: memref<2x3x64x32xbf16, #tpu.memory_space<vmem>>, %arg11: memref<64x64xf32, #tpu.memory_space<vmem>>) attributes {dimension_semantics = [#tpu.dimension_semantics<parallel>], iteration_bounds = array<i64: 2>, scalar_prefetch = 0 : i64, scratch_operands = 3 : i64, tpu.core_type = #tpu.core_type<tc>, window_params = [{transform_indices = @transform_0, window_bounds = array<i64: 1, 64, 64>}, {transform_indices = @transform_1, window_bounds = array<i64: 1, 4, 64>}, {pipeline_mode = #tpu.pipeline_mode<synchronous>, transform_indices = @transform_2, window_bounds = array<i64: 64, 8>}, {pipeline_mode = #tpu.pipeline_mode<synchronous>, transform_indices = @transform_3, window_bounds = array<i64: 2, 64, 96>}, {pipeline_mode = #tpu.pipeline_mode<synchronous>, transform_indices = @transform_4, window_bounds = array<i64: 2, 32, 64>}, {pipeline_mode = #tpu.pipeline_mode<synchronous>, transform_indices = @transform_5, window_bounds = array<i64: 64, 256>}, {pipeline_mode = #tpu.pipeline_mode<synchronous>, transform_indices = @transform_6, window_bounds = array<i64: 256, 64>}, {transform_indices = @transform_7, window_bounds = array<i64: 1, 64, 64>}]} {
    %c0 = arith.constant 0 : index
    %c0_0 = arith.constant 0 : index
    %0 = vector.load %arg3[%c0, %c0_0] : memref<64x8xf32, #tpu.memory_space<vmem>>, vector<64x8xf32>
    %c0_1 = arith.constant 0 : index
    %c0_2 = arith.constant 0 : index
    %c0_3 = arith.constant 0 : index
    %1 = vector.load %arg2[%c0_1, %c0_2, %c0_3] : memref<1x4x64xf32, #tpu.memory_space<vmem>>, vector<1x4x64xf32>
    %2 = vector.shape_cast %1 : vector<1x4x64xf32> to vector<4x64xf32>
    %cst = arith.constant 0.000000e+00 : f32
    %3 = vector.broadcast %cst : f32 to vector<2x64xf32>
    %c0_i32 = arith.constant 0 : i32
    %c64_i32 = arith.constant 64 : i32
    %4 = arith.muli %c0_i32, %c64_i32 : i32
    %5 = tpu.assume_multiple %4, 8 : i32
    %c0_4 = arith.constant 0 : index
    %6 = arith.index_cast %5 : i32 to index
    %c0_5 = arith.constant 0 : index
    %7 = vector.load %arg1[%c0_4, %6, %c0_5] : memref<1x64x64xf32, #tpu.memory_space<vmem>>, vector<1x64x64xf32>
    %8 = vector.shape_cast %7 : vector<1x64x64xf32> to vector<64x64xf32>
    %cst_6 = arith.constant dense<0.000000e+00> : vector<64xf32>
    %9 = vector.multi_reduction <add>, %8, %cst_6 [0] : vector<64x64xf32> to vector<64xf32>
    %10 = vector.shape_cast %9 : vector<64xf32> to vector<1x64xf32>
    %11 = arith.mulf %8, %8 : vector<64x64xf32>
    %cst_7 = arith.constant dense<0.000000e+00> : vector<64xf32>
    %12 = vector.multi_reduction <add>, %11, %cst_7 [0] : vector<64x64xf32> to vector<64xf32>
    %13 = vector.shape_cast %12 : vector<64xf32> to vector<1x64xf32>
    %14 = tpu.concatenate %10, %13 in 0 : vector<1x64xf32>, vector<1x64xf32> -> vector<2x64xf32>
    %15 = arith.addf %3, %14 : vector<2x64xf32>
    %c1_i32 = arith.constant 1 : i32
    %16 = vector.extract_strided_slice %2 {offsets = [0, 0], sizes = [1, 64], strides = [1, 1]} : vector<4x64xf32> to vector<1x64xf32>
    %17 = vector.extract_strided_slice %2 {offsets = [1, 0], sizes = [1, 64], strides = [1, 1]} : vector<4x64xf32> to vector<1x64xf32>
    %cst_8 = arith.constant dense<0.000000e+00> : vector<2x8xf32>
    %18 = tpu.matmul %15, %0, %cst_8 {dimension_numbers = #tpu.dot_dimension_numbers<[1], [0], [0], [1], [0, 0, 1, 1], [], []>} : vector<2x64xf32>, vector<64x8xf32>, vector<2x8xf32> -> vector<2x8xf32>
    %cst_9 = arith.constant 0.001953125 : f32
    %19 = vector.broadcast %cst_9 : f32 to vector<2x8xf32>
    %20 = arith.mulf %18, %19 : vector<2x8xf32>
    %21 = vector.extract_strided_slice %20 {offsets = [0, 0], sizes = [1, 8], strides = [1, 1]} : vector<2x8xf32> to vector<1x8xf32>
    %22 = vector.extract_strided_slice %20 {offsets = [1, 0], sizes = [1, 8], strides = [1, 1]} : vector<2x8xf32> to vector<1x8xf32>
    %23 = arith.mulf %21, %21 : vector<1x8xf32>
    %24 = arith.subf %22, %23 : vector<1x8xf32>
    %cst_10 = arith.constant 0.000000e+00 : f32
    %25 = vector.broadcast %cst_10 : f32 to vector<1x8xf32>
    %26 = arith.maximumf %24, %25 : vector<1x8xf32>
    %cst_11 = arith.constant 9.99999974E-6 : f32
    %27 = vector.broadcast %cst_11 : f32 to vector<1x8xf32>
    %28 = arith.addf %26, %27 : vector<1x8xf32>
    %29 = math.rsqrt %28 : vector<1x8xf32>
    %30 = tpu.concatenate %21, %29 in 0 : vector<1x8xf32>, vector<1x8xf32> -> vector<2x8xf32>
    %cst_12 = arith.constant dense<0.000000e+00> : vector<2x64xf32>
    %31 = tpu.matmul %30, %0, %cst_12 {dimension_numbers = #tpu.dot_dimension_numbers<[1], [1], [0], [0], [0, 0, 1, 0], [], []>} : vector<2x8xf32>, vector<64x8xf32>, vector<2x64xf32> -> vector<2x64xf32>
    %32 = vector.extract_strided_slice %31 {offsets = [1, 0], sizes = [1, 64], strides = [1, 1]} : vector<2x64xf32> to vector<1x64xf32>
    %cst_13 = arith.constant 1.000000e+00 : f32
    %33 = vector.broadcast %cst_13 : f32 to vector<1x64xf32>
    %34 = arith.addf %33, %16 : vector<1x64xf32>
    %35 = arith.mulf %32, %34 : vector<1x64xf32>
    %36 = vector.extract_strided_slice %31 {offsets = [0, 0], sizes = [1, 64], strides = [1, 1]} : vector<2x64xf32> to vector<1x64xf32>
    %37 = arith.mulf %36, %35 : vector<1x64xf32>
    %38 = arith.subf %17, %37 : vector<1x64xf32>
    %c0_i32_14 = arith.constant 0 : i32
    %c1_i32_15 = arith.constant 1 : i32
    %39 = arith.muli %c0_i32_14, %c1_i32_15 : i32
    %c0_i32_16 = arith.constant 0 : i32
    %40 = arith.addi %c0_i32_16, %39 : i32
    %c64_i32_17 = arith.constant 64 : i32
    %41 = arith.muli %40, %c64_i32_17 : i32
    %42 = tpu.assume_multiple %41, 8 : i32
    %c0_18 = arith.constant 0 : index
    %43 = arith.index_cast %42 : i32 to index
    %c0_19 = arith.constant 0 : index
    %44 = vector.load %arg1[%c0_18, %43, %c0_19] : memref<1x64x64xf32, #tpu.memory_space<vmem>>, vector<1x64x64xf32>
    %45 = vector.shape_cast %44 : vector<1x64x64xf32> to vector<64x64xf32>
    %46 = vector.broadcast %35 : vector<1x64xf32> to vector<64x64xf32>
    %47 = arith.mulf %45, %46 : vector<64x64xf32>
    %48 = vector.broadcast %38 : vector<1x64xf32> to vector<64x64xf32>
    %49 = arith.addf %47, %48 : vector<64x64xf32>
    %50 = arith.truncf %49 : vector<64x64xf32> to vector<64x64xbf16>
    %c64_i32_20 = arith.constant 64 : i32
    %51 = arith.muli %40, %c64_i32_20 : i32
    %52 = tpu.assume_multiple %51, 8 : i32
    %53 = arith.index_cast %52 : i32 to index
    %c0_21 = arith.constant 0 : index
    %54 = vector.load %arg9[%53, %c0_21] : memref<64x64xbf16, #tpu.memory_space<vmem>>, vector<64x64xbf16>
    tpu.vector_store %arg9[%53, %c0_21], %50 {strides = array<i32>} : memref<64x64xbf16, #tpu.memory_space<vmem>>, vector<64x64xbf16>,
    %c1_i32_22 = arith.constant 1 : i32
    %c0_i32_23 = arith.constant 0 : i32
    %c2_i32 = arith.constant 2 : i32
    %55 = arith.addi %c0_i32_23, %c2_i32 : i32
    %c1_i32_24 = arith.constant 1 : i32
    scf.for %arg12 = %c0_i32_23 to %55 step %c1_i32_24  : i32 {
      %c1_i32_63 = arith.constant 1 : i32
      %129 = arith.muli %arg12, %c1_i32_63 : i32
      %c0_i32_64 = arith.constant 0 : i32
      %130 = arith.addi %c0_i32_64, %129 : i32
      %c0_65 = arith.constant 0 : index
      %c0_66 = arith.constant 0 : index
      %131 = vector.load %arg9[%c0_65, %c0_66] : memref<64x64xbf16, #tpu.memory_space<vmem>>, vector<64x64xbf16>
      %132 = arith.index_cast %130 : i32 to index
      %c0_67 = arith.constant 0 : index
      %c0_68 = arith.constant 0 : index
      %133 = vector.load %arg4[%132, %c0_67, %c0_68] : memref<2x64x96xbf16, #tpu.memory_space<vmem>>, vector<1x64x96xbf16>
      %134 = vector.shape_cast %133 : vector<1x64x96xbf16> to vector<64x96xbf16>
      %cst_69 = arith.constant dense<0.000000e+00> : vector<64x96xf32>
      %135 = tpu.matmul %131, %134, %cst_69 {dimension_numbers = #tpu.dot_dimension_numbers<[1], [0], [0], [1], [0, 0, 1, 1], [], []>} : vector<64x64xbf16>, vector<64x96xbf16>, vector<64x96xf32> -> vector<64x96xf32>
      %136 = vector.extract_strided_slice %135 {offsets = [0, 0], sizes = [64, 32], strides = [1, 1]} : vector<64x96xf32> to vector<64x32xf32>
      %137 = arith.truncf %136 : vector<64x32xf32> to vector<64x32xbf16>
      %138 = arith.index_cast %130 : i32 to index
      %c0_70 = arith.constant 0 : index
      %c0_71 = arith.constant 0 : index
      %c0_72 = arith.constant 0 : index
      %139 = vector.load %arg10[%138, %c0_70, %c0_71, %c0_72] : memref<2x3x64x32xbf16, #tpu.memory_space<vmem>>, vector<1x1x64x32xbf16>
      %140 = vector.shape_cast %139 : vector<1x1x64x32xbf16> to vector<64x32xbf16>
      %141 = vector.shape_cast %137 : vector<64x32xbf16> to vector<1x1x64x32xbf16>
      tpu.vector_store %arg10[%138, %c0_70, %c0_71, %c0_72], %141 {strides = array<i32>} : memref<2x3x64x32xbf16, #tpu.memory_space<vmem>>, vector<1x1x64x32xbf16>,
      %142 = vector.extract_strided_slice %135 {offsets = [0, 32], sizes = [64, 32], strides = [1, 1]} : vector<64x96xf32> to vector<64x32xf32>
      %143 = arith.truncf %142 : vector<64x32xf32> to vector<64x32xbf16>
      %144 = arith.index_cast %130 : i32 to index
      %c1 = arith.constant 1 : index
      %c0_73 = arith.constant 0 : index
      %c0_74 = arith.constant 0 : index
      %145 = vector.load %arg10[%144, %c1, %c0_73, %c0_74] : memref<2x3x64x32xbf16, #tpu.memory_space<vmem>>, vector<1x1x64x32xbf16>
      %146 = vector.shape_cast %145 : vector<1x1x64x32xbf16> to vector<64x32xbf16>
      %147 = vector.shape_cast %143 : vector<64x32xbf16> to vector<1x1x64x32xbf16>
      tpu.vector_store %arg10[%144, %c1, %c0_73, %c0_74], %147 {strides = array<i32>} : memref<2x3x64x32xbf16, #tpu.memory_space<vmem>>, vector<1x1x64x32xbf16>,
      %148 = vector.extract_strided_slice %135 {offsets = [0, 64], sizes = [64, 32], strides = [1, 1]} : vector<64x96xf32> to vector<64x32xf32>
      %149 = arith.truncf %148 : vector<64x32xf32> to vector<64x32xbf16>
      %150 = arith.index_cast %130 : i32 to index
      %c2 = arith.constant 2 : index
      %c0_75 = arith.constant 0 : index
      %c0_76 = arith.constant 0 : index
      %151 = vector.load %arg10[%150, %c2, %c0_75, %c0_76] : memref<2x3x64x32xbf16, #tpu.memory_space<vmem>>, vector<1x1x64x32xbf16>
      %152 = vector.shape_cast %151 : vector<1x1x64x32xbf16> to vector<64x32xbf16>
      %153 = vector.shape_cast %149 : vector<64x32xbf16> to vector<1x1x64x32xbf16>
      tpu.vector_store %arg10[%150, %c2, %c0_75, %c0_76], %153 {strides = array<i32>} : memref<2x3x64x32xbf16, #tpu.memory_space<vmem>>, vector<1x1x64x32xbf16>,
    }
    %c2_i32_25 = arith.constant 2 : i32
    %cst_26 = arith.constant 0.000000e+00 : f32
    %56 = vector.broadcast %cst_26 : f32 to vector<2x64xf32>
    %c0_i32_27 = arith.constant 0 : i32
    %c64_i32_28 = arith.constant 64 : i32
    %57 = arith.muli %c0_i32_27, %c64_i32_28 : i32
    %58 = tpu.assume_multiple %57, 8 : i32
    %c0_29 = arith.constant 0 : index
    %59 = arith.index_cast %58 : i32 to index
    %c0_30 = arith.constant 0 : index
    %60 = vector.load %arg1[%c0_29, %59, %c0_30] : memref<1x64x64xf32, #tpu.memory_space<vmem>>, vector<1x64x64xf32>
    %61 = vector.shape_cast %60 : vector<1x64x64xf32> to vector<64x64xf32>
    %cst_31 = arith.constant 0.000000e+00 : f32
    %62 = vector.broadcast %cst_31 : f32 to vector<64x64xf32>
    %c0_i32_32 = arith.constant 0 : i32
    %c2_i32_33 = arith.constant 2 : i32
    %63 = arith.addi %c0_i32_32, %c2_i32_33 : i32
    %c1_i32_34 = arith.constant 1 : i32
    %64 = scf.for %arg12 = %c0_i32_32 to %63 step %c1_i32_34 iter_args(%arg13 = %62) -> (vector<64x64xf32>)  : i32 {
      %c64_i32_63 = arith.constant 64 : i32
      %129 = arith.muli %c0_i32_27, %c64_i32_63 : i32
      %130 = tpu.assume_multiple %129, 8 : i32
      %131 = arith.index_cast %arg12 : i32 to index
      %c0_64 = arith.constant 0 : index
      %132 = arith.index_cast %130 : i32 to index
      %c0_65 = arith.constant 0 : index
      %133 = vector.load %arg10[%131, %c0_64, %132, %c0_65] : memref<2x3x64x32xbf16, #tpu.memory_space<vmem>>, vector<1x1x64x32xbf16>
      %134 = vector.shape_cast %133 : vector<1x1x64x32xbf16> to vector<64x32xbf16>
      %135 = arith.index_cast %arg12 : i32 to index
      %c1 = arith.constant 1 : index
      %c0_66 = arith.constant 0 : index
      %c0_67 = arith.constant 0 : index
      %136 = vector.load %arg10[%135, %c1, %c0_66, %c0_67] : memref<2x3x64x32xbf16, #tpu.memory_space<vmem>>, vector<1x1x64x32xbf16>
      %137 = vector.shape_cast %136 : vector<1x1x64x32xbf16> to vector<64x32xbf16>
      %cst_68 = arith.constant dense<0.000000e+00> : vector<64x64xf32>
      %138 = tpu.matmul %134, %137, %cst_68 {dimension_numbers = #tpu.dot_dimension_numbers<[1], [1], [0], [0], [0, 0, 1, 0], [], []>} : vector<64x32xbf16>, vector<64x32xbf16>, vector<64x64xf32> -> vector<64x64xf32>
      %cst_69 = arith.constant dense<0xFF800000> : vector<64xf32>
      %139 = vector.multi_reduction <maximumf>, %138, %cst_69 [1] : vector<64x64xf32> to vector<64xf32>
      %140 = vector.shape_cast %139 : vector<64xf32> to vector<64x1xf32>
      %141 = vector.broadcast %140 : vector<64x1xf32> to vector<64x64xf32>
      %142 = arith.subf %138, %141 : vector<64x64xf32>
      %143 = math.exp %142 : vector<64x64xf32>
      %cst_70 = arith.constant dense<0.000000e+00> : vector<64xf32>
      %144 = vector.multi_reduction <add>, %143, %cst_70 [1] : vector<64x64xf32> to vector<64xf32>
      %145 = vector.shape_cast %144 : vector<64xf32> to vector<64x1xf32>
      %146 = arith.truncf %143 : vector<64x64xf32> to vector<64x64xbf16>
      %147 = arith.index_cast %arg12 : i32 to index
      %c2 = arith.constant 2 : index
      %c0_71 = arith.constant 0 : index
      %c0_72 = arith.constant 0 : index
      %148 = vector.load %arg10[%147, %c2, %c0_71, %c0_72] : memref<2x3x64x32xbf16, #tpu.memory_space<vmem>>, vector<1x1x64x32xbf16>
      %149 = vector.shape_cast %148 : vector<1x1x64x32xbf16> to vector<64x32xbf16>
      %cst_73 = arith.constant dense<0.000000e+00> : vector<64x32xf32>
      %150 = tpu.matmul %146, %149, %cst_73 {dimension_numbers = #tpu.dot_dimension_numbers<[1], [0], [0], [1], [0, 0, 1, 1], [], []>} : vector<64x64xbf16>, vector<64x32xbf16>, vector<64x32xf32> -> vector<64x32xf32>
      %151 = vector.broadcast %145 : vector<64x1xf32> to vector<64x32xf32>
      %152 = arith.divf %150, %151 : vector<64x32xf32>
      %153 = arith.truncf %152 : vector<64x32xf32> to vector<64x32xbf16>
      %154 = arith.index_cast %arg12 : i32 to index
      %c0_74 = arith.constant 0 : index
      %c0_75 = arith.constant 0 : index
      %155 = vector.load %arg5[%154, %c0_74, %c0_75] : memref<2x32x64xbf16, #tpu.memory_space<vmem>>, vector<1x32x64xbf16>
      %156 = vector.shape_cast %155 : vector<1x32x64xbf16> to vector<32x64xbf16>
      %cst_76 = arith.constant dense<0.000000e+00> : vector<64x64xf32>
      %157 = tpu.matmul %153, %156, %cst_76 {dimension_numbers = #tpu.dot_dimension_numbers<[1], [0], [0], [1], [0, 0, 1, 1], [], []>} : vector<64x32xbf16>, vector<32x64xbf16>, vector<64x64xf32> -> vector<64x64xf32>
      %158 = arith.addf %arg13, %157 : vector<64x64xf32>
      scf.yield %158 : vector<64x64xf32>
    }
    %c2_i32_35 = arith.constant 2 : i32
    %65 = arith.addf %61, %64 : vector<64x64xf32>
    %c64_i32_36 = arith.constant 64 : i32
    %66 = arith.muli %c0_i32_27, %c64_i32_36 : i32
    %67 = tpu.assume_multiple %66, 8 : i32
    %68 = arith.index_cast %67 : i32 to index
    %c0_37 = arith.constant 0 : index
    %69 = vector.load %arg11[%68, %c0_37] : memref<64x64xf32, #tpu.memory_space<vmem>>, vector<64x64xf32>
    tpu.vector_store %arg11[%68, %c0_37], %65 {strides = array<i32>} : memref<64x64xf32, #tpu.memory_space<vmem>>, vector<64x64xf32>,
    %cst_38 = arith.constant dense<0.000000e+00> : vector<64xf32>
    %70 = vector.multi_reduction <add>, %65, %cst_38 [0] : vector<64x64xf32> to vector<64xf32>
    %71 = vector.shape_cast %70 : vector<64xf32> to vector<1x64xf32>
    %72 = arith.mulf %65, %65 : vector<64x64xf32>
    %cst_39 = arith.constant dense<0.000000e+00> : vector<64xf32>
    %73 = vector.multi_reduction <add>, %72, %cst_39 [0] : vector<64x64xf32> to vector<64xf32>
    %74 = vector.shape_cast %73 : vector<64xf32> to vector<1x64xf32>
    %75 = tpu.concatenate %71, %74 in 0 : vector<1x64xf32>, vector<1x64xf32> -> vector<2x64xf32>
    %76 = arith.addf %56, %75 : vector<2x64xf32>
    %c1_i32_40 = arith.constant 1 : i32
    %77 = vector.extract_strided_slice %2 {offsets = [2, 0], sizes = [1, 64], strides = [1, 1]} : vector<4x64xf32> to vector<1x64xf32>
    %78 = vector.extract_strided_slice %2 {offsets = [3, 0], sizes = [1, 64], strides = [1, 1]} : vector<4x64xf32> to vector<1x64xf32>
    %cst_41 = arith.constant dense<0.000000e+00> : vector<2x8xf32>
    %79 = tpu.matmul %76, %0, %cst_41 {dimension_numbers = #tpu.dot_dimension_numbers<[1], [0], [0], [1], [0, 0, 1, 1], [], []>} : vector<2x64xf32>, vector<64x8xf32>, vector<2x8xf32> -> vector<2x8xf32>
    %cst_42 = arith.constant 0.001953125 : f32
    %80 = vector.broadcast %cst_42 : f32 to vector<2x8xf32>
    %81 = arith.mulf %79, %80 : vector<2x8xf32>
    %82 = vector.extract_strided_slice %81 {offsets = [0, 0], sizes = [1, 8], strides = [1, 1]} : vector<2x8xf32> to vector<1x8xf32>
    %83 = vector.extract_strided_slice %81 {offsets = [1, 0], sizes = [1, 8], strides = [1, 1]} : vector<2x8xf32> to vector<1x8xf32>
    %84 = arith.mulf %82, %82 : vector<1x8xf32>
    %85 = arith.subf %83, %84 : vector<1x8xf32>
    %cst_43 = arith.constant 0.000000e+00 : f32
    %86 = vector.broadcast %cst_43 : f32 to vector<1x8xf32>
    %87 = arith.maximumf %85, %86 : vector<1x8xf32>
    %cst_44 = arith.constant 9.99999974E-6 : f32
    %88 = vector.broadcast %cst_44 : f32 to vector<1x8xf32>
    %89 = arith.addf %87, %88 : vector<1x8xf32>
    %90 = math.rsqrt %89 : vector<1x8xf32>
    %91 = tpu.concatenate %82, %90 in 0 : vector<1x8xf32>, vector<1x8xf32> -> vector<2x8xf32>
    %cst_45 = arith.constant dense<0.000000e+00> : vector<2x64xf32>
    %92 = tpu.matmul %91, %0, %cst_45 {dimension_numbers = #tpu.dot_dimension_numbers<[1], [1], [0], [0], [0, 0, 1, 0], [], []>} : vector<2x8xf32>, vector<64x8xf32>, vector<2x64xf32> -> vector<2x64xf32>
    %93 = vector.extract_strided_slice %92 {offsets = [1, 0], sizes = [1, 64], strides = [1, 1]} : vector<2x64xf32> to vector<1x64xf32>
    %cst_46 = arith.constant 1.000000e+00 : f32
    %94 = vector.broadcast %cst_46 : f32 to vector<1x64xf32>
    %95 = arith.addf %94, %77 : vector<1x64xf32>
    %96 = arith.mulf %93, %95 : vector<1x64xf32>
    %97 = vector.extract_strided_slice %92 {offsets = [0, 0], sizes = [1, 64], strides = [1, 1]} : vector<2x64xf32> to vector<1x64xf32>
    %98 = arith.mulf %97, %96 : vector<1x64xf32>
    %99 = arith.subf %78, %98 : vector<1x64xf32>
    %c0_i32_47 = arith.constant 0 : i32
    %c1_i32_48 = arith.constant 1 : i32
    %100 = arith.muli %c0_i32_47, %c1_i32_48 : i32
    %c0_i32_49 = arith.constant 0 : i32
    %101 = arith.addi %c0_i32_49, %100 : i32
    %c64_i32_50 = arith.constant 64 : i32
    %102 = arith.muli %101, %c64_i32_50 : i32
    %103 = tpu.assume_multiple %102, 8 : i32
    %104 = arith.index_cast %103 : i32 to index
    %c0_51 = arith.constant 0 : index
    %105 = vector.load %arg11[%104, %c0_51] : memref<64x64xf32, #tpu.memory_space<vmem>>, vector<64x64xf32>
    %106 = vector.broadcast %96 : vector<1x64xf32> to vector<64x64xf32>
    %107 = arith.mulf %105, %106 : vector<64x64xf32>
    %108 = vector.broadcast %99 : vector<1x64xf32> to vector<64x64xf32>
    %109 = arith.addf %107, %108 : vector<64x64xf32>
    %110 = arith.truncf %109 : vector<64x64xf32> to vector<64x64xbf16>
    %c0_52 = arith.constant 0 : index
    %c0_53 = arith.constant 0 : index
    %111 = vector.load %arg6[%c0_52, %c0_53] : memref<64x256xbf16, #tpu.memory_space<vmem>>, vector<64x256xbf16>
    %cst_54 = arith.constant dense<0.000000e+00> : vector<64x256xf32>
    %112 = tpu.matmul %110, %111, %cst_54 {dimension_numbers = #tpu.dot_dimension_numbers<[1], [0], [0], [1], [0, 0, 1, 1], [], []>} : vector<64x64xbf16>, vector<64x256xbf16>, vector<64x256xf32> -> vector<64x256xf32>
    %113 = arith.negf %112 : vector<64x256xf32>
    %114 = math.exp %113 : vector<64x256xf32>
    %cst_55 = arith.constant 1.000000e+00 : f32
    %115 = vector.broadcast %cst_55 : f32 to vector<64x256xf32>
    %116 = arith.addf %115, %114 : vector<64x256xf32>
    %117 = arith.divf %115, %116 : vector<64x256xf32>
    %118 = arith.mulf %112, %117 : vector<64x256xf32>
    %119 = arith.truncf %118 : vector<64x256xf32> to vector<64x256xbf16>
    %c0_56 = arith.constant 0 : index
    %c0_57 = arith.constant 0 : index
    %120 = vector.load %arg7[%c0_56, %c0_57] : memref<256x64xbf16, #tpu.memory_space<vmem>>, vector<256x64xbf16>
    %cst_58 = arith.constant dense<0.000000e+00> : vector<64x64xf32>
    %121 = tpu.matmul %119, %120, %cst_58 {dimension_numbers = #tpu.dot_dimension_numbers<[1], [0], [0], [1], [0, 0, 1, 1], [], []>} : vector<64x256xbf16>, vector<256x64xbf16>, vector<64x64xf32> -> vector<64x64xf32>
    %122 = arith.addf %105, %121 : vector<64x64xf32>
    %c64_i32_59 = arith.constant 64 : i32
    %123 = arith.muli %101, %c64_i32_59 : i32
    %124 = tpu.assume_multiple %123, 8 : i32
    %c0_60 = arith.constant 0 : index
    %125 = arith.index_cast %124 : i32 to index
    %c0_61 = arith.constant 0 : index
    %126 = vector.load %arg8[%c0_60, %125, %c0_61] : memref<1x64x64xf32, #tpu.memory_space<vmem>>, vector<1x64x64xf32>
    %127 = vector.shape_cast %126 : vector<1x64x64xf32> to vector<64x64xf32>
    %128 = vector.shape_cast %122 : vector<64x64xf32> to vector<1x64x64xf32>
    tpu.vector_store %arg8[%c0_60, %125, %c0_61], %128 {strides = array<i32>} : memref<1x64x64xf32, #tpu.memory_space<vmem>>, vector<1x64x64xf32>,
    %c1_i32_62 = arith.constant 1 : i32
    return
  }
  func.func @transform_0(%arg0: i32) -> (i32, i32, i32) {
    %c0_i32 = arith.constant 0 : i32
    %c0_i32_0 = arith.constant 0 : i32
    %c0_i32_1 = arith.constant 0 : i32
    return %arg0, %c0_i32, %c0_i32_0 : i32, i32, i32
  }
  func.func @transform_1(%arg0: i32) -> (i32, i32, i32) {
    %c0_i32 = arith.constant 0 : i32
    %c0_i32_0 = arith.constant 0 : i32
    %c0_i32_1 = arith.constant 0 : i32
    return %arg0, %c0_i32, %c0_i32_0 : i32, i32, i32
  }
  func.func @transform_2(%arg0: i32) -> (i32, i32) {
    %c0_i32 = arith.constant 0 : i32
    %c0_i32_0 = arith.constant 0 : i32
    %c0_i32_1 = arith.constant 0 : i32
    return %c0_i32, %c0_i32_0 : i32, i32
  }
  func.func @transform_3(%arg0: i32) -> (i32, i32, i32) {
    %c0_i32 = arith.constant 0 : i32
    %c0_i32_0 = arith.constant 0 : i32
    %c0_i32_1 = arith.constant 0 : i32
    %c0_i32_2 = arith.constant 0 : i32
    return %c0_i32, %c0_i32_0, %c0_i32_1 : i32, i32, i32
  }
  func.func @transform_4(%arg0: i32) -> (i32, i32, i32) {
    %c0_i32 = arith.constant 0 : i32
    %c0_i32_0 = arith.constant 0 : i32
    %c0_i32_1 = arith.constant 0 : i32
    %c0_i32_2 = arith.constant 0 : i32
    return %c0_i32, %c0_i32_0, %c0_i32_1 : i32, i32, i32
  }
  func.func @transform_5(%arg0: i32) -> (i32, i32) {
    %c0_i32 = arith.constant 0 : i32
    %c0_i32_0 = arith.constant 0 : i32
    %c0_i32_1 = arith.constant 0 : i32
    return %c0_i32, %c0_i32_0 : i32, i32
  }
  func.func @transform_6(%arg0: i32) -> (i32, i32) {
    %c0_i32 = arith.constant 0 : i32
    %c0_i32_0 = arith.constant 0 : i32
    %c0_i32_1 = arith.constant 0 : i32
    return %c0_i32, %c0_i32_0 : i32, i32
  }
  func.func @transform_7(%arg0: i32) -> (i32, i32, i32) {
    %c0_i32 = arith.constant 0 : i32
    %c0_i32_0 = arith.constant 0 : i32
    %c0_i32_1 = arith.constant 0 : i32
    return %arg0, %c0_i32, %c0_i32_0 : i32, i32, i32
  }
}

module attributes {stable_mosaic.version = 11 : i64} {
  func.func @_attention_block_kernel(%arg0: i32, %arg1: memref<1x64x64xf32, #tpu.memory_space<vmem>>, %arg2: memref<1x4x64xf32, #tpu.memory_space<vmem>>, %arg3: memref<64x8xf32, #tpu.memory_space<vmem>>, %arg4: memref<2x64x96xbf16, #tpu.memory_space<vmem>>, %arg5: memref<2x32x64xbf16, #tpu.memory_space<vmem>>, %arg6: memref<64x256xbf16, #tpu.memory_space<vmem>>, %arg7: memref<256x64xbf16, #tpu.memory_space<vmem>>, %arg8: memref<1x64x64xf32, #tpu.memory_space<vmem>>, %arg9: memref<64x64xbf16, #tpu.memory_space<vmem>>, %arg10: memref<2x3x64x32xbf16, #tpu.memory_space<vmem>>, %arg11: memref<64x64xf32, #tpu.memory_space<vmem>>) attributes {dimension_semantics = [#tpu.dimension_semantics<parallel>], iteration_bounds = array<i64: 2>, scalar_prefetch = 0 : i64, scratch_operands = 3 : i64, tpu.core_type = #tpu.core_type<tc>, window_params = [{transform_indices = @transform_0, window_bounds = array<i64: 1, 64, 64>}, {transform_indices = @transform_1, window_bounds = array<i64: 1, 4, 64>}, {pipeline_mode = #tpu.pipeline_mode<synchronous>, transform_indices = @transform_2, window_bounds = array<i64: 64, 8>}, {pipeline_mode = #tpu.pipeline_mode<synchronous>, transform_indices = @transform_3, window_bounds = array<i64: 2, 64, 96>}, {pipeline_mode = #tpu.pipeline_mode<synchronous>, transform_indices = @transform_4, window_bounds = array<i64: 2, 32, 64>}, {pipeline_mode = #tpu.pipeline_mode<synchronous>, transform_indices = @transform_5, window_bounds = array<i64: 64, 256>}, {pipeline_mode = #tpu.pipeline_mode<synchronous>, transform_indices = @transform_6, window_bounds = array<i64: 256, 64>}, {transform_indices = @transform_7, window_bounds = array<i64: 1, 64, 64>}]} {
    %c0 = arith.constant 0 : index
    %c0_0 = arith.constant 0 : index
    %0 = vector.load %arg3[%c0, %c0_0] : memref<64x8xf32, #tpu.memory_space<vmem>>, vector<64x8xf32>
    %c0_1 = arith.constant 0 : index
    %c0_2 = arith.constant 0 : index
    %c0_3 = arith.constant 0 : index
    %1 = vector.load %arg2[%c0_1, %c0_2, %c0_3] : memref<1x4x64xf32, #tpu.memory_space<vmem>>, vector<1x4x64xf32>
    %2 = vector.shape_cast %1 : vector<1x4x64xf32> to vector<4x64xf32>
    %cst = arith.constant 0.000000e+00 : f32
    %3 = vector.broadcast %cst : f32 to vector<2x64xf32>
    %c0_i32 = arith.constant 0 : i32
    %c64_i32 = arith.constant 64 : i32
    %4 = arith.muli %c0_i32, %c64_i32 : i32
    %5 = tpu.assume_multiple %4, 8 : i32
    %c0_4 = arith.constant 0 : index
    %6 = arith.index_cast %5 : i32 to index
    %c0_5 = arith.constant 0 : index
    %7 = vector.load %arg1[%c0_4, %6, %c0_5] : memref<1x64x64xf32, #tpu.memory_space<vmem>>, vector<1x64x64xf32>
    %8 = vector.shape_cast %7 : vector<1x64x64xf32> to vector<64x64xf32>
    %cst_6 = arith.constant dense<0.000000e+00> : vector<64xf32>
    %9 = vector.multi_reduction <add>, %8, %cst_6 [0] : vector<64x64xf32> to vector<64xf32>
    %10 = vector.shape_cast %9 : vector<64xf32> to vector<1x64xf32>
    %11 = arith.mulf %8, %8 : vector<64x64xf32>
    %cst_7 = arith.constant dense<0.000000e+00> : vector<64xf32>
    %12 = vector.multi_reduction <add>, %11, %cst_7 [0] : vector<64x64xf32> to vector<64xf32>
    %13 = vector.shape_cast %12 : vector<64xf32> to vector<1x64xf32>
    %14 = tpu.concatenate %10, %13 in 0 : vector<1x64xf32>, vector<1x64xf32> -> vector<2x64xf32>
    %15 = arith.addf %3, %14 : vector<2x64xf32>
    %c1_i32 = arith.constant 1 : i32
    %16 = vector.extract_strided_slice %2 {offsets = [0, 0], sizes = [1, 64], strides = [1, 1]} : vector<4x64xf32> to vector<1x64xf32>
    %17 = vector.extract_strided_slice %2 {offsets = [1, 0], sizes = [1, 64], strides = [1, 1]} : vector<4x64xf32> to vector<1x64xf32>
    %cst_8 = arith.constant dense<0.000000e+00> : vector<2x8xf32>
    %18 = tpu.matmul %15, %0, %cst_8 {dimension_numbers = #tpu.dot_dimension_numbers<[1], [0], [0], [1], [0, 0, 1, 1], [], []>} : vector<2x64xf32>, vector<64x8xf32>, vector<2x8xf32> -> vector<2x8xf32>
    %cst_9 = arith.constant 0.001953125 : f32
    %19 = vector.broadcast %cst_9 : f32 to vector<2x8xf32>
    %20 = arith.mulf %18, %19 : vector<2x8xf32>
    %21 = vector.extract_strided_slice %20 {offsets = [0, 0], sizes = [1, 8], strides = [1, 1]} : vector<2x8xf32> to vector<1x8xf32>
    %22 = vector.extract_strided_slice %20 {offsets = [1, 0], sizes = [1, 8], strides = [1, 1]} : vector<2x8xf32> to vector<1x8xf32>
    %23 = arith.mulf %21, %21 : vector<1x8xf32>
    %24 = arith.subf %22, %23 : vector<1x8xf32>
    %cst_10 = arith.constant 0.000000e+00 : f32
    %25 = vector.broadcast %cst_10 : f32 to vector<1x8xf32>
    %26 = arith.maximumf %24, %25 : vector<1x8xf32>
    %cst_11 = arith.constant 9.99999974E-6 : f32
    %27 = vector.broadcast %cst_11 : f32 to vector<1x8xf32>
    %28 = arith.addf %26, %27 : vector<1x8xf32>
    %29 = math.rsqrt %28 : vector<1x8xf32>
    %30 = tpu.concatenate %21, %29 in 0 : vector<1x8xf32>, vector<1x8xf32> -> vector<2x8xf32>
    %cst_12 = arith.constant dense<0.000000e+00> : vector<2x64xf32>
    %31 = tpu.matmul %30, %0, %cst_12 {dimension_numbers = #tpu.dot_dimension_numbers<[1], [1], [0], [0], [0, 0, 1, 0], [], []>} : vector<2x8xf32>, vector<64x8xf32>, vector<2x64xf32> -> vector<2x64xf32>
    %32 = vector.extract_strided_slice %31 {offsets = [1, 0], sizes = [1, 64], strides = [1, 1]} : vector<2x64xf32> to vector<1x64xf32>
    %cst_13 = arith.constant 1.000000e+00 : f32
    %33 = vector.broadcast %cst_13 : f32 to vector<1x64xf32>
    %34 = arith.addf %33, %16 : vector<1x64xf32>
    %35 = arith.mulf %32, %34 : vector<1x64xf32>
    %36 = vector.extract_strided_slice %31 {offsets = [0, 0], sizes = [1, 64], strides = [1, 1]} : vector<2x64xf32> to vector<1x64xf32>
    %37 = arith.mulf %36, %35 : vector<1x64xf32>
    %38 = arith.subf %17, %37 : vector<1x64xf32>
    %c0_i32_14 = arith.constant 0 : i32
    %c1_i32_15 = arith.constant 1 : i32
    %39 = arith.muli %c0_i32_14, %c1_i32_15 : i32
    %c0_i32_16 = arith.constant 0 : i32
    %40 = arith.addi %c0_i32_16, %39 : i32
    %c64_i32_17 = arith.constant 64 : i32
    %41 = arith.muli %40, %c64_i32_17 : i32
    %42 = tpu.assume_multiple %41, 8 : i32
    %c0_18 = arith.constant 0 : index
    %43 = arith.index_cast %42 : i32 to index
    %c0_19 = arith.constant 0 : index
    %44 = vector.load %arg1[%c0_18, %43, %c0_19] : memref<1x64x64xf32, #tpu.memory_space<vmem>>, vector<1x64x64xf32>
    %45 = vector.shape_cast %44 : vector<1x64x64xf32> to vector<64x64xf32>
    %46 = vector.broadcast %35 : vector<1x64xf32> to vector<64x64xf32>
    %47 = arith.mulf %45, %46 : vector<64x64xf32>
    %48 = vector.broadcast %38 : vector<1x64xf32> to vector<64x64xf32>
    %49 = arith.addf %47, %48 : vector<64x64xf32>
    %50 = arith.truncf %49 : vector<64x64xf32> to vector<64x64xbf16>
    %c64_i32_20 = arith.constant 64 : i32
    %51 = arith.muli %40, %c64_i32_20 : i32
    %52 = tpu.assume_multiple %51, 8 : i32
    %53 = arith.index_cast %52 : i32 to index
    %c0_21 = arith.constant 0 : index
    %54 = vector.load %arg9[%53, %c0_21] : memref<64x64xbf16, #tpu.memory_space<vmem>>, vector<64x64xbf16>
    tpu.vector_store %arg9[%53, %c0_21], %50 {strides = array<i32>} : memref<64x64xbf16, #tpu.memory_space<vmem>>, vector<64x64xbf16>,
    %c1_i32_22 = arith.constant 1 : i32
    %c0_i32_23 = arith.constant 0 : i32
    %c2_i32 = arith.constant 2 : i32
    %55 = arith.addi %c0_i32_23, %c2_i32 : i32
    %c1_i32_24 = arith.constant 1 : i32
    scf.for %arg12 = %c0_i32_23 to %55 step %c1_i32_24  : i32 {
      %c1_i32_63 = arith.constant 1 : i32
      %129 = arith.muli %arg12, %c1_i32_63 : i32
      %c0_i32_64 = arith.constant 0 : i32
      %130 = arith.addi %c0_i32_64, %129 : i32
      %c0_65 = arith.constant 0 : index
      %c0_66 = arith.constant 0 : index
      %131 = vector.load %arg9[%c0_65, %c0_66] : memref<64x64xbf16, #tpu.memory_space<vmem>>, vector<64x64xbf16>
      %132 = arith.index_cast %130 : i32 to index
      %c0_67 = arith.constant 0 : index
      %c0_68 = arith.constant 0 : index
      %133 = vector.load %arg4[%132, %c0_67, %c0_68] : memref<2x64x96xbf16, #tpu.memory_space<vmem>>, vector<1x64x96xbf16>
      %134 = vector.shape_cast %133 : vector<1x64x96xbf16> to vector<64x96xbf16>
      %cst_69 = arith.constant dense<0.000000e+00> : vector<64x96xf32>
      %135 = tpu.matmul %131, %134, %cst_69 {dimension_numbers = #tpu.dot_dimension_numbers<[1], [0], [0], [1], [0, 0, 1, 1], [], []>} : vector<64x64xbf16>, vector<64x96xbf16>, vector<64x96xf32> -> vector<64x96xf32>
      %136 = vector.extract_strided_slice %135 {offsets = [0, 0], sizes = [64, 32], strides = [1, 1]} : vector<64x96xf32> to vector<64x32xf32>
      %137 = arith.truncf %136 : vector<64x32xf32> to vector<64x32xbf16>
      %138 = arith.index_cast %130 : i32 to index
      %c0_70 = arith.constant 0 : index
      %c0_71 = arith.constant 0 : index
      %c0_72 = arith.constant 0 : index
      %139 = vector.load %arg10[%138, %c0_70, %c0_71, %c0_72] : memref<2x3x64x32xbf16, #tpu.memory_space<vmem>>, vector<1x1x64x32xbf16>
      %140 = vector.shape_cast %139 : vector<1x1x64x32xbf16> to vector<64x32xbf16>
      %141 = vector.shape_cast %137 : vector<64x32xbf16> to vector<1x1x64x32xbf16>
      tpu.vector_store %arg10[%138, %c0_70, %c0_71, %c0_72], %141 {strides = array<i32>} : memref<2x3x64x32xbf16, #tpu.memory_space<vmem>>, vector<1x1x64x32xbf16>,
      %142 = vector.extract_strided_slice %135 {offsets = [0, 32], sizes = [64, 32], strides = [1, 1]} : vector<64x96xf32> to vector<64x32xf32>
      %143 = arith.truncf %142 : vector<64x32xf32> to vector<64x32xbf16>
      %144 = arith.index_cast %130 : i32 to index
      %c1 = arith.constant 1 : index
      %c0_73 = arith.constant 0 : index
      %c0_74 = arith.constant 0 : index
      %145 = vector.load %arg10[%144, %c1, %c0_73, %c0_74] : memref<2x3x64x32xbf16, #tpu.memory_space<vmem>>, vector<1x1x64x32xbf16>
      %146 = vector.shape_cast %145 : vector<1x1x64x32xbf16> to vector<64x32xbf16>
      %147 = vector.shape_cast %143 : vector<64x32xbf16> to vector<1x1x64x32xbf16>
      tpu.vector_store %arg10[%144, %c1, %c0_73, %c0_74], %147 {strides = array<i32>} : memref<2x3x64x32xbf16, #tpu.memory_space<vmem>>, vector<1x1x64x32xbf16>,
      %148 = vector.extract_strided_slice %135 {offsets = [0, 64], sizes = [64, 32], strides = [1, 1]} : vector<64x96xf32> to vector<64x32xf32>
      %149 = arith.truncf %148 : vector<64x32xf32> to vector<64x32xbf16>
      %150 = arith.index_cast %130 : i32 to index
      %c2 = arith.constant 2 : index
      %c0_75 = arith.constant 0 : index
      %c0_76 = arith.constant 0 : index
      %151 = vector.load %arg10[%150, %c2, %c0_75, %c0_76] : memref<2x3x64x32xbf16, #tpu.memory_space<vmem>>, vector<1x1x64x32xbf16>
      %152 = vector.shape_cast %151 : vector<1x1x64x32xbf16> to vector<64x32xbf16>
      %153 = vector.shape_cast %149 : vector<64x32xbf16> to vector<1x1x64x32xbf16>
      tpu.vector_store %arg10[%150, %c2, %c0_75, %c0_76], %153 {strides = array<i32>} : memref<2x3x64x32xbf16, #tpu.memory_space<vmem>>, vector<1x1x64x32xbf16>,
    }
    %c2_i32_25 = arith.constant 2 : i32
    %cst_26 = arith.constant 0.000000e+00 : f32
    %56 = vector.broadcast %cst_26 : f32 to vector<2x64xf32>
    %c0_i32_27 = arith.constant 0 : i32
    %c64_i32_28 = arith.constant 64 : i32
    %57 = arith.muli %c0_i32_27, %c64_i32_28 : i32
    %58 = tpu.assume_multiple %57, 8 : i32
    %c0_29 = arith.constant 0 : index
    %59 = arith.index_cast %58 : i32 to index
    %c0_30 = arith.constant 0 : index
    %60 = vector.load %arg1[%c0_29, %59, %c0_30] : memref<1x64x64xf32, #tpu.memory_space<vmem>>, vector<1x64x64xf32>
    %61 = vector.shape_cast %60 : vector<1x64x64xf32> to vector<64x64xf32>
    %cst_31 = arith.constant 0.000000e+00 : f32
    %62 = vector.broadcast %cst_31 : f32 to vector<64x64xf32>
    %c0_i32_32 = arith.constant 0 : i32
    %c2_i32_33 = arith.constant 2 : i32
    %63 = arith.addi %c0_i32_32, %c2_i32_33 : i32
    %c1_i32_34 = arith.constant 1 : i32
    %64 = scf.for %arg12 = %c0_i32_32 to %63 step %c1_i32_34 iter_args(%arg13 = %62) -> (vector<64x64xf32>)  : i32 {
      %c64_i32_63 = arith.constant 64 : i32
      %129 = arith.muli %c0_i32_27, %c64_i32_63 : i32
      %130 = tpu.assume_multiple %129, 8 : i32
      %131 = arith.index_cast %arg12 : i32 to index
      %c0_64 = arith.constant 0 : index
      %132 = arith.index_cast %130 : i32 to index
      %c0_65 = arith.constant 0 : index
      %133 = vector.load %arg10[%131, %c0_64, %132, %c0_65] : memref<2x3x64x32xbf16, #tpu.memory_space<vmem>>, vector<1x1x64x32xbf16>
      %134 = vector.shape_cast %133 : vector<1x1x64x32xbf16> to vector<64x32xbf16>
      %135 = arith.index_cast %arg12 : i32 to index
      %c1 = arith.constant 1 : index
      %c0_66 = arith.constant 0 : index
      %c0_67 = arith.constant 0 : index
      %136 = vector.load %arg10[%135, %c1, %c0_66, %c0_67] : memref<2x3x64x32xbf16, #tpu.memory_space<vmem>>, vector<1x1x64x32xbf16>
      %137 = vector.shape_cast %136 : vector<1x1x64x32xbf16> to vector<64x32xbf16>
      %cst_68 = arith.constant dense<0.000000e+00> : vector<64x64xf32>
      %138 = tpu.matmul %134, %137, %cst_68 {dimension_numbers = #tpu.dot_dimension_numbers<[1], [1], [0], [0], [0, 0, 1, 0], [], []>} : vector<64x32xbf16>, vector<64x32xbf16>, vector<64x64xf32> -> vector<64x64xf32>
      %cst_69 = arith.constant dense<0xFF800000> : vector<64xf32>
      %139 = vector.multi_reduction <maximumf>, %138, %cst_69 [1] : vector<64x64xf32> to vector<64xf32>
      %140 = vector.shape_cast %139 : vector<64xf32> to vector<64x1xf32>
      %141 = vector.broadcast %140 : vector<64x1xf32> to vector<64x64xf32>
      %142 = arith.subf %138, %141 : vector<64x64xf32>
      %143 = math.exp %142 : vector<64x64xf32>
      %cst_70 = arith.constant dense<0.000000e+00> : vector<64xf32>
      %144 = vector.multi_reduction <add>, %143, %cst_70 [1] : vector<64x64xf32> to vector<64xf32>
      %145 = vector.shape_cast %144 : vector<64xf32> to vector<64x1xf32>
      %146 = arith.truncf %143 : vector<64x64xf32> to vector<64x64xbf16>
      %147 = arith.index_cast %arg12 : i32 to index
      %c2 = arith.constant 2 : index
      %c0_71 = arith.constant 0 : index
      %c0_72 = arith.constant 0 : index
      %148 = vector.load %arg10[%147, %c2, %c0_71, %c0_72] : memref<2x3x64x32xbf16, #tpu.memory_space<vmem>>, vector<1x1x64x32xbf16>
      %149 = vector.shape_cast %148 : vector<1x1x64x32xbf16> to vector<64x32xbf16>
      %cst_73 = arith.constant dense<0.000000e+00> : vector<64x32xf32>
      %150 = tpu.matmul %146, %149, %cst_73 {dimension_numbers = #tpu.dot_dimension_numbers<[1], [0], [0], [1], [0, 0, 1, 1], [], []>} : vector<64x64xbf16>, vector<64x32xbf16>, vector<64x32xf32> -> vector<64x32xf32>
      %151 = vector.broadcast %145 : vector<64x1xf32> to vector<64x32xf32>
      %152 = arith.divf %150, %151 : vector<64x32xf32>
      %153 = arith.truncf %152 : vector<64x32xf32> to vector<64x32xbf16>
      %154 = arith.index_cast %arg12 : i32 to index
      %c0_74 = arith.constant 0 : index
      %c0_75 = arith.constant 0 : index
      %155 = vector.load %arg5[%154, %c0_74, %c0_75] : memref<2x32x64xbf16, #tpu.memory_space<vmem>>, vector<1x32x64xbf16>
      %156 = vector.shape_cast %155 : vector<1x32x64xbf16> to vector<32x64xbf16>
      %cst_76 = arith.constant dense<0.000000e+00> : vector<64x64xf32>
      %157 = tpu.matmul %153, %156, %cst_76 {dimension_numbers = #tpu.dot_dimension_numbers<[1], [0], [0], [1], [0, 0, 1, 1], [], []>} : vector<64x32xbf16>, vector<32x64xbf16>, vector<64x64xf32> -> vector<64x64xf32>
      %158 = arith.addf %arg13, %157 : vector<64x64xf32>
      scf.yield %158 : vector<64x64xf32>
    }
    %c2_i32_35 = arith.constant 2 : i32
    %65 = arith.addf %61, %64 : vector<64x64xf32>
    %c64_i32_36 = arith.constant 64 : i32
    %66 = arith.muli %c0_i32_27, %c64_i32_36 : i32
    %67 = tpu.assume_multiple %66, 8 : i32
    %68 = arith.index_cast %67 : i32 to index
    %c0_37 = arith.constant 0 : index
    %69 = vector.load %arg11[%68, %c0_37] : memref<64x64xf32, #tpu.memory_space<vmem>>, vector<64x64xf32>
    tpu.vector_store %arg11[%68, %c0_37], %65 {strides = array<i32>} : memref<64x64xf32, #tpu.memory_space<vmem>>, vector<64x64xf32>,
    %cst_38 = arith.constant dense<0.000000e+00> : vector<64xf32>
    %70 = vector.multi_reduction <add>, %65, %cst_38 [0] : vector<64x64xf32> to vector<64xf32>
    %71 = vector.shape_cast %70 : vector<64xf32> to vector<1x64xf32>
    %72 = arith.mulf %65, %65 : vector<64x64xf32>
    %cst_39 = arith.constant dense<0.000000e+00> : vector<64xf32>
    %73 = vector.multi_reduction <add>, %72, %cst_39 [0] : vector<64x64xf32> to vector<64xf32>
    %74 = vector.shape_cast %73 : vector<64xf32> to vector<1x64xf32>
    %75 = tpu.concatenate %71, %74 in 0 : vector<1x64xf32>, vector<1x64xf32> -> vector<2x64xf32>
    %76 = arith.addf %56, %75 : vector<2x64xf32>
    %c1_i32_40 = arith.constant 1 : i32
    %77 = vector.extract_strided_slice %2 {offsets = [2, 0], sizes = [1, 64], strides = [1, 1]} : vector<4x64xf32> to vector<1x64xf32>
    %78 = vector.extract_strided_slice %2 {offsets = [3, 0], sizes = [1, 64], strides = [1, 1]} : vector<4x64xf32> to vector<1x64xf32>
    %cst_41 = arith.constant dense<0.000000e+00> : vector<2x8xf32>
    %79 = tpu.matmul %76, %0, %cst_41 {dimension_numbers = #tpu.dot_dimension_numbers<[1], [0], [0], [1], [0, 0, 1, 1], [], []>} : vector<2x64xf32>, vector<64x8xf32>, vector<2x8xf32> -> vector<2x8xf32>
    %cst_42 = arith.constant 0.001953125 : f32
    %80 = vector.broadcast %cst_42 : f32 to vector<2x8xf32>
    %81 = arith.mulf %79, %80 : vector<2x8xf32>
    %82 = vector.extract_strided_slice %81 {offsets = [0, 0], sizes = [1, 8], strides = [1, 1]} : vector<2x8xf32> to vector<1x8xf32>
    %83 = vector.extract_strided_slice %81 {offsets = [1, 0], sizes = [1, 8], strides = [1, 1]} : vector<2x8xf32> to vector<1x8xf32>
    %84 = arith.mulf %82, %82 : vector<1x8xf32>
    %85 = arith.subf %83, %84 : vector<1x8xf32>
    %cst_43 = arith.constant 0.000000e+00 : f32
    %86 = vector.broadcast %cst_43 : f32 to vector<1x8xf32>
    %87 = arith.maximumf %85, %86 : vector<1x8xf32>
    %cst_44 = arith.constant 9.99999974E-6 : f32
    %88 = vector.broadcast %cst_44 : f32 to vector<1x8xf32>
    %89 = arith.addf %87, %88 : vector<1x8xf32>
    %90 = math.rsqrt %89 : vector<1x8xf32>
    %91 = tpu.concatenate %82, %90 in 0 : vector<1x8xf32>, vector<1x8xf32> -> vector<2x8xf32>
    %cst_45 = arith.constant dense<0.000000e+00> : vector<2x64xf32>
    %92 = tpu.matmul %91, %0, %cst_45 {dimension_numbers = #tpu.dot_dimension_numbers<[1], [1], [0], [0], [0, 0, 1, 0], [], []>} : vector<2x8xf32>, vector<64x8xf32>, vector<2x64xf32> -> vector<2x64xf32>
    %93 = vector.extract_strided_slice %92 {offsets = [1, 0], sizes = [1, 64], strides = [1, 1]} : vector<2x64xf32> to vector<1x64xf32>
    %cst_46 = arith.constant 1.000000e+00 : f32
    %94 = vector.broadcast %cst_46 : f32 to vector<1x64xf32>
    %95 = arith.addf %94, %77 : vector<1x64xf32>
    %96 = arith.mulf %93, %95 : vector<1x64xf32>
    %97 = vector.extract_strided_slice %92 {offsets = [0, 0], sizes = [1, 64], strides = [1, 1]} : vector<2x64xf32> to vector<1x64xf32>
    %98 = arith.mulf %97, %96 : vector<1x64xf32>
    %99 = arith.subf %78, %98 : vector<1x64xf32>
    %c0_i32_47 = arith.constant 0 : i32
    %c1_i32_48 = arith.constant 1 : i32
    %100 = arith.muli %c0_i32_47, %c1_i32_48 : i32
    %c0_i32_49 = arith.constant 0 : i32
    %101 = arith.addi %c0_i32_49, %100 : i32
    %c64_i32_50 = arith.constant 64 : i32
    %102 = arith.muli %101, %c64_i32_50 : i32
    %103 = tpu.assume_multiple %102, 8 : i32
    %104 = arith.index_cast %103 : i32 to index
    %c0_51 = arith.constant 0 : index
    %105 = vector.load %arg11[%104, %c0_51] : memref<64x64xf32, #tpu.memory_space<vmem>>, vector<64x64xf32>
    %106 = vector.broadcast %96 : vector<1x64xf32> to vector<64x64xf32>
    %107 = arith.mulf %105, %106 : vector<64x64xf32>
    %108 = vector.broadcast %99 : vector<1x64xf32> to vector<64x64xf32>
    %109 = arith.addf %107, %108 : vector<64x64xf32>
    %110 = arith.truncf %109 : vector<64x64xf32> to vector<64x64xbf16>
    %c0_52 = arith.constant 0 : index
    %c0_53 = arith.constant 0 : index
    %111 = vector.load %arg6[%c0_52, %c0_53] : memref<64x256xbf16, #tpu.memory_space<vmem>>, vector<64x256xbf16>
    %cst_54 = arith.constant dense<0.000000e+00> : vector<64x256xf32>
    %112 = tpu.matmul %110, %111, %cst_54 {dimension_numbers = #tpu.dot_dimension_numbers<[1], [0], [0], [1], [0, 0, 1, 1], [], []>} : vector<64x64xbf16>, vector<64x256xbf16>, vector<64x256xf32> -> vector<64x256xf32>
    %113 = arith.negf %112 : vector<64x256xf32>
    %114 = math.exp %113 : vector<64x256xf32>
    %cst_55 = arith.constant 1.000000e+00 : f32
    %115 = vector.broadcast %cst_55 : f32 to vector<64x256xf32>
    %116 = arith.addf %115, %114 : vector<64x256xf32>
    %117 = arith.divf %115, %116 : vector<64x256xf32>
    %118 = arith.mulf %112, %117 : vector<64x256xf32>
    %119 = arith.truncf %118 : vector<64x256xf32> to vector<64x256xbf16>
    %c0_56 = arith.constant 0 : index
    %c0_57 = arith.constant 0 : index
    %120 = vector.load %arg7[%c0_56, %c0_57] : memref<256x64xbf16, #tpu.memory_space<vmem>>, vector<256x64xbf16>
    %cst_58 = arith.constant dense<0.000000e+00> : vector<64x64xf32>
    %121 = tpu.matmul %119, %120, %cst_58 {dimension_numbers = #tpu.dot_dimension_numbers<[1], [0], [0], [1], [0, 0, 1, 1], [], []>} : vector<64x256xbf16>, vector<256x64xbf16>, vector<64x64xf32> -> vector<64x64xf32>
    %122 = arith.addf %105, %121 : vector<64x64xf32>
    %c64_i32_59 = arith.constant 64 : i32
    %123 = arith.muli %101, %c64_i32_59 : i32
    %124 = tpu.assume_multiple %123, 8 : i32
    %c0_60 = arith.constant 0 : index
    %125 = arith.index_cast %124 : i32 to index
    %c0_61 = arith.constant 0 : index
    %126 = vector.load %arg8[%c0_60, %125, %c0_61] : memref<1x64x64xf32, #tpu.memory_space<vmem>>, vector<1x64x64xf32>
    %127 = vector.shape_cast %126 : vector<1x64x64xf32> to vector<64x64xf32>
    %128 = vector.shape_cast %122 : vector<64x64xf32> to vector<1x64x64xf32>
    tpu.vector_store %arg8[%c0_60, %125, %c0_61], %128 {strides = array<i32>} : memref<1x64x64xf32, #tpu.memory_space<vmem>>, vector<1x64x64xf32>,
    %c1_i32_62 = arith.constant 1 : i32
    return
  }
  func.func @transform_0(%arg0: i32) -> (i32, i32, i32) {
    %c0_i32 = arith.constant 0 : i32
    %c0_i32_0 = arith.constant 0 : i32
    %c0_i32_1 = arith.constant 0 : i32
    return %arg0, %c0_i32, %c0_i32_0 : i32, i32, i32
  }
  func.func @transform_1(%arg0: i32) -> (i32, i32, i32) {
    %c0_i32 = arith.constant 0 : i32
    %c0_i32_0 = arith.constant 0 : i32
    %c0_i32_1 = arith.constant 0 : i32
    return %arg0, %c0_i32, %c0_i32_0 : i32, i32, i32
  }
  func.func @transform_2(%arg0: i32) -> (i32, i32) {
    %c0_i32 = arith.constant 0 : i32
    %c0_i32_0 = arith.constant 0 : i32
    %c0_i32_1 = arith.constant 0 : i32
    return %c0_i32, %c0_i32_0 : i32, i32
  }
  func.func @transform_3(%arg0: i32) -> (i32, i32, i32) {
    %c0_i32 = arith.constant 0 : i32
    %c0_i32_0 = arith.constant 0 : i32
    %c0_i32_1 = arith.constant 0 : i32
    %c0_i32_2 = arith.constant 0 : i32
    return %c0_i32, %c0_i32_0, %c0_i32_1 : i32, i32, i32
  }
  func.func @transform_4(%arg0: i32) -> (i32, i32, i32) {
    %c0_i32 = arith.constant 0 : i32
    %c0_i32_0 = arith.constant 0 : i32
    %c0_i32_1 = arith.constant 0 : i32
    %c0_i32_2 = arith.constant 0 : i32
    return %c0_i32, %c0_i32_0, %c0_i32_1 : i32, i32, i32
  }
  func.func @transform_5(%arg0: i32) -> (i32, i32) {
    %c0_i32 = arith.constant 0 : i32
    %c0_i32_0 = arith.constant 0 : i32
    %c0_i32_1 = arith.constant 0 : i32
    return %c0_i32, %c0_i32_0 : i32, i32
  }
  func.func @transform_6(%arg0: i32) -> (i32, i32) {
    %c0_i32 = arith.constant 0 : i32
    %c0_i32_0 = arith.constant 0 : i32
    %c0_i32_1 = arith.constant 0 : i32
    return %c0_i32, %c0_i32_0 : i32, i32
  }
  func.func @transform_7(%arg0: i32) -> (i32, i32, i32) {
    %c0_i32 = arith.constant 0 : i32
    %c0_i32_0 = arith.constant 0 : i32
    %c0_i32_1 = arith.constant 0 : i32
    return %arg0, %c0_i32, %c0_i32_0 : i32, i32, i32
  }
}

</mosaic_0001>

<llo_original>
// kernel: tpu_custom_call.1
$region0: #{tpu_custom_call.1}
  #allocation0 [shape = 'u32[]', space=smem, size = 0x4, offset = 0x4, fixed_abs, tag = 'smem constant byte address 0x4 - core index']
  #allocation1 [shape = 'u32[72,128]{1,0:T(1,128)}', space=vmem, size = 0x9000, scoped, tag = 'internal scratch']
  #allocation2 [shape = 'bf16[64,64]{1,0:T(8,128)(2,1)}', space=vmem, size = 0x4000, scoped, tag = 'scratch operand']
  #allocation3 [shape = 'bf16[2,3,64,32]{3,2,1,0:T(8,128)(2,1)}', space=vmem, size = 0x18000, scoped, tag = 'scratch operand']
  #allocation4 [shape = 'f32[64,64]{1,0:T(8,128)}', space=vmem, size = 0x8000, scoped, tag = 'scratch operand']
  %s0 = inlined_call_operand.vmem [shape: f32[2,64,64], index: 0, kind: input, shape index: {}]
  %s1 = inlined_call_operand.vmem [shape: f32[2,4,64], index: 1, kind: input, shape index: {}]
  %s2 = inlined_call_operand.vmem [shape: f32[64,8], index: 2, kind: input, shape index: {}]
  %s3 = inlined_call_operand.vmem [shape: bf16[2,64,96], index: 3, kind: input, shape index: {}]
  %s4 = inlined_call_operand.hbm [shape: bf16[2,32,64], index: 4, kind: input, shape index: {}]
  %s5 = inlined_call_operand.hbm [shape: bf16[64,256], index: 5, kind: input, shape index: {}]
  %s6 = inlined_call_operand.vmem [shape: bf16[256,64], index: 6, kind: input, shape index: {}]
  %s7 = inlined_call_operand.hbm [shape: f32[2,64,64], index: 7, kind: output, shape index: {}]
  %s8 = sld [smem:[#allocation0]]
  $region83: #{tpu_custom_call.1} parent=0
    _
  %s10 = ssub.s32 1, %s8
  %s11 = scalar_select 0, %s10, %s8
  $region1: #{tpu_custom_call.1} parent=0
    #allocation5 [shape = 'u8[16384]{0}', space=vmem, size = 0x4000, scoped, tag = 'input window, operand 4, single buffered']
    #allocation6 [shape = 's32[2]{0}', space=sflag, size = 0x8, scoped, tag = 'scoped memory for tpu_custom_call.1']
    #allocation7 [shape = 's32[2]{0}', space=sflag, size = 0x8, scoped, tag = 'scoped memory for tpu_custom_call.1']
    #allocation8 [shape = 'u8[32768]{0}', space=vmem, size = 0x8000, scoped, tag = 'input window, operand 5, single buffered']
    #allocation9 [shape = 's32[1]{0}', space=sflag, size = 0x4, scoped, tag = 'scoped memory for tpu_custom_call.1']
    #allocation10 [shape = 'u8[65536]{0}', space=vmem, size = 0x10000, scoped, tag = 'output window, operand 0']
    %12 = vsyncpa [#allocation6], 0
    %13 = vsyncpa [#allocation9], 0
    %14 = vsyncpa [#allocation7], 0
    %s15 = scalar_lea.sflag [#allocation7], 1
    %16 = vsyncpa %s15, 0
    loop: start=0, step=1, limit=4
    $region2: #{tpu_custom_call.1} parent=1 // loop_pre_header
      _
    $region3: #{tpu_custom_call.1} parent=1 // loop_header
      %s18 = sphi 0, %s22
      %p19 = scmp.ge.s32.totalorder %s18, 4
      %s28 = sphi 0, %s30
      %s31 = sphi 0, %s28
      %s32 = sphi 0, %s31
      %s48 = sphi 0, %s32
      %s54 = sphi 0, %s56
      %s57 = sphi 0, %s54
      %s58 = sphi 0, %s57
      %s74 = sphi 0, %s58
      %s78 = sphi 0, %s78
      %s80 = sphi 0, %s78
      %s81 = sphi 0, %s80
      %s95 = sphi 0, %s81
      %s99 = sphi 0, %s99
      %s101 = sphi 0, %s99
      %s102 = sphi 0, %s101
      %s116 = sphi 0, %s102
      %s120 = sphi 0, %s120
      %s122 = sphi 0, %s120
      %s123 = sphi 0, %s122
      %s137 = sphi 0, %s123
      %s141 = sphi 0, %s141
      %s143 = sphi 0, %s141
      %s144 = sphi 0, %s143
      %s158 = sphi 0, %s144
      %s162 = sphi 0, %s162
      %s164 = sphi 0, %s162
      %s165 = sphi 0, %s164
      %s179 = sphi 0, %s165
      %s185 = sphi 0, %s187
      %s188 = sphi 0, %s185
      %s189 = sphi 0, %s188
      %s205 = sphi 0, %s189
    $region4: #{tpu_custom_call.1} parent=1 // loop_header_branch
      %21 = sbr.rel (%p19) target = $region8
    $region5: #{tpu_custom_call.1} parent=1 // loop_body
      %s23 = ssub.s32 %s18, 1
      %s24 = ssub.s32 %s18, 2
      %s25 = sadd.s32 %s18, 1
      %s26 = ssub.s32 %s18, %s25
      %p27 = scmp.eq.s32.totalorder %s26, 0
      %s29 = sadd.s32 %s28, 1
      %s30 = scalar_select %p27, %s28, %s29
      %p33 = pneg %p27
      %p34 = scmp.eq.s32.totalorder %s18, 1
      %p35 = por %p33, %p34
      %p36 = scmp.ne.s32.totalorder %s28, %s31
      %p37 = scmp.eq.s32.totalorder %s18, 0
      %p38 = por %p36, %p37
      %p39 = scmp.ne.s32.totalorder %s28, %s31
      %p40 = scmp.eq.s32.totalorder %s23, 1
      %p41 = por %p39, %p40
      %p42 = scmp.ne.s32.totalorder %s31, %s32
      %p43 = scmp.eq.s32.totalorder %s23, 0
      %p44 = por %p42, %p43
      %p45 = scmp.ne.s32.totalorder %s31, %s32
      %p46 = scmp.eq.s32.totalorder %s24, 1
      %p47 = por %p45, %p46
      %p49 = scmp.ne.s32.totalorder %s32, %s48
      %p50 = scmp.eq.s32.totalorder %s24, 0
      %p51 = por %p49, %p50
      %s52 = ssub.s32 %s18, %s25
      %p53 = scmp.eq.s32.totalorder %s52, 0
      %s55 = sadd.s32 %s54, 1
      %s56 = scalar_select %p53, %s54, %s55
      %p59 = pneg %p53
      %p60 = scmp.eq.s32.totalorder %s18, 1
      %p61 = por %p59, %p60
      %p62 = scmp.ne.s32.totalorder %s54, %s57
      %p63 = scmp.eq.s32.totalorder %s18, 0
      %p64 = por %p62, %p63
      %p65 = scmp.ne.s32.totalorder %s54, %s57
      %p66 = scmp.eq.s32.totalorder %s23, 1
      %p67 = por %p65, %p66
      %p68 = scmp.ne.s32.totalorder %s57, %s58
      %p69 = scmp.eq.s32.totalorder %s23, 0
      %p70 = por %p68, %p69
      %p71 = scmp.ne.s32.totalorder %s57, %s58
      %p72 = scmp.eq.s32.totalorder %s24, 1
      %p73 = por %p71, %p72
      %p75 = scmp.ne.s32.totalorder %s58, %s74
      %p76 = scmp.eq.s32.totalorder %s24, 0
      %p77 = por %p75, %p76
      %s79 = sadd.s32 %s78, 1
      %p82 = scmp.eq.s32.totalorder %s18, 1
      %p83 = scmp.ne.s32.totalorder %s78, %s80
      %p84 = scmp.eq.s32.totalorder %s18, 0
      %p85 = por %p83, %p84
      %p86 = scmp.ne.s32.totalorder %s78, %s80
      %p87 = scmp.eq.s32.totalorder %s23, 1
      %p88 = por %p86, %p87
      %p89 = scmp.ne.s32.totalorder %s80, %s81
      %p90 = scmp.eq.s32.totalorder %s23, 0
      %p91 = por %p89, %p90
      %p92 = scmp.ne.s32.totalorder %s80, %s81
      %p93 = scmp.eq.s32.totalorder %s24, 1
      %p94 = por %p92, %p93
      %p96 = scmp.ne.s32.totalorder %s81, %s95
      %p97 = scmp.eq.s32.totalorder %s24, 0
      %p98 = por %p96, %p97
      %s100 = sadd.s32 %s99, 1
      %p103 = scmp.eq.s32.totalorder %s18, 1
      %p104 = scmp.ne.s32.totalorder %s99, %s101
      %p105 = scmp.eq.s32.totalorder %s18, 0
      %p106 = por %p104, %p105
      %p107 = scmp.ne.s32.totalorder %s99, %s101
      %p108 = scmp.eq.s32.totalorder %s23, 1
      %p109 = por %p107, %p108
      %p110 = scmp.ne.s32.totalorder %s101, %s102
      %p111 = scmp.eq.s32.totalorder %s23, 0
      %p112 = por %p110, %p111
      %p113 = scmp.ne.s32.totalorder %s101, %s102
      %p114 = scmp.eq.s32.totalorder %s24, 1
      %p115 = por %p113, %p114
      %p117 = scmp.ne.s32.totalorder %s102, %s116
      %p118 = scmp.eq.s32.totalorder %s24, 0
      %p119 = por %p117, %p118
      %s121 = sadd.s32 %s120, 1
      %p124 = scmp.eq.s32.totalorder %s18, 1
      %p125 = scmp.ne.s32.totalorder %s120, %s122
      %p126 = scmp.eq.s32.totalorder %s18, 0
      %p127 = por %p125, %p126
      %p128 = scmp.ne.s32.totalorder %s120, %s122
      %p129 = scmp.eq.s32.totalorder %s23, 1
      %p130 = por %p128, %p129
      %p131 = scmp.ne.s32.totalorder %s122, %s123
      %p132 = scmp.eq.s32.totalorder %s23, 0
      %p133 = por %p131, %p132
      %p134 = scmp.ne.s32.totalorder %s122, %s123
      %p135 = scmp.eq.s32.totalorder %s24, 1
      %p136 = por %p134, %p135
      %p138 = scmp.ne.s32.totalorder %s123, %s137
      %p139 = scmp.eq.s32.totalorder %s24, 0
      %p140 = por %p138, %p139
      %s142 = sadd.s32 %s141, 1
      %p145 = scmp.eq.s32.totalorder %s18, 1
      %p146 = scmp.ne.s32.totalorder %s141, %s143
      %p147 = scmp.eq.s32.totalorder %s18, 0
      %p148 = por %p146, %p147
      %p149 = scmp.ne.s32.totalorder %s141, %s143
      %p150 = scmp.eq.s32.totalorder %s23, 1
      %p151 = por %p149, %p150
      %p152 = scmp.ne.s32.totalorder %s143, %s144
      %p153 = scmp.eq.s32.totalorder %s23, 0
      %p154 = por %p152, %p153
      %p155 = scmp.ne.s32.totalorder %s143, %s144
      %p156 = scmp.eq.s32.totalorder %s24, 1
      %p157 = por %p155, %p156
      %p159 = scmp.ne.s32.totalorder %s144, %s158
      %p160 = scmp.eq.s32.totalorder %s24, 0
      %p161 = por %p159, %p160
      %s163 = sadd.s32 %s162, 1
      %p166 = scmp.eq.s32.totalorder %s18, 1
      %p167 = scmp.ne.s32.totalorder %s162, %s164
      %p168 = scmp.eq.s32.totalorder %s18, 0
      %p169 = por %p167, %p168
      %p170 = scmp.ne.s32.totalorder %s162, %s164
      %p171 = scmp.eq.s32.totalorder %s23, 1
      %p172 = por %p170, %p171
      %p173 = scmp.ne.s32.totalorder %s164, %s165
      %p174 = scmp.eq.s32.totalorder %s23, 0
      %p175 = por %p173, %p174
      %p176 = scmp.ne.s32.totalorder %s164, %s165
      %p177 = scmp.eq.s32.totalorder %s24, 1
      %p178 = por %p176, %p177
      %p180 = scmp.ne.s32.totalorder %s165, %s179
      %p181 = scmp.eq.s32.totalorder %s24, 0
      %p182 = por %p180, %p181
      %s183 = ssub.s32 %s18, %s25
      %p184 = scmp.eq.s32.totalorder %s183, 0
      %s186 = sadd.s32 %s185, 1
      %s187 = scalar_select %p184, %s185, %s186
      %p190 = pneg %p184
      %p191 = scmp.eq.s32.totalorder %s18, 1
      %p192 = por %p190, %p191
      %p193 = scmp.ne.s32.totalorder %s185, %s188
      %p194 = scmp.eq.s32.totalorder %s18, 0
      %p195 = por %p193, %p194
      %p196 = scmp.ne.s32.totalorder %s185, %s188
      %p197 = scmp.eq.s32.totalorder %s23, 1
      %p198 = por %p196, %p197
      %p199 = scmp.ne.s32.totalorder %s188, %s189
      %p200 = scmp.eq.s32.totalorder %s23, 0
      %p201 = por %p199, %p200
      %p202 = scmp.ne.s32.totalorder %s188, %s189
      %p203 = scmp.eq.s32.totalorder %s24, 1
      %p204 = por %p202, %p203
      %p206 = scmp.ne.s32.totalorder %s189, %s205
      %p207 = scmp.eq.s32.totalorder %s24, 0
      %p208 = por %p206, %p207
      %p209 = scmp.le.s32.totalorder 1, %s18
      %p210 = scmp.lt.s32.totalorder %s18, 3
      %p211 = pnand %p209, %p210
      %p212 = pneg %p211
      // Predicated region
      $region9: #{tpu_custom_call.1} parent=5 // pred_check
        _
      $region10: #{tpu_custom_call.1} parent=5 // pred_check_branch
        %214 = sbr.rel (%p211) target = $region12
      $region11: #{tpu_custom_call.1} parent=5 // pred_region
        %s215 = ssub.s32 %s18, 1
        // Predicated region
        $region13: #{tpu_custom_call.1} parent=11 // pred_check
          %p216 = pneg %p91
        $region14: #{tpu_custom_call.1} parent=11 // pred_check_branch
          %218 = sbr.rel (%p216) target = $region16
        $region15: #{tpu_custom_call.1} parent=11 // pred_region
          _
        $region16: #{tpu_custom_call.1} parent=11 // pred_fallthru
          _
        // Predicated region
        $region17: #{tpu_custom_call.1} parent=11 // pred_check
          %p219 = pneg %p112
        $region18: #{tpu_custom_call.1} parent=11 // pred_check_branch
          %221 = sbr.rel (%p219) target = $region20
        $region19: #{tpu_custom_call.1} parent=11 // pred_region
          _
        $region20: #{tpu_custom_call.1} parent=11 // pred_fallthru
          _
        // Predicated region
        $region21: #{tpu_custom_call.1} parent=11 // pred_check
          %p222 = pneg %p133
        $region22: #{tpu_custom_call.1} parent=11 // pred_check_branch
          %224 = sbr.rel (%p222) target = $region24
        $region23: #{tpu_custom_call.1} parent=11 // pred_region
          %226 = vsyncadd [#allocation6], 0
          %s227 = sshll.u32 %s4, 4
          %s228 = int_to_ptr.hbm [resolvable:$true] %s227
          %s229 = sshll.u32 [#allocation5], 4
          %s230 = int_to_ptr.vmem [resolvable:$true] %s229
          %235 = dma.hbm_to_vmem [thread:$0]  %s228, 512, %s230, [#allocation6], 64, 64, 4
        $region24: #{tpu_custom_call.1} parent=11 // pred_fallthru
          _
        // Predicated region
        $region25: #{tpu_custom_call.1} parent=11 // pred_check
          %p236 = pneg %p154
        $region26: #{tpu_custom_call.1} parent=11 // pred_check_branch
          %238 = sbr.rel (%p236) target = $region28
        $region27: #{tpu_custom_call.1} parent=11 // pred_region
          %240 = vsyncadd [#allocation9], 0
          %s241 = sshll.u32 %s5, 4
          %s242 = int_to_ptr.hbm [resolvable:$true] %s241
          %s243 = sshll.u32 [#allocation8], 4
          %s244 = int_to_ptr.vmem [resolvable:$true] %s243
          %249 = dma.hbm_to_vmem [thread:$0]  %s242, 1024, %s244, [#allocation9], 128, 128, 8
        $region28: #{tpu_custom_call.1} parent=11 // pred_fallthru
          _
        // Predicated region
        $region29: #{tpu_custom_call.1} parent=11 // pred_check
          %p250 = pneg %p175
        $region30: #{tpu_custom_call.1} parent=11 // pred_check_branch
          %252 = sbr.rel (%p250) target = $region32
        $region31: #{tpu_custom_call.1} parent=11 // pred_region
          _
        $region32: #{tpu_custom_call.1} parent=11 // pred_fallthru
          _
      $region12: #{tpu_custom_call.1} parent=5 // pred_fallthru
        _
      %p253 = scmp.lt.s32.totalorder %s18, 2
      // Predicated region
      $region33: #{tpu_custom_call.1} parent=5 // pred_check
        %p254 = pneg %p253
      $region34: #{tpu_custom_call.1} parent=5 // pred_check_branch
        %256 = sbr.rel (%p254) target = $region36
      $region35: #{tpu_custom_call.1} parent=5 // pred_region
        // Predicated region
        $region37: #{tpu_custom_call.1} parent=35 // pred_check
          %p257 = pneg %p38
        $region38: #{tpu_custom_call.1} parent=35 // pred_check_branch
          %259 = sbr.rel (%p257) target = $region40
        $region39: #{tpu_custom_call.1} parent=35 // pred_region
          %p260 = scmp.lt.s32.totalorder %s18, 1
          %s261 = scalar_select %p260, %s18, 1
          %s262 = smul.addr %s261, 8
          %s263 = smul.addr %s262, 8
          %s264 = scalar_lea.vmem %s0, %s263
        $region40: #{tpu_custom_call.1} parent=35 // pred_fallthru
          _
        // Predicated region
        $region41: #{tpu_custom_call.1} parent=35 // pred_check
          %p265 = pneg %p64
        $region42: #{tpu_custom_call.1} parent=35 // pred_check_branch
          %267 = sbr.rel (%p265) target = $region44
        $region43: #{tpu_custom_call.1} parent=35 // pred_region
          %p268 = scmp.lt.s32.totalorder %s18, 1
          %s269 = scalar_select %p268, %s18, 1
          %s270 = smul.addr %s269, 4
          %s271 = scalar_lea.vmem %s1, %s270
        $region44: #{tpu_custom_call.1} parent=35 // pred_fallthru
          _
      $region36: #{tpu_custom_call.1} parent=5 // pred_fallthru
        _
      %p272 = scmp.le.s32.totalorder 1, %s18
      %p273 = scmp.lt.s32.totalorder %s18, 3
      %p274 = pnand %p272, %p273
      %p275 = pneg %p274
      // Predicated region
      $region45: #{tpu_custom_call.1} parent=5 // pred_check
        _
      $region46: #{tpu_custom_call.1} parent=5 // pred_check_branch
        %277 = sbr.rel (%p274) target = $region48
      $region47: #{tpu_custom_call.1} parent=5 // pred_region
        %s278 = ssub.s32 %s18, 1
        // Predicated region
        $region49: #{tpu_custom_call.1} parent=47 // pred_check
          %p279 = pneg %p133
        $region50: #{tpu_custom_call.1} parent=47 // pred_check_branch
          %281 = sbr.rel (%p279) target = $region52
        $region51: #{tpu_custom_call.1} parent=47 // pred_region
          %283 = dma.done [#allocation6], 512
        $region52: #{tpu_custom_call.1} parent=47 // pred_fallthru
          _
        // Predicated region
        $region53: #{tpu_custom_call.1} parent=47 // pred_check
          %p284 = pneg %p154
        $region54: #{tpu_custom_call.1} parent=47 // pred_check_branch
          %286 = sbr.rel (%p284) target = $region56
        $region55: #{tpu_custom_call.1} parent=47 // pred_region
          %288 = dma.done [#allocation9], 1024
        $region56: #{tpu_custom_call.1} parent=47 // pred_fallthru
          _
        %p289 = scmp.lt.s32.totalorder %s23, 1
        %s290 = scalar_select %p289, %s23, 1
        %s291 = smul.addr %s290, 8
        %s292 = smul.addr %s291, 8
        %s293 = scalar_lea.vmem %s0, %s292
        %p294 = pneg %p44
        %p295 = pneg %p41
        %p296 = scmp.lt.s32.totalorder %s23, 1
        %s297 = scalar_select %p296, %s23, 1
        %s298 = smul.addr %s297, 4
        %s299 = scalar_lea.vmem %s1, %s298
        %p300 = pneg %p70
        %p301 = pneg %p67
        %p302 = pneg %p91
        %p303 = pneg %p88
        %p304 = pneg %p112
        %p305 = pneg %p109
        %p306 = pneg %p133
        %p307 = pneg %p130
        %p308 = pneg %p154
        %p309 = pneg %p151
        %p310 = pneg %p175
        %p311 = pneg %p172
        %p312 = pneg %p201
        %p313 = pneg %p198
        %s314 = sand.u32 %s188, 1
        %s315 = scalar_lea.sflag [#allocation7], %s314
        %s316 = sand.u32 %s188, 1
        %s317 = smul.addr %s316, 64
        %s318 = scalar_lea.vmem [#allocation10], %s317
        %p319 = scmp.lt.s32.totalorder %s23, 1
        %s320 = scalar_select %p319, %s23, 1
        %s321 = smul.addr %s320, 8
        %s322 = smul.addr %s321, 8
        %s323 = scalar_lea.vmem %s0, %s322
        %p324 = scmp.lt.s32.totalorder %s23, 1
        %s325 = scalar_select %p324, %s23, 1
        %s326 = smul.addr %s325, 4
        %s327 = scalar_lea.vmem %s1, %s326
        %v329 = vld [vmem:[%s2] sm:$0xff]
        %v330 = vld [vmem:[%s2 + $0x8] sm:$0xff]
        %v331 = vld [vmem:[%s2 + $0x10] sm:$0xff]
        %v332 = vld [vmem:[%s2 + $0x18] sm:$0xff]
        %v333 = vld [vmem:[%s2 + $0x20] sm:$0xff]
        %v334 = vld [vmem:[%s2 + $0x28] sm:$0xff]
        %v335 = vld [vmem:[%s2 + $0x30] sm:$0xff]
        %v336 = vld [vmem:[%s2 + $0x38] sm:$0xff]
        %v337 = vld [vmem:[%s327] sm:$0xf]
        %v338 = vld [vmem:[%s323] sm:$0xff]
        %v339 = vld [vmem:[%s323 + $0x8] sm:$0xff]
        %v340 = vld [vmem:[%s323 + $0x10] sm:$0xff]
        %v341 = vld [vmem:[%s323 + $0x18] sm:$0xff]
        %v342 = vld [vmem:[%s323 + $0x20] sm:$0xff]
        %v343 = vld [vmem:[%s323 + $0x28] sm:$0xff]
        %v344 = vld [vmem:[%s323 + $0x30] sm:$0xff]
        %v345 = vld [vmem:[%s323 + $0x38] sm:$0xff]
        %vm346 = vcmask 523264
        %v347 = vsel %vm346, %v338, 0.0
        %v348 = vsel %vm346, %v339, 0.0
        %v349 = vadd.f32 %v347, %v348
        %v350 = vsel %vm346, %v340, 0.0
        %v351 = vadd.f32 %v349, %v350
        %v352 = vsel %vm346, %v341, 0.0
        %v353 = vadd.f32 %v351, %v352
        %v354 = vsel %vm346, %v342, 0.0
        %v355 = vadd.f32 %v353, %v354
        %v356 = vsel %vm346, %v343, 0.0
        %v357 = vadd.f32 %v355, %v356
        %v358 = vsel %vm346, %v344, 0.0
        %v359 = vadd.f32 %v357, %v358
        %v360 = vsel %vm346, %v345, 0.0
        %v361 = vadd.f32 %v359, %v360
        %v362 = vrot.slane %v361, 4
        %v363 = vadd.f32 %v361, %v362
        %v364 = vrot.slane %v363, 2
        %v365 = vadd.f32 %v363, %v364
        %v366 = vrot.slane %v365, 1
        %v367 = vadd.f32 %v365, %v366
        %v368 = vmul.f32 %v338, %v338
        %v369 = vmul.f32 %v339, %v339
        %v370 = vmul.f32 %v340, %v340
        %v371 = vmul.f32 %v341, %v341
        %v372 = vmul.f32 %v342, %v342
        %v373 = vmul.f32 %v343, %v343
        %v374 = vmul.f32 %v344, %v344
        %v375 = vmul.f32 %v345, %v345
        %v376 = vsel %vm346, %v368, 0.0
        %v377 = vsel %vm346, %v369, 0.0
        %v378 = vadd.f32 %v376, %v377
        %v379 = vsel %vm346, %v370, 0.0
        %v380 = vadd.f32 %v378, %v379
        %v381 = vsel %vm346, %v371, 0.0
        %v382 = vadd.f32 %v380, %v381
        %v383 = vsel %vm346, %v372, 0.0
        %v384 = vadd.f32 %v382, %v383
        %v385 = vsel %vm346, %v373, 0.0
        %v386 = vadd.f32 %v384, %v385
        %v387 = vsel %vm346, %v374, 0.0
        %v388 = vadd.f32 %v386, %v387
        %v389 = vsel %vm346, %v375, 0.0
        %v390 = vadd.f32 %v388, %v389
        %v391 = vrot.slane %v390, 4
        %v392 = vadd.f32 %v390, %v391
        %v393 = vrot.slane %v392, 2
        %v394 = vadd.f32 %v392, %v393
        %v395 = vrot.slane %v394, 1
        %v396 = vadd.f32 %v394, %v395
        %vm397 = vcmask 1040384
        %v398 = vsel %vm397, %v367, %v396
        %v399 = vadd.f32 %v398, 0.0
        %v401 = vsel %vm346, %v399, 0
        %403 = vmatpush.msra.mxu0 0.0
        %404 = vmatpush.msra.mxu0 0.0
        %405 = vmatpush.msra.mxu0 0.0
        %406 = vmatpush.msra.mxu0 0.0
        %407 = vmatpush.msra.mxu0 0.0
        %408 = vmatpush.msra.mxu0 0.0
        %409 = vmatpush.msra.mxu0 0.0
        %410 = vmatpush.msra.mxu0 0.0
        %411 = vmatpush.msra.mxu0 %v336
        %412 = vmatpush.msra.mxu0 %v335
        %413 = vmatpush.msra.mxu0 %v334
        %414 = vmatpush.msra.mxu0 %v333
        %415 = vmatpush.msra.mxu0 %v332
        %416 = vmatpush.msra.mxu0 %v331
        %417 = vmatpush.msra.mxu0 %v330
        %418 = vmatpush.msra.mxu0 %v329
        %419 = vmatmul.f32.gmra.mxu0 %v401
        %v420 = vpop.f32.mrf.mxu0
        %v421 = vadd.f32 0.0, %v420
        %422 = vdwg.mxu0
        %v423 = vmul.f32 %v421, 0.001953125
        %v424 = vmul.f32 %v423, %v423
        %v426 = vrot.slane %v424, 7
        %v428 = vsub.f32 %v423, %v426
        %v429 = vmax.f32 %v428, 0.0
        %v430 = vadd.f32 %v429, 1e-05
        %v431 = vrsqrt.pop %v430
        %v432 = vmul.f32 %v431, %v430
        %v433 = vmul.f32 %v432, %v431
        %v434 = vmul.f32 0.5, %v433
        %v435 = vsub.f32 1.5, %v434
        %v436 = vmul.f32 %v431, %v435
        %vm437 = vweird.f32 %v430
        %vm438 = vweird.f32 %v431
        %vm439 = vmor %vm437, %vm438
        %v440 = vsel %vm439, %v431, %v436
        %v441 = vsel %vm397, %v423, %v440
        %vm442 = vcmask 64512
        %v444 = vsel %vm442, %v441, 0
        %v447 = vsel %vm442, %v329, 0
        %v450 = vsel %vm442, %v330, 0
        %v453 = vsel %vm442, %v331, 0
        %v456 = vsel %vm442, %v332, 0
        %v459 = vsel %vm442, %v333, 0
        %v462 = vsel %vm442, %v334, 0
        %v465 = vsel %vm442, %v335, 0
        %v468 = vsel %vm442, %v336, 0
        %470 = vmatpush.xpose.msra.mxu0 0.0
        %471 = vmatpush.xpose.msra.mxu0 0.0
        %472 = vmatpush.xpose.msra.mxu0 0.0
        %473 = vmatpush.xpose.msra.mxu0 0.0
        %474 = vmatpush.xpose.msra.mxu0 0.0
        %475 = vmatpush.xpose.msra.mxu0 0.0
        %476 = vmatpush.xpose.msra.mxu0 0.0
        %477 = vmatpush.xpose.msra.mxu0 0.0
        %478 = vmatpush.xpose.msra.mxu0 %v468
        %479 = vmatpush.xpose.msra.mxu0 %v465
        %480 = vmatpush.xpose.msra.mxu0 %v462
        %481 = vmatpush.xpose.msra.mxu0 %v459
        %482 = vmatpush.xpose.msra.mxu0 %v456
        %483 = vmatpush.xpose.msra.mxu0 %v453
        %484 = vmatpush.xpose.msra.mxu0 %v450
        %485 = vmatpush.xpose.msra.mxu0 %v447
        %486 = vmatmul.f32.gmra.mxu0 %v444
        %v487 = vpop.f32.mrf.mxu0
        %v488 = vadd.f32 0.0, %v487
        %489 = vdwg.mxu0
        %v490 = vadd.f32 %v337, 1.0
        %v492 = vrot.slane %v490, 7
        %v494 = vmul.f32 %v488, %v492
        %v496 = vrot.slane %v494, 1
        %v498 = vmul.f32 %v488, %v496
        %v500 = vrot.slane %v498, 7
        %v502 = vsub.f32 %v337, %v500
        %v503 = vperm.slane %v494, 1
        %v504 = vmul.f32 %v338, %v503
        %v505 = vmul.f32 %v339, %v503
        %v506 = vmul.f32 %v340, %v503
        %v507 = vmul.f32 %v341, %v503
        %v508 = vmul.f32 %v342, %v503
        %v509 = vmul.f32 %v343, %v503
        %v510 = vmul.f32 %v344, %v503
        %v511 = vmul.f32 %v345, %v503
        %v512 = vperm.slane %v502, 1
        %v513 = vadd.f32 %v504, %v512
        %v514 = vadd.f32 %v505, %v512
        %v515 = vadd.f32 %v506, %v512
        %v516 = vadd.f32 %v507, %v512
        %v517 = vadd.f32 %v508, %v512
        %v518 = vadd.f32 %v509, %v512
        %v519 = vadd.f32 %v510, %v512
        %v520 = vadd.f32 %v511, %v512
        %v521 = vpack.c.bf16 %v513, %v513
        %v522 = vpack.c.bf16 %v514, %v514
        %v523 = vpack.c.bf16 %v515, %v515
        %v524 = vpack.c.bf16 %v516, %v516
        %v525 = vpack.c.bf16 %v517, %v517
        %v526 = vpack.c.bf16 %v518, %v518
        %v527 = vpack.c.bf16 %v519, %v519
        %v528 = vpack.c.bf16 %v520, %v520
        %vm529 = vcmask 519168
        %530 = vst.msk [vmem:[#allocation2] sm:$0xf] %vm529, %v521
        %531 = vst.msk [vmem:[#allocation2 + $0x4] sm:$0xf] %vm529, %v522
        %532 = vst.msk [vmem:[#allocation2 + $0x8] sm:$0xf] %vm529, %v523
        %533 = vst.msk [vmem:[#allocation2 + $0xc] sm:$0xf] %vm529, %v524
        %534 = vst.msk [vmem:[#allocation2 + $0x10] sm:$0xf] %vm529, %v525
        %535 = vst.msk [vmem:[#allocation2 + $0x14] sm:$0xf] %vm529, %v526
        %536 = vst.msk [vmem:[#allocation2 + $0x18] sm:$0xf] %vm529, %v527
        %537 = vst.msk [vmem:[#allocation2 + $0x1c] sm:$0xf] %vm529, %v528
        loop: start=0, step=1, limit=2
        $region57: #{tpu_custom_call.1} parent=47 // loop_pre_header
          _
        $region58: #{tpu_custom_call.1} parent=47 // loop_header
          %s539 = sphi 0, %s543
          %p540 = scmp.ge.s32.totalorder %s539, 2
        $region59: #{tpu_custom_call.1} parent=47 // loop_header_branch
          %542 = sbr.rel (%p540) target = $region63
        $region60: #{tpu_custom_call.1} parent=47 // loop_body
          %v544 = vld [vmem:[#allocation2] sm:$0xf]
          %v545 = vld [vmem:[#allocation2 + $0x4] sm:$0xf]
          %v546 = vld [vmem:[#allocation2 + $0x8] sm:$0xf]
          %v547 = vld [vmem:[#allocation2 + $0xc] sm:$0xf]
          %v548 = vld [vmem:[#allocation2 + $0x10] sm:$0xf]
          %v549 = vld [vmem:[#allocation2 + $0x14] sm:$0xf]
          %v550 = vld [vmem:[#allocation2 + $0x18] sm:$0xf]
          %v551 = vld [vmem:[#allocation2 + $0x1c] sm:$0xf]
          %s552 = smul.u32 %s539, 8
          %s553 = smul.addr %s552, 4
          %s554 = scalar_lea.vmem %s3, %s553
          %v555 = vld [vmem:[%s554] sm:$0xf]
          %v556 = vld [vmem:[%s554 + $0x4] sm:$0xf]
          %v557 = vld [vmem:[%s554 + $0x8] sm:$0xf]
          %v558 = vld [vmem:[%s554 + $0xc] sm:$0xf]
          %v559 = vld [vmem:[%s554 + $0x10] sm:$0xf]
          %v560 = vld [vmem:[%s554 + $0x14] sm:$0xf]
          %v561 = vld [vmem:[%s554 + $0x18] sm:$0xf]
          %v562 = vld [vmem:[%s554 + $0x1c] sm:$0xf]
          %v571 = vunpack.c.l.b16 %v544
          %v572 = vunpack.c.l.b16 %v545
          %v573 = vunpack.c.l.b16 %v546
          %v574 = vunpack.c.l.b16 %v547
          %v575 = vunpack.c.l.b16 %v548
          %v576 = vunpack.c.l.b16 %v549
          %v577 = vunpack.c.l.b16 %v550
          %v578 = vunpack.c.l.b16 %v551
          %v579 = vpack.c.b16 %v572, %v571
          %v580 = vpack.c.b16 %v574, %v573
          %v581 = vpack.c.b16 %v576, %v575
          %v582 = vpack.c.b16 %v578, %v577
          %v591 = vunpack.c.l.b16 %v555
          %v592 = vunpack.c.l.b16 %v556
          %v593 = vunpack.c.l.b16 %v557
          %v594 = vunpack.c.l.b16 %v558
          %v595 = vunpack.c.l.b16 %v559
          %v596 = vunpack.c.l.b16 %v560
          %v597 = vunpack.c.l.b16 %v561
          %v598 = vunpack.c.l.b16 %v562
          %v599 = vpack.c.b16 %v592, %v591
          %v600 = vpack.c.b16 %v594, %v593
          %v601 = vpack.c.b16 %v596, %v595
          %v602 = vpack.c.b16 %v598, %v597
          %v608 = vsel %vm346, %v579, 0
          %v611 = vsel %vm346, %v580, 0
          %v614 = vsel %vm346, %v581, 0
          %v617 = vsel %vm346, %v582, 0
          %619 = vmatpush.bf16.msra.mxu0 0
          %620 = vmatpush.bf16.msra.mxu0 0
          %621 = vmatpush.bf16.msra.mxu0 0
          %622 = vmatpush.bf16.msra.mxu0 0
          %623 = vmatpush.bf16.msra.mxu0 %v602
          %624 = vmatpush.bf16.msra.mxu0 %v601
          %625 = vmatpush.bf16.msra.mxu0 %v600
          %626 = vmatpush.bf16.msra.mxu0 %v599
          %627 = vmatmul.bf16.gmra.mxu0 %v608
          %v628 = vpop.f32.mrf.mxu0
          %v629 = vadd.f32 0.0, %v628
          %v630 = vpop.f32.mrf.mxu0
          %v631 = vadd.f32 0.0, %v630
          %632 = vmatmul.bf16.gmra.mxu0 %v611
          %v633 = vpop.f32.mrf.mxu0
          %v634 = vadd.f32 0.0, %v633
          %v635 = vpop.f32.mrf.mxu0
          %v636 = vadd.f32 0.0, %v635
          %637 = vmatmul.bf16.gmra.mxu0 %v614
          %v638 = vpop.f32.mrf.mxu0
          %v639 = vadd.f32 0.0, %v638
          %v640 = vpop.f32.mrf.mxu0
          %v641 = vadd.f32 0.0, %v640
          %642 = vmatmul.bf16.gmra.mxu0 %v617
          %v643 = vpop.f32.mrf.mxu0
          %v644 = vadd.f32 0.0, %v643
          %v645 = vpop.f32.mrf.mxu0
          %v646 = vadd.f32 0.0, %v645
          %647 = vdwg.mxu0
          %v648 = vpack.c.bf16 %v629, %v629
          %v649 = vpack.c.bf16 %v631, %v631
          %v650 = vpack.c.bf16 %v634, %v634
          %v651 = vpack.c.bf16 %v636, %v636
          %v652 = vpack.c.bf16 %v639, %v639
          %v653 = vpack.c.bf16 %v641, %v641
          %v654 = vpack.c.bf16 %v644, %v644
          %v655 = vpack.c.bf16 %v646, %v646
          %s656 = smul.u32 %s539, 24
          %s657 = smul.addr %s656, 4
          %s658 = scalar_lea.vmem [#allocation3], %s657
          %vm659 = vcmask 257024
          %660 = vst.msk [vmem:[%s658] sm:$0xf] %vm659, %v648
          %661 = vst.msk [vmem:[%s658 + $0x4] sm:$0xf] %vm659, %v649
          %662 = vst.msk [vmem:[%s658 + $0x8] sm:$0xf] %vm659, %v650
          %663 = vst.msk [vmem:[%s658 + $0xc] sm:$0xf] %vm659, %v651
          %664 = vst.msk [vmem:[%s658 + $0x10] sm:$0xf] %vm659, %v652
          %665 = vst.msk [vmem:[%s658 + $0x14] sm:$0xf] %vm659, %v653
          %666 = vst.msk [vmem:[%s658 + $0x18] sm:$0xf] %vm659, %v654
          %667 = vst.msk [vmem:[%s658 + $0x1c] sm:$0xf] %vm659, %v655
          %676 = vrot.lane.b32.xlu0 %v648, 96
          %v677 = vpop.permute.xlu0 %676
          %678 = vrot.lane.b32.xlu0 %v649, 96
          %v679 = vpop.permute.xlu0 %678
          %680 = vrot.lane.b32.xlu0 %v650, 96
          %v681 = vpop.permute.xlu0 %680
          %682 = vrot.lane.b32.xlu0 %v651, 96
          %v683 = vpop.permute.xlu0 %682
          %684 = vrot.lane.b32.xlu0 %v652, 96
          %v685 = vpop.permute.xlu0 %684
          %686 = vrot.lane.b32.xlu0 %v653, 96
          %v687 = vpop.permute.xlu0 %686
          %688 = vrot.lane.b32.xlu0 %v654, 96
          %v689 = vpop.permute.xlu0 %688
          %690 = vrot.lane.b32.xlu0 %v655, 96
          %v691 = vpop.permute.xlu0 %690
          %s700 = sadd.s32 8, %s656
          %s701 = smul.addr %s700, 4
          %s702 = scalar_lea.vmem [#allocation3], %s701
          %703 = vst.msk [vmem:[%s702] sm:$0xf] %vm659, %v677
          %704 = vst.msk [vmem:[%s702 + $0x4] sm:$0xf] %vm659, %v679
          %705 = vst.msk [vmem:[%s702 + $0x8] sm:$0xf] %vm659, %v681
          %706 = vst.msk [vmem:[%s702 + $0xc] sm:$0xf] %vm659, %v683
          %707 = vst.msk [vmem:[%s702 + $0x10] sm:$0xf] %vm659, %v685
          %708 = vst.msk [vmem:[%s702 + $0x14] sm:$0xf] %vm659, %v687
          %709 = vst.msk [vmem:[%s702 + $0x18] sm:$0xf] %vm659, %v689
          %710 = vst.msk [vmem:[%s702 + $0x1c] sm:$0xf] %vm659, %v691
          %711 = vrot.lane.b32.xlu0 %v648, 64
          %v712 = vpop.permute.xlu0 %711
          %713 = vrot.lane.b32.xlu0 %v649, 64
          %v714 = vpop.permute.xlu0 %713
          %715 = vrot.lane.b32.xlu0 %v650, 64
          %v716 = vpop.permute.xlu0 %715
          %717 = vrot.lane.b32.xlu0 %v651, 64
          %v718 = vpop.permute.xlu0 %717
          %719 = vrot.lane.b32.xlu0 %v652, 64
          %v720 = vpop.permute.xlu0 %719
          %721 = vrot.lane.b32.xlu0 %v653, 64
          %v722 = vpop.permute.xlu0 %721
          %723 = vrot.lane.b32.xlu0 %v654, 64
          %v724 = vpop.permute.xlu0 %723
          %725 = vrot.lane.b32.xlu0 %v655, 64
          %v726 = vpop.permute.xlu0 %725
          %s735 = sadd.s32 16, %s656
          %s736 = smul.addr %s735, 4
          %s737 = scalar_lea.vmem [#allocation3], %s736
          %738 = vst.msk [vmem:[%s737] sm:$0xf] %vm659, %v712
          %739 = vst.msk [vmem:[%s737 + $0x4] sm:$0xf] %vm659, %v714
          %740 = vst.msk [vmem:[%s737 + $0x8] sm:$0xf] %vm659, %v716
          %741 = vst.msk [vmem:[%s737 + $0xc] sm:$0xf] %vm659, %v718
          %742 = vst.msk [vmem:[%s737 + $0x10] sm:$0xf] %vm659, %v720
          %743 = vst.msk [vmem:[%s737 + $0x14] sm:$0xf] %vm659, %v722
          %744 = vst.msk [vmem:[%s737 + $0x18] sm:$0xf] %vm659, %v724
          %745 = vst.msk [vmem:[%s737 + $0x1c] sm:$0xf] %vm659, %v726
        $region61: #{tpu_custom_call.1} parent=47 // loop_footer
          %s543 = sadd.s32 1, %s539
        $region62: #{tpu_custom_call.1} parent=47 // loop_footer_branch
          %538 = sbr.rel target = $region58
        $region63: #{tpu_custom_call.1} parent=47 // loop_exit
          _
        %v746 = vld [vmem:[%s323] sm:$0xff]
        %v747 = vld [vmem:[%s323 + $0x8] sm:$0xff]
        %v748 = vld [vmem:[%s323 + $0x10] sm:$0xff]
        %v749 = vld [vmem:[%s323 + $0x18] sm:$0xff]
        %v750 = vld [vmem:[%s323 + $0x20] sm:$0xff]
        %v751 = vld [vmem:[%s323 + $0x28] sm:$0xff]
        %v752 = vld [vmem:[%s323 + $0x30] sm:$0xff]
        %v753 = vld [vmem:[%s323 + $0x38] sm:$0xff]
        loop: start=0, step=1, limit=2
        $region64: #{tpu_custom_call.1} parent=47 // loop_pre_header
          _
        $region65: #{tpu_custom_call.1} parent=47 // loop_header
          %s755 = sphi 0, %s759
          %p756 = scmp.ge.s32.totalorder %s755, 2
          %v760 = vphi 0.0, %v1221
          %v761 = vphi 0.0, %v1222
          %v762 = vphi 0.0, %v1223
          %v763 = vphi 0.0, %v1224
          %v764 = vphi 0.0, %v1225
          %v765 = vphi 0.0, %v1226
          %v766 = vphi 0.0, %v1227
          %v767 = vphi 0.0, %v1228
        $region66: #{tpu_custom_call.1} parent=47 // loop_header_branch
          %758 = sbr.rel (%p756) target = $region70
        $region67: #{tpu_custom_call.1} parent=47 // loop_body
          %s768 = smul.u32 %s755, 24
          %s769 = sadd.s32 0, %s768
          %s770 = smul.addr %s769, 4
          %s771 = scalar_lea.vmem [#allocation3], %s770
          %v772 = vld [vmem:[%s771] sm:$0xf]
          %v773 = vld [vmem:[%s771 + $0x4] sm:$0xf]
          %v774 = vld [vmem:[%s771 + $0x8] sm:$0xf]
          %v775 = vld [vmem:[%s771 + $0xc] sm:$0xf]
          %v776 = vld [vmem:[%s771 + $0x10] sm:$0xf]
          %v777 = vld [vmem:[%s771 + $0x14] sm:$0xf]
          %v778 = vld [vmem:[%s771 + $0x18] sm:$0xf]
          %v779 = vld [vmem:[%s771 + $0x1c] sm:$0xf]
          %s780 = sadd.s32 8, %s768
          %s781 = smul.addr %s780, 4
          %s782 = scalar_lea.vmem [#allocation3], %s781
          %v783 = vld [vmem:[%s782] sm:$0xf]
          %v784 = vld [vmem:[%s782 + $0x4] sm:$0xf]
          %v785 = vld [vmem:[%s782 + $0x8] sm:$0xf]
          %v786 = vld [vmem:[%s782 + $0xc] sm:$0xf]
          %v787 = vld [vmem:[%s782 + $0x10] sm:$0xf]
          %v788 = vld [vmem:[%s782 + $0x14] sm:$0xf]
          %v789 = vld [vmem:[%s782 + $0x18] sm:$0xf]
          %v790 = vld [vmem:[%s782 + $0x1c] sm:$0xf]
          %v799 = vunpack.c.l.b16 %v772
          %v800 = vunpack.c.l.b16 %v773
          %v801 = vunpack.c.l.b16 %v774
          %v802 = vunpack.c.l.b16 %v775
          %v803 = vunpack.c.l.b16 %v776
          %v804 = vunpack.c.l.b16 %v777
          %v805 = vunpack.c.l.b16 %v778
          %v806 = vunpack.c.l.b16 %v779
          %v807 = vpack.c.b16 %v800, %v799
          %v808 = vpack.c.b16 %v802, %v801
          %v809 = vpack.c.b16 %v804, %v803
          %v810 = vpack.c.b16 %v806, %v805
          %v819 = vunpack.c.l.b16 %v783
          %v820 = vunpack.c.l.b16 %v784
          %v821 = vunpack.c.l.b16 %v785
          %v822 = vunpack.c.l.b16 %v786
          %v823 = vunpack.c.l.b16 %v787
          %v824 = vunpack.c.l.b16 %v788
          %v825 = vunpack.c.l.b16 %v789
          %v826 = vunpack.c.l.b16 %v790
          %v827 = vpack.c.b16 %v820, %v819
          %v828 = vpack.c.b16 %v822, %v821
          %v829 = vpack.c.b16 %v824, %v823
          %v830 = vpack.c.b16 %v826, %v825
          %vm831 = vcmask 261120
          %v833 = vsel %vm831, %v807, 0
          %v836 = vsel %vm831, %v808, 0
          %v839 = vsel %vm831, %v809, 0
          %v842 = vsel %vm831, %v810, 0
          %v845 = vsel %vm831, %v827, 0
          %v848 = vsel %vm831, %v828, 0
          %v851 = vsel %vm831, %v829, 0
          %v854 = vsel %vm831, %v830, 0
          %856 = vmatpush.bf16.xpose.msra.mxu0 0
          %857 = vmatpush.bf16.xpose.msra.mxu0 0
          %858 = vmatpush.bf16.xpose.msra.mxu0 0
          %859 = vmatpush.bf16.xpose.msra.mxu0 0
          %860 = vmatpush.bf16.xpose.msra.mxu0 %v854
          %861 = vmatpush.bf16.xpose.msra.mxu0 %v851
          %862 = vmatpush.bf16.xpose.msra.mxu0 %v848
          %863 = vmatpush.bf16.xpose.msra.mxu0 %v845
          %864 = vmatmul.bf16.gmra.mxu0 %v833
          %v865 = vpop.f32.mrf.mxu0
          %v866 = vadd.f32 0.0, %v865
          %v867 = vpop.f32.mrf.mxu0
          %v868 = vadd.f32 0.0, %v867
          %869 = vmatmul.bf16.gmra.mxu0 %v836
          %v870 = vpop.f32.mrf.mxu0
          %v871 = vadd.f32 0.0, %v870
          %v872 = vpop.f32.mrf.mxu0
          %v873 = vadd.f32 0.0, %v872
          %874 = vmatmul.bf16.gmra.mxu0 %v839
          %v875 = vpop.f32.mrf.mxu0
          %v876 = vadd.f32 0.0, %v875
          %v877 = vpop.f32.mrf.mxu0
          %v878 = vadd.f32 0.0, %v877
          %879 = vmatmul.bf16.gmra.mxu0 %v842
          %v880 = vpop.f32.mrf.mxu0
          %v881 = vadd.f32 0.0, %v880
          %v882 = vpop.f32.mrf.mxu0
          %v883 = vadd.f32 0.0, %v882
          %884 = vdwg.mxu0
          %v885 = vsel %vm346, %v866, -inf
          %886 = vmax.xlane.f32.xlu0 %v885
          %v887 = vpop.xlane.xlu0 %886
          %v888 = vsel %vm346, %v868, -inf
          %889 = vmax.xlane.f32.xlu0 %v888
          %v890 = vpop.xlane.xlu0 %889
          %v891 = vsel %vm346, %v871, -inf
          %892 = vmax.xlane.f32.xlu0 %v891
          %v893 = vpop.xlane.xlu0 %892
          %v894 = vsel %vm346, %v873, -inf
          %895 = vmax.xlane.f32.xlu0 %v894
          %v896 = vpop.xlane.xlu0 %895
          %v897 = vsel %vm346, %v876, -inf
          %898 = vmax.xlane.f32.xlu0 %v897
          %v899 = vpop.xlane.xlu0 %898
          %v900 = vsel %vm346, %v878, -inf
          %901 = vmax.xlane.f32.xlu0 %v900
          %v902 = vpop.xlane.xlu0 %901
          %v903 = vsel %vm346, %v881, -inf
          %904 = vmax.xlane.f32.xlu0 %v903
          %v905 = vpop.xlane.xlu0 %904
          %v906 = vsel %vm346, %v883, -inf
          %907 = vmax.xlane.f32.xlu0 %v906
          %v908 = vpop.xlane.xlu0 %907
          %v909 = vsub.f32 %v866, %v887
          %v910 = vsub.f32 %v868, %v890
          %v911 = vsub.f32 %v871, %v893
          %v912 = vsub.f32 %v873, %v896
          %v913 = vsub.f32 %v876, %v899
          %v914 = vsub.f32 %v878, %v902
          %v915 = vsub.f32 %v881, %v905
          %v916 = vsub.f32 %v883, %v908
          %v917 = vmul.f32 %v909, 1.442695
          %v918 = vpow.pop %v917
          %v919 = vmul.f32 %v910, 1.442695
          %v920 = vpow.pop %v919
          %v921 = vmul.f32 %v911, 1.442695
          %v922 = vpow.pop %v921
          %v923 = vmul.f32 %v912, 1.442695
          %v924 = vpow.pop %v923
          %v925 = vmul.f32 %v913, 1.442695
          %v926 = vpow.pop %v925
          %v927 = vmul.f32 %v914, 1.442695
          %v928 = vpow.pop %v927
          %v929 = vmul.f32 %v915, 1.442695
          %v930 = vpow.pop %v929
          %v931 = vmul.f32 %v916, 1.442695
          %v932 = vpow.pop %v931
          %v933 = vsel %vm346, %v918, 0.0
          %934 = vadd.xlane.f32.xlu0 %v933
          %v935 = vpop.xlane.xlu0 %934
          %v936 = vsel %vm346, %v920, 0.0
          %937 = vadd.xlane.f32.xlu0 %v936
          %v938 = vpop.xlane.xlu0 %937
          %v939 = vsel %vm346, %v922, 0.0
          %940 = vadd.xlane.f32.xlu0 %v939
          %v941 = vpop.xlane.xlu0 %940
          %v942 = vsel %vm346, %v924, 0.0
          %943 = vadd.xlane.f32.xlu0 %v942
          %v944 = vpop.xlane.xlu0 %943
          %v945 = vsel %vm346, %v926, 0.0
          %946 = vadd.xlane.f32.xlu0 %v945
          %v947 = vpop.xlane.xlu0 %946
          %v948 = vsel %vm346, %v928, 0.0
          %949 = vadd.xlane.f32.xlu0 %v948
          %v950 = vpop.xlane.xlu0 %949
          %v951 = vsel %vm346, %v930, 0.0
          %952 = vadd.xlane.f32.xlu0 %v951
          %v953 = vpop.xlane.xlu0 %952
          %v954 = vsel %vm346, %v932, 0.0
          %955 = vadd.xlane.f32.xlu0 %v954
          %v956 = vpop.xlane.xlu0 %955
          %v957 = vpack.c.bf16 %v920, %v918
          %v958 = vpack.c.bf16 %v924, %v922
          %v959 = vpack.c.bf16 %v928, %v926
          %v960 = vpack.c.bf16 %v932, %v930
          %s961 = sadd.s32 16, %s768
          %s962 = smul.addr %s961, 4
          %s963 = scalar_lea.vmem [#allocation3], %s962
          %v964 = vld [vmem:[%s963] sm:$0xf]
          %v965 = vld [vmem:[%s963 + $0x4] sm:$0xf]
          %v966 = vld [vmem:[%s963 + $0x8] sm:$0xf]
          %v967 = vld [vmem:[%s963 + $0xc] sm:$0xf]
          %v968 = vld [vmem:[%s963 + $0x10] sm:$0xf]
          %v969 = vld [vmem:[%s963 + $0x14] sm:$0xf]
          %v970 = vld [vmem:[%s963 + $0x18] sm:$0xf]
          %v971 = vld [vmem:[%s963 + $0x1c] sm:$0xf]
          %v980 = vunpack.c.l.b16 %v964
          %v981 = vunpack.c.l.b16 %v965
          %v982 = vunpack.c.l.b16 %v966
          %v983 = vunpack.c.l.b16 %v967
          %v984 = vunpack.c.l.b16 %v968
          %v985 = vunpack.c.l.b16 %v969
          %v986 = vunpack.c.l.b16 %v970
          %v987 = vunpack.c.l.b16 %v971
          %v988 = vpack.c.b16 %v981, %v980
          %v989 = vpack.c.b16 %v983, %v982
          %v990 = vpack.c.b16 %v985, %v984
          %v991 = vpack.c.b16 %v987, %v986
          %v997 = vsel %vm346, %v957, 0
          %v1000 = vsel %vm346, %v958, 0
          %v1003 = vsel %vm346, %v959, 0
          %v1006 = vsel %vm346, %v960, 0
          %1008 = vmatpush.bf16.msra.mxu0 0
          %1009 = vmatpush.bf16.msra.mxu0 0
          %1010 = vmatpush.bf16.msra.mxu0 0
          %1011 = vmatpush.bf16.msra.mxu0 0
          %1012 = vmatpush.bf16.msra.mxu0 %v991
          %1013 = vmatpush.bf16.msra.mxu0 %v990
          %1014 = vmatpush.bf16.msra.mxu0 %v989
          %1015 = vmatpush.bf16.msra.mxu0 %v988
          %1016 = vmatmul.bf16.gmra.mxu0 %v997
          %v1017 = vpop.f32.mrf.mxu0
          %v1018 = vadd.f32 0.0, %v1017
          %v1019 = vpop.f32.mrf.mxu0
          %v1020 = vadd.f32 0.0, %v1019
          %1021 = vmatmul.bf16.gmra.mxu0 %v1000
          %v1022 = vpop.f32.mrf.mxu0
          %v1023 = vadd.f32 0.0, %v1022
          %v1024 = vpop.f32.mrf.mxu0
          %v1025 = vadd.f32 0.0, %v1024
          %1026 = vmatmul.bf16.gmra.mxu0 %v1003
          %v1027 = vpop.f32.mrf.mxu0
          %v1028 = vadd.f32 0.0, %v1027
          %v1029 = vpop.f32.mrf.mxu0
          %v1030 = vadd.f32 0.0, %v1029
          %1031 = vmatmul.bf16.gmra.mxu0 %v1006
          %v1032 = vpop.f32.mrf.mxu0
          %v1033 = vadd.f32 0.0, %v1032
          %v1034 = vpop.f32.mrf.mxu0
          %v1035 = vadd.f32 0.0, %v1034
          %1036 = vdwg.mxu0
          %v1037 = vrcp.pop %v935
          %v1038 = vmul.f32 %v935, %v1037
          %v1039 = vsub.f32 1.0, %v1038
          %v1040 = vmul.f32 %v1037, %v1039
          %v1041 = vadd.f32 %v1037, %v1040
          %vm1042 = vweird.f32 %v935
          %vm1043 = vweird.f32 %v1037
          %vm1044 = vmor %vm1042, %vm1043
          %v1045 = vsel %vm1044, %v1037, %v1041
          %v1046 = vand.u32 2147483647, %v935
          %vm1047 = vcmp.eq.f32.partialorder %v1046, 8.507059e+37
          %v1048 = vand.u32 %v935, 2147483648
          %v1049 = vor.u32 1.1754944e-38, %v1048
          %v1050 = vsel %vm1047, %v1049, %v1045
          %v1051 = vmul.f32 %v1018, %v1050
          %v1052 = vrcp.pop %v938
          %v1053 = vmul.f32 %v938, %v1052
          %v1054 = vsub.f32 1.0, %v1053
          %v1055 = vmul.f32 %v1052, %v1054
          %v1056 = vadd.f32 %v1052, %v1055
          %vm1057 = vweird.f32 %v938
          %vm1058 = vweird.f32 %v1052
          %vm1059 = vmor %vm1057, %vm1058
          %v1060 = vsel %vm1059, %v1052, %v1056
          %v1061 = vand.u32 2147483647, %v938
          %vm1062 = vcmp.eq.f32.partialorder %v1061, 8.507059e+37
          %v1063 = vand.u32 %v938, 2147483648
          %v1064 = vor.u32 1.1754944e-38, %v1063
          %v1065 = vsel %vm1062, %v1064, %v1060
          %v1066 = vmul.f32 %v1020, %v1065
          %v1067 = vrcp.pop %v941
          %v1068 = vmul.f32 %v941, %v1067
          %v1069 = vsub.f32 1.0, %v1068
          %v1070 = vmul.f32 %v1067, %v1069
          %v1071 = vadd.f32 %v1067, %v1070
          %vm1072 = vweird.f32 %v941
          %vm1073 = vweird.f32 %v1067
          %vm1074 = vmor %vm1072, %vm1073
          %v1075 = vsel %vm1074, %v1067, %v1071
          %v1076 = vand.u32 2147483647, %v941
          %vm1077 = vcmp.eq.f32.partialorder %v1076, 8.507059e+37
          %v1078 = vand.u32 %v941, 2147483648
          %v1079 = vor.u32 1.1754944e-38, %v1078
          %v1080 = vsel %vm1077, %v1079, %v1075
          %v1081 = vmul.f32 %v1023, %v1080
          %v1082 = vrcp.pop %v944
          %v1083 = vmul.f32 %v944, %v1082
          %v1084 = vsub.f32 1.0, %v1083
          %v1085 = vmul.f32 %v1082, %v1084
          %v1086 = vadd.f32 %v1082, %v1085
          %vm1087 = vweird.f32 %v944
          %vm1088 = vweird.f32 %v1082
          %vm1089 = vmor %vm1087, %vm1088
          %v1090 = vsel %vm1089, %v1082, %v1086
          %v1091 = vand.u32 2147483647, %v944
          %vm1092 = vcmp.eq.f32.partialorder %v1091, 8.507059e+37
          %v1093 = vand.u32 %v944, 2147483648
          %v1094 = vor.u32 1.1754944e-38, %v1093
          %v1095 = vsel %vm1092, %v1094, %v1090
          %v1096 = vmul.f32 %v1025, %v1095
          %v1097 = vrcp.pop %v947
          %v1098 = vmul.f32 %v947, %v1097
          %v1099 = vsub.f32 1.0, %v1098
          %v1100 = vmul.f32 %v1097, %v1099
          %v1101 = vadd.f32 %v1097, %v1100
          %vm1102 = vweird.f32 %v947
          %vm1103 = vweird.f32 %v1097
          %vm1104 = vmor %vm1102, %vm1103
          %v1105 = vsel %vm1104, %v1097, %v1101
          %v1106 = vand.u32 2147483647, %v947
          %vm1107 = vcmp.eq.f32.partialorder %v1106, 8.507059e+37
          %v1108 = vand.u32 %v947, 2147483648
          %v1109 = vor.u32 1.1754944e-38, %v1108
          %v1110 = vsel %vm1107, %v1109, %v1105
          %v1111 = vmul.f32 %v1028, %v1110
          %v1112 = vrcp.pop %v950
          %v1113 = vmul.f32 %v950, %v1112
          %v1114 = vsub.f32 1.0, %v1113
          %v1115 = vmul.f32 %v1112, %v1114
          %v1116 = vadd.f32 %v1112, %v1115
          %vm1117 = vweird.f32 %v950
          %vm1118 = vweird.f32 %v1112
          %vm1119 = vmor %vm1117, %vm1118
          %v1120 = vsel %vm1119, %v1112, %v1116
          %v1121 = vand.u32 2147483647, %v950
          %vm1122 = vcmp.eq.f32.partialorder %v1121, 8.507059e+37
          %v1123 = vand.u32 %v950, 2147483648
          %v1124 = vor.u32 1.1754944e-38, %v1123
          %v1125 = vsel %vm1122, %v1124, %v1120
          %v1126 = vmul.f32 %v1030, %v1125
          %v1127 = vrcp.pop %v953
          %v1128 = vmul.f32 %v953, %v1127
          %v1129 = vsub.f32 1.0, %v1128
          %v1130 = vmul.f32 %v1127, %v1129
          %v1131 = vadd.f32 %v1127, %v1130
          %vm1132 = vweird.f32 %v953
          %vm1133 = vweird.f32 %v1127
          %vm1134 = vmor %vm1132, %vm1133
          %v1135 = vsel %vm1134, %v1127, %v1131
          %v1136 = vand.u32 2147483647, %v953
          %vm1137 = vcmp.eq.f32.partialorder %v1136, 8.507059e+37
          %v1138 = vand.u32 %v953, 2147483648
          %v1139 = vor.u32 1.1754944e-38, %v1138
          %v1140 = vsel %vm1137, %v1139, %v1135
          %v1141 = vmul.f32 %v1033, %v1140
          %v1142 = vrcp.pop %v956
          %v1143 = vmul.f32 %v956, %v1142
          %v1144 = vsub.f32 1.0, %v1143
          %v1145 = vmul.f32 %v1142, %v1144
          %v1146 = vadd.f32 %v1142, %v1145
          %vm1147 = vweird.f32 %v956
          %vm1148 = vweird.f32 %v1142
          %vm1149 = vmor %vm1147, %vm1148
          %v1150 = vsel %vm1149, %v1142, %v1146
          %v1151 = vand.u32 2147483647, %v956
          %vm1152 = vcmp.eq.f32.partialorder %v1151, 8.507059e+37
          %v1153 = vand.u32 %v956, 2147483648
          %v1154 = vor.u32 1.1754944e-38, %v1153
          %v1155 = vsel %vm1152, %v1154, %v1150
          %v1156 = vmul.f32 %v1035, %v1155
          %v1157 = vpack.c.bf16 %v1066, %v1051
          %v1158 = vpack.c.bf16 %v1096, %v1081
          %v1159 = vpack.c.bf16 %v1126, %v1111
          %v1160 = vpack.c.bf16 %v1156, %v1141
          %s1161 = smul.u32 %s755, 4
          %s1162 = smul.addr %s1161, 4
          %s1163 = scalar_lea.vmem [#allocation5], %s1162
          %v1164 = vld [vmem:[%s1163] sm:$0xf]
          %v1165 = vld [vmem:[%s1163 + $0x4] sm:$0xf]
          %v1166 = vld [vmem:[%s1163 + $0x8] sm:$0xf]
          %v1167 = vld [vmem:[%s1163 + $0xc] sm:$0xf]
          %v1172 = vunpack.c.l.b16 %v1164
          %v1173 = vunpack.c.l.b16 %v1165
          %v1174 = vunpack.c.l.b16 %v1166
          %v1175 = vunpack.c.l.b16 %v1167
          %v1176 = vpack.c.b16 %v1173, %v1172
          %v1177 = vpack.c.b16 %v1175, %v1174
          %v1181 = vsel %vm831, %v1157, 0
          %v1184 = vsel %vm831, %v1158, 0
          %v1187 = vsel %vm831, %v1159, 0
          %v1190 = vsel %vm831, %v1160, 0
          %1192 = vmatpush.bf16.msra.mxu0 0
          %1193 = vmatpush.bf16.msra.mxu0 0
          %1194 = vmatpush.bf16.msra.mxu0 0
          %1195 = vmatpush.bf16.msra.mxu0 0
          %1196 = vmatpush.bf16.msra.mxu0 0
          %1197 = vmatpush.bf16.msra.mxu0 0
          %1198 = vmatpush.bf16.msra.mxu0 %v1177
          %1199 = vmatpush.bf16.msra.mxu0 %v1176
          %1200 = vmatmul.bf16.gmra.mxu0 %v1181
          %v1201 = vpop.f32.mrf.mxu0
          %v1202 = vadd.f32 0.0, %v1201
          %v1203 = vpop.f32.mrf.mxu0
          %v1204 = vadd.f32 0.0, %v1203
          %1205 = vmatmul.bf16.gmra.mxu0 %v1184
          %v1206 = vpop.f32.mrf.mxu0
          %v1207 = vadd.f32 0.0, %v1206
          %v1208 = vpop.f32.mrf.mxu0
          %v1209 = vadd.f32 0.0, %v1208
          %1210 = vmatmul.bf16.gmra.mxu0 %v1187
          %v1211 = vpop.f32.mrf.mxu0
          %v1212 = vadd.f32 0.0, %v1211
          %v1213 = vpop.f32.mrf.mxu0
          %v1214 = vadd.f32 0.0, %v1213
          %1215 = vmatmul.bf16.gmra.mxu0 %v1190
          %v1216 = vpop.f32.mrf.mxu0
          %v1217 = vadd.f32 0.0, %v1216
          %v1218 = vpop.f32.mrf.mxu0
          %v1219 = vadd.f32 0.0, %v1218
          %1220 = vdwg.mxu0
          %v1221 = vadd.f32 %v760, %v1202
          %v1222 = vadd.f32 %v761, %v1204
          %v1223 = vadd.f32 %v762, %v1207
          %v1224 = vadd.f32 %v763, %v1209
          %v1225 = vadd.f32 %v764, %v1212
          %v1226 = vadd.f32 %v765, %v1214
          %v1227 = vadd.f32 %v766, %v1217
          %v1228 = vadd.f32 %v767, %v1219
        $region68: #{tpu_custom_call.1} parent=47 // loop_footer
          %s759 = sadd.s32 1, %s755
        $region69: #{tpu_custom_call.1} parent=47 // loop_footer_branch
          %754 = sbr.rel target = $region65
        $region70: #{tpu_custom_call.1} parent=47 // loop_exit
          _
        %v1229 = vadd.f32 %v746, %v760
        %v1230 = vadd.f32 %v747, %v761
        %v1231 = vadd.f32 %v748, %v762
        %v1232 = vadd.f32 %v749, %v763
        %v1233 = vadd.f32 %v750, %v764
        %v1234 = vadd.f32 %v751, %v765
        %v1235 = vadd.f32 %v752, %v766
        %v1236 = vadd.f32 %v753, %v767
        %1237 = vst.msk [vmem:[#allocation4] sm:$0xff] %vm346, %v1229
        %1238 = vst.msk [vmem:[#allocation4 + $0x8] sm:$0xff] %vm346, %v1230
        %1239 = vst.msk [vmem:[#allocation4 + $0x10] sm:$0xff] %vm346, %v1231
        %1240 = vst.msk [vmem:[#allocation4 + $0x18] sm:$0xff] %vm346, %v1232
        %1241 = vst.msk [vmem:[#allocation4 + $0x20] sm:$0xff] %vm346, %v1233
        %1242 = vst.msk [vmem:[#allocation4 + $0x28] sm:$0xff] %vm346, %v1234
        %1243 = vst.msk [vmem:[#allocation4 + $0x30] sm:$0xff] %vm346, %v1235
        %1244 = vst.msk [vmem:[#allocation4 + $0x38] sm:$0xff] %vm346, %v1236
        %v1245 = vsel %vm346, %v1229, 0.0
        %v1246 = vsel %vm346, %v1230, 0.0
        %v1247 = vadd.f32 %v1245, %v1246
        %v1248 = vsel %vm346, %v1231, 0.0
        %v1249 = vadd.f32 %v1247, %v1248
        %v1250 = vsel %vm346, %v1232, 0.0
        %v1251 = vadd.f32 %v1249, %v1250
        %v1252 = vsel %vm346, %v1233, 0.0
        %v1253 = vadd.f32 %v1251, %v1252
        %v1254 = vsel %vm346, %v1234, 0.0
        %v1255 = vadd.f32 %v1253, %v1254
        %v1256 = vsel %vm346, %v1235, 0.0
        %v1257 = vadd.f32 %v1255, %v1256
        %v1258 = vsel %vm346, %v1236, 0.0
        %v1259 = vadd.f32 %v1257, %v1258
        %v1260 = vrot.slane %v1259, 4
        %v1261 = vadd.f32 %v1259, %v1260
        %v1262 = vrot.slane %v1261, 2
        %v1263 = vadd.f32 %v1261, %v1262
        %v1264 = vrot.slane %v1263, 1
        %v1265 = vadd.f32 %v1263, %v1264
        %v1266 = vmul.f32 %v1229, %v1229
        %v1267 = vmul.f32 %v1230, %v1230
        %v1268 = vmul.f32 %v1231, %v1231
        %v1269 = vmul.f32 %v1232, %v1232
        %v1270 = vmul.f32 %v1233, %v1233
        %v1271 = vmul.f32 %v1234, %v1234
        %v1272 = vmul.f32 %v1235, %v1235
        %v1273 = vmul.f32 %v1236, %v1236
        %v1274 = vsel %vm346, %v1266, 0.0
        %v1275 = vsel %vm346, %v1267, 0.0
        %v1276 = vadd.f32 %v1274, %v1275
        %v1277 = vsel %vm346, %v1268, 0.0
        %v1278 = vadd.f32 %v1276, %v1277
        %v1279 = vsel %vm346, %v1269, 0.0
        %v1280 = vadd.f32 %v1278, %v1279
        %v1281 = vsel %vm346, %v1270, 0.0
        %v1282 = vadd.f32 %v1280, %v1281
        %v1283 = vsel %vm346, %v1271, 0.0
        %v1284 = vadd.f32 %v1282, %v1283
        %v1285 = vsel %vm346, %v1272, 0.0
        %v1286 = vadd.f32 %v1284, %v1285
        %v1287 = vsel %vm346, %v1273, 0.0
        %v1288 = vadd.f32 %v1286, %v1287
        %v1289 = vrot.slane %v1288, 4
        %v1290 = vadd.f32 %v1288, %v1289
        %v1291 = vrot.slane %v1290, 2
        %v1292 = vadd.f32 %v1290, %v1291
        %v1293 = vrot.slane %v1292, 1
        %v1294 = vadd.f32 %v1292, %v1293
        %v1295 = vsel %vm397, %v1265, %v1294
        %v1296 = vadd.f32 %v1295, 0.0
        %v1298 = vsel %vm346, %v1296, 0
        %1300 = vmatpush.msra.mxu0 0.0
        %1301 = vmatpush.msra.mxu0 0.0
        %1302 = vmatpush.msra.mxu0 0.0
        %1303 = vmatpush.msra.mxu0 0.0
        %1304 = vmatpush.msra.mxu0 0.0
        %1305 = vmatpush.msra.mxu0 0.0
        %1306 = vmatpush.msra.mxu0 0.0
        %1307 = vmatpush.msra.mxu0 0.0
        %1308 = vmatpush.msra.mxu0 %v336
        %1309 = vmatpush.msra.mxu0 %v335
        %1310 = vmatpush.msra.mxu0 %v334
        %1311 = vmatpush.msra.mxu0 %v333
        %1312 = vmatpush.msra.mxu0 %v332
        %1313 = vmatpush.msra.mxu0 %v331
        %1314 = vmatpush.msra.mxu0 %v330
        %1315 = vmatpush.msra.mxu0 %v329
        %1316 = vmatmul.f32.gmra.mxu0 %v1298
        %v1317 = vpop.f32.mrf.mxu0
        %v1318 = vadd.f32 0.0, %v1317
        %1319 = vdwg.mxu0
        %v1320 = vmul.f32 %v1318, 0.001953125
        %v1321 = vmul.f32 %v1320, %v1320
        %v1323 = vrot.slane %v1321, 7
        %v1325 = vsub.f32 %v1320, %v1323
        %v1326 = vmax.f32 %v1325, 0.0
        %v1327 = vadd.f32 %v1326, 1e-05
        %v1328 = vrsqrt.pop %v1327
        %v1329 = vmul.f32 %v1328, %v1327
        %v1330 = vmul.f32 %v1329, %v1328
        %v1331 = vmul.f32 0.5, %v1330
        %v1332 = vsub.f32 1.5, %v1331
        %v1333 = vmul.f32 %v1328, %v1332
        %vm1334 = vweird.f32 %v1327
        %vm1335 = vweird.f32 %v1328
        %vm1336 = vmor %vm1334, %vm1335
        %v1337 = vsel %vm1336, %v1328, %v1333
        %v1338 = vsel %vm397, %v1320, %v1337
        %v1340 = vsel %vm442, %v1338, 0
        %1342 = vmatpush.xpose.msra.mxu0 0.0
        %1343 = vmatpush.xpose.msra.mxu0 0.0
        %1344 = vmatpush.xpose.msra.mxu0 0.0
        %1345 = vmatpush.xpose.msra.mxu0 0.0
        %1346 = vmatpush.xpose.msra.mxu0 0.0
        %1347 = vmatpush.xpose.msra.mxu0 0.0
        %1348 = vmatpush.xpose.msra.mxu0 0.0
        %1349 = vmatpush.xpose.msra.mxu0 0.0
        %1350 = vmatpush.xpose.msra.mxu0 %v468
        %1351 = vmatpush.xpose.msra.mxu0 %v465
        %1352 = vmatpush.xpose.msra.mxu0 %v462
        %1353 = vmatpush.xpose.msra.mxu0 %v459
        %1354 = vmatpush.xpose.msra.mxu0 %v456
        %1355 = vmatpush.xpose.msra.mxu0 %v453
        %1356 = vmatpush.xpose.msra.mxu0 %v450
        %1357 = vmatpush.xpose.msra.mxu0 %v447
        %1358 = vmatmul.f32.gmra.mxu0 %v1340
        %v1359 = vpop.f32.mrf.mxu0
        %v1360 = vadd.f32 0.0, %v1359
        %1361 = vdwg.mxu0
        %v1362 = vrot.slane %v490, 1
        %v1364 = vmul.f32 %v1360, %v1362
        %v1366 = vrot.slane %v1364, 1
        %v1368 = vmul.f32 %v1360, %v1366
        %v1370 = vrot.slane %v1368, 5
        %v1372 = vsub.f32 %v337, %v1370
        %v1373 = vld [vmem:[#allocation4] sm:$0xff]
        %v1374 = vld [vmem:[#allocation4 + $0x8] sm:$0xff]
        %v1375 = vld [vmem:[#allocation4 + $0x10] sm:$0xff]
        %v1376 = vld [vmem:[#allocation4 + $0x18] sm:$0xff]
        %v1377 = vld [vmem:[#allocation4 + $0x20] sm:$0xff]
        %v1378 = vld [vmem:[#allocation4 + $0x28] sm:$0xff]
        %v1379 = vld [vmem:[#allocation4 + $0x30] sm:$0xff]
        %v1380 = vld [vmem:[#allocation4 + $0x38] sm:$0xff]
        %v1381 = vperm.slane %v1364, 1
        %v1382 = vmul.f32 %v1373, %v1381
        %v1383 = vmul.f32 %v1374, %v1381
        %v1384 = vmul.f32 %v1375, %v1381
        %v1385 = vmul.f32 %v1376, %v1381
        %v1386 = vmul.f32 %v1377, %v1381
        %v1387 = vmul.f32 %v1378, %v1381
        %v1388 = vmul.f32 %v1379, %v1381
        %v1389 = vmul.f32 %v1380, %v1381
        %v1390 = vperm.slane %v1372, 3
        %v1391 = vadd.f32 %v1382, %v1390
        %v1392 = vadd.f32 %v1383, %v1390
        %v1393 = vadd.f32 %v1384, %v1390
        %v1394 = vadd.f32 %v1385, %v1390
        %v1395 = vadd.f32 %v1386, %v1390
        %v1396 = vadd.f32 %v1387, %v1390
        %v1397 = vadd.f32 %v1388, %v1390
        %v1398 = vadd.f32 %v1389, %v1390
        %v1399 = vpack.c.bf16 %v1392, %v1391
        %v1400 = vpack.c.bf16 %v1394, %v1393
        %v1401 = vpack.c.bf16 %v1396, %v1395
        %v1402 = vpack.c.bf16 %v1398, %v1397
        %v1403 = vld [vmem:[#allocation8] sm:$0xff]
        %v1404 = vld [vmem:[#allocation8 + $0x8] sm:$0xff]
        %v1405 = vld [vmem:[#allocation8 + $0x10] sm:$0xff]
        %v1406 = vld [vmem:[#allocation8 + $0x18] sm:$0xff]
        %v1407 = vld [vmem:[#allocation8 + $0x20] sm:$0xff]
        %v1408 = vld [vmem:[#allocation8 + $0x28] sm:$0xff]
        %v1409 = vld [vmem:[#allocation8 + $0x30] sm:$0xff]
        %v1410 = vld [vmem:[#allocation8 + $0x38] sm:$0xff]
        %v1419 = vunpack.c.l.b16 %v1403
        %v1420 = vunpack.c.h.b16 %v1403
        %v1421 = vunpack.c.l.b16 %v1404
        %v1422 = vunpack.c.h.b16 %v1404
        %v1423 = vunpack.c.l.b16 %v1405
        %v1424 = vunpack.c.h.b16 %v1405
        %v1425 = vunpack.c.l.b16 %v1406
        %v1426 = vunpack.c.h.b16 %v1406
        %v1427 = vunpack.c.l.b16 %v1407
        %v1428 = vunpack.c.h.b16 %v1407
        %v1429 = vunpack.c.l.b16 %v1408
        %v1430 = vunpack.c.h.b16 %v1408
        %v1431 = vunpack.c.l.b16 %v1409
        %v1432 = vunpack.c.h.b16 %v1409
        %v1433 = vunpack.c.l.b16 %v1410
        %v1434 = vunpack.c.h.b16 %v1410
        %v1435 = vpack.c.b16 %v1421, %v1419
        %v1436 = vpack.c.b16 %v1422, %v1420
        %v1437 = vpack.c.b16 %v1425, %v1423
        %v1438 = vpack.c.b16 %v1426, %v1424
        %v1439 = vpack.c.b16 %v1429, %v1427
        %v1440 = vpack.c.b16 %v1430, %v1428
        %v1441 = vpack.c.b16 %v1433, %v1431
        %v1442 = vpack.c.b16 %v1434, %v1432
        %v1452 = vsel %vm346, %v1399, 0
        %v1455 = vsel %vm346, %v1400, 0
        %v1458 = vsel %vm346, %v1401, 0
        %v1461 = vsel %vm346, %v1402, 0
        %1463 = vmatpush.bf16.msra.mxu0 0
        %1464 = vmatpush.bf16.msra.mxu0 0
        %1465 = vmatpush.bf16.msra.mxu0 0
        %1466 = vmatpush.bf16.msra.mxu0 0
        %1467 = vmatpush.bf16.msra.mxu0 %v1441
        %1468 = vmatpush.bf16.msra.mxu0 %v1439
        %1469 = vmatpush.bf16.msra.mxu0 %v1437
        %1470 = vmatpush.bf16.msra.mxu0 %v1435
        %1471 = vmatmul.bf16.gmra.mxu0 %v1452
        %v1472 = vpop.f32.mrf.mxu0
        %v1473 = vadd.f32 0.0, %v1472
        %v1474 = vpop.f32.mrf.mxu0
        %v1475 = vadd.f32 0.0, %v1474
        %1476 = vmatmul.bf16.gmra.mxu0 %v1455
        %v1477 = vpop.f32.mrf.mxu0
        %v1478 = vadd.f32 0.0, %v1477
        %v1479 = vpop.f32.mrf.mxu0
        %v1480 = vadd.f32 0.0, %v1479
        %1481 = vmatmul.bf16.gmra.mxu0 %v1458
        %v1482 = vpop.f32.mrf.mxu0
        %v1483 = vadd.f32 0.0, %v1482
        %v1484 = vpop.f32.mrf.mxu0
        %v1485 = vadd.f32 0.0, %v1484
        %1486 = vmatmul.bf16.gmra.mxu0 %v1461
        %v1487 = vpop.f32.mrf.mxu0
        %v1488 = vadd.f32 0.0, %v1487
        %v1489 = vpop.f32.mrf.mxu0
        %v1490 = vadd.f32 0.0, %v1489
        %1491 = vdwg.mxu0
        %1492 = vmatpush.bf16.msra.mxu0 0
        %1493 = vmatpush.bf16.msra.mxu0 0
        %1494 = vmatpush.bf16.msra.mxu0 0
        %1495 = vmatpush.bf16.msra.mxu0 0
        %1496 = vmatpush.bf16.msra.mxu0 %v1442
        %1497 = vmatpush.bf16.msra.mxu0 %v1440
        %1498 = vmatpush.bf16.msra.mxu0 %v1438
        %1499 = vmatpush.bf16.msra.mxu0 %v1436
        %1500 = vmatmul.bf16.gmra.mxu0 %v1452
        %v1501 = vpop.f32.mrf.mxu0
        %v1502 = vadd.f32 0.0, %v1501
        %v1503 = vpop.f32.mrf.mxu0
        %v1504 = vadd.f32 0.0, %v1503
        %1505 = vmatmul.bf16.gmra.mxu0 %v1455
        %v1506 = vpop.f32.mrf.mxu0
        %v1507 = vadd.f32 0.0, %v1506
        %v1508 = vpop.f32.mrf.mxu0
        %v1509 = vadd.f32 0.0, %v1508
        %1510 = vmatmul.bf16.gmra.mxu0 %v1458
        %v1511 = vpop.f32.mrf.mxu0
        %v1512 = vadd.f32 0.0, %v1511
        %v1513 = vpop.f32.mrf.mxu0
        %v1514 = vadd.f32 0.0, %v1513
        %1515 = vmatmul.bf16.gmra.mxu0 %v1461
        %v1516 = vpop.f32.mrf.mxu0
        %v1517 = vadd.f32 0.0, %v1516
        %v1518 = vpop.f32.mrf.mxu0
        %v1519 = vadd.f32 0.0, %v1518
        %1520 = vdwg.mxu0
        %v1521 = vxor.u32 %v1473, 2147483648
        %v1522 = vxor.u32 %v1502, 2147483648
        %v1523 = vxor.u32 %v1475, 2147483648
        %v1524 = vxor.u32 %v1504, 2147483648
        %v1525 = vxor.u32 %v1478, 2147483648
        %v1526 = vxor.u32 %v1507, 2147483648
        %v1527 = vxor.u32 %v1480, 2147483648
        %v1528 = vxor.u32 %v1509, 2147483648
        %v1529 = vxor.u32 %v1483, 2147483648
        %v1530 = vxor.u32 %v1512, 2147483648
        %v1531 = vxor.u32 %v1485, 2147483648
        %v1532 = vxor.u32 %v1514, 2147483648
        %v1533 = vxor.u32 %v1488, 2147483648
        %v1534 = vxor.u32 %v1517, 2147483648
        %v1535 = vxor.u32 %v1490, 2147483648
        %v1536 = vxor.u32 %v1519, 2147483648
        %v1537 = vmul.f32 %v1521, 1.442695
        %v1538 = vpow.pop %v1537
        %v1539 = vmul.f32 %v1522, 1.442695
        %v1540 = vpow.pop %v1539
        %v1541 = vmul.f32 %v1523, 1.442695
        %v1542 = vpow.pop %v1541
        %v1543 = vmul.f32 %v1524, 1.442695
        %v1544 = vpow.pop %v1543
        %v1545 = vmul.f32 %v1525, 1.442695
        %v1546 = vpow.pop %v1545
        %v1547 = vmul.f32 %v1526, 1.442695
        %v1548 = vpow.pop %v1547
        %v1549 = vmul.f32 %v1527, 1.442695
        %v1550 = vpow.pop %v1549
        %v1551 = vmul.f32 %v1528, 1.442695
        %v1552 = vpow.pop %v1551
        %v1553 = vmul.f32 %v1529, 1.442695
        %v1554 = vpow.pop %v1553
        %v1555 = vmul.f32 %v1530, 1.442695
        %v1556 = vpow.pop %v1555
        %v1557 = vmul.f32 %v1531, 1.442695
        %v1558 = vpow.pop %v1557
        %v1559 = vmul.f32 %v1532, 1.442695
        %v1560 = vpow.pop %v1559
        %v1561 = vmul.f32 %v1533, 1.442695
        %v1562 = vpow.pop %v1561
        %v1563 = vmul.f32 %v1534, 1.442695
        %v1564 = vpow.pop %v1563
        %v1565 = vmul.f32 %v1535, 1.442695
        %v1566 = vpow.pop %v1565
        %v1567 = vmul.f32 %v1536, 1.442695
        %v1568 = vpow.pop %v1567
        %v1569 = vadd.f32 %v1538, 1.0
        %v1570 = vadd.f32 %v1540, 1.0
        %v1571 = vadd.f32 %v1542, 1.0
        %v1572 = vadd.f32 %v1544, 1.0
        %v1573 = vadd.f32 %v1546, 1.0
        %v1574 = vadd.f32 %v1548, 1.0
        %v1575 = vadd.f32 %v1550, 1.0
        %v1576 = vadd.f32 %v1552, 1.0
        %v1577 = vadd.f32 %v1554, 1.0
        %v1578 = vadd.f32 %v1556, 1.0
        %v1579 = vadd.f32 %v1558, 1.0
        %v1580 = vadd.f32 %v1560, 1.0
        %v1581 = vadd.f32 %v1562, 1.0
        %v1582 = vadd.f32 %v1564, 1.0
        %v1583 = vadd.f32 %v1566, 1.0
        %v1584 = vadd.f32 %v1568, 1.0
        %v1585 = vrcp.pop %v1569
        %v1586 = vmul.f32 %v1569, %v1585
        %v1587 = vsub.f32 1.0, %v1586
        %v1588 = vmul.f32 %v1585, %v1587
        %v1589 = vadd.f32 %v1585, %v1588
        %vm1590 = vweird.f32 %v1569
        %vm1591 = vweird.f32 %v1585
        %vm1592 = vmor %vm1590, %vm1591
        %v1593 = vsel %vm1592, %v1585, %v1589
        %v1594 = vand.u32 2147483647, %v1569
        %vm1595 = vcmp.eq.f32.partialorder %v1594, 8.507059e+37
        %v1596 = vand.u32 %v1569, 2147483648
        %v1597 = vor.u32 1.1754944e-38, %v1596
        %v1598 = vsel %vm1595, %v1597, %v1593
        %v1599 = vmul.f32 1.0, %v1598
        %v1600 = vrcp.pop %v1570
        %v1601 = vmul.f32 %v1570, %v1600
        %v1602 = vsub.f32 1.0, %v1601
        %v1603 = vmul.f32 %v1600, %v1602
        %v1604 = vadd.f32 %v1600, %v1603
        %vm1605 = vweird.f32 %v1570
        %vm1606 = vweird.f32 %v1600
        %vm1607 = vmor %vm1605, %vm1606
        %v1608 = vsel %vm1607, %v1600, %v1604
        %v1609 = vand.u32 2147483647, %v1570
        %vm1610 = vcmp.eq.f32.partialorder %v1609, 8.507059e+37
        %v1611 = vand.u32 %v1570, 2147483648
        %v1612 = vor.u32 1.1754944e-38, %v1611
        %v1613 = vsel %vm1610, %v1612, %v1608
        %v1614 = vmul.f32 1.0, %v1613
        %v1615 = vrcp.pop %v1571
        %v1616 = vmul.f32 %v1571, %v1615
        %v1617 = vsub.f32 1.0, %v1616
        %v1618 = vmul.f32 %v1615, %v1617
        %v1619 = vadd.f32 %v1615, %v1618
        %vm1620 = vweird.f32 %v1571
        %vm1621 = vweird.f32 %v1615
        %vm1622 = vmor %vm1620, %vm1621
        %v1623 = vsel %vm1622, %v1615, %v1619
        %v1624 = vand.u32 2147483647, %v1571
        %vm1625 = vcmp.eq.f32.partialorder %v1624, 8.507059e+37
        %v1626 = vand.u32 %v1571, 2147483648
        %v1627 = vor.u32 1.1754944e-38, %v1626
        %v1628 = vsel %vm1625, %v1627, %v1623
        %v1629 = vmul.f32 1.0, %v1628
        %v1630 = vrcp.pop %v1572
        %v1631 = vmul.f32 %v1572, %v1630
        %v1632 = vsub.f32 1.0, %v1631
        %v1633 = vmul.f32 %v1630, %v1632
        %v1634 = vadd.f32 %v1630, %v1633
        %vm1635 = vweird.f32 %v1572
        %vm1636 = vweird.f32 %v1630
        %vm1637 = vmor %vm1635, %vm1636
        %v1638 = vsel %vm1637, %v1630, %v1634
        %v1639 = vand.u32 2147483647, %v1572
        %vm1640 = vcmp.eq.f32.partialorder %v1639, 8.507059e+37
        %v1641 = vand.u32 %v1572, 2147483648
        %v1642 = vor.u32 1.1754944e-38, %v1641
        %v1643 = vsel %vm1640, %v1642, %v1638
        %v1644 = vmul.f32 1.0, %v1643
        %v1645 = vrcp.pop %v1573
        %v1646 = vmul.f32 %v1573, %v1645
        %v1647 = vsub.f32 1.0, %v1646
        %v1648 = vmul.f32 %v1645, %v1647
        %v1649 = vadd.f32 %v1645, %v1648
        %vm1650 = vweird.f32 %v1573
        %vm1651 = vweird.f32 %v1645
        %vm1652 = vmor %vm1650, %vm1651
        %v1653 = vsel %vm1652, %v1645, %v1649
        %v1654 = vand.u32 2147483647, %v1573
        %vm1655 = vcmp.eq.f32.partialorder %v1654, 8.507059e+37
        %v1656 = vand.u32 %v1573, 2147483648
        %v1657 = vor.u32 1.1754944e-38, %v1656
        %v1658 = vsel %vm1655, %v1657, %v1653
        %v1659 = vmul.f32 1.0, %v1658
        %v1660 = vrcp.pop %v1574
        %v1661 = vmul.f32 %v1574, %v1660
        %v1662 = vsub.f32 1.0, %v1661
        %v1663 = vmul.f32 %v1660, %v1662
        %v1664 = vadd.f32 %v1660, %v1663
        %vm1665 = vweird.f32 %v1574
        %vm1666 = vweird.f32 %v1660
        %vm1667 = vmor %vm1665, %vm1666
        %v1668 = vsel %vm1667, %v1660, %v1664
        %v1669 = vand.u32 2147483647, %v1574
        %vm1670 = vcmp.eq.f32.partialorder %v1669, 8.507059e+37
        %v1671 = vand.u32 %v1574, 2147483648
        %v1672 = vor.u32 1.1754944e-38, %v1671
        %v1673 = vsel %vm1670, %v1672, %v1668
        %v1674 = vmul.f32 1.0, %v1673
        %v1675 = vrcp.pop %v1575
        %v1676 = vmul.f32 %v1575, %v1675
        %v1677 = vsub.f32 1.0, %v1676
        %v1678 = vmul.f32 %v1675, %v1677
        %v1679 = vadd.f32 %v1675, %v1678
        %vm1680 = vweird.f32 %v1575
        %vm1681 = vweird.f32 %v1675
        %vm1682 = vmor %vm1680, %vm1681
        %v1683 = vsel %vm1682, %v1675, %v1679
        %v1684 = vand.u32 2147483647, %v1575
        %vm1685 = vcmp.eq.f32.partialorder %v1684, 8.507059e+37
        %v1686 = vand.u32 %v1575, 2147483648
        %v1687 = vor.u32 1.1754944e-38, %v1686
        %v1688 = vsel %vm1685, %v1687, %v1683
        %v1689 = vmul.f32 1.0, %v1688
        %v1690 = vrcp.pop %v1576
        %v1691 = vmul.f32 %v1576, %v1690
        %v1692 = vsub.f32 1.0, %v1691
        %v1693 = vmul.f32 %v1690, %v1692
        %v1694 = vadd.f32 %v1690, %v1693
        %vm1695 = vweird.f32 %v1576
        %vm1696 = vweird.f32 %v1690
        %vm1697 = vmor %vm1695, %vm1696
        %v1698 = vsel %vm1697, %v1690, %v1694
        %v1699 = vand.u32 2147483647, %v1576
        %vm1700 = vcmp.eq.f32.partialorder %v1699, 8.507059e+37
        %v1701 = vand.u32 %v1576, 2147483648
        %v1702 = vor.u32 1.1754944e-38, %v1701
        %v1703 = vsel %vm1700, %v1702, %v1698
        %v1704 = vmul.f32 1.0, %v1703
        %v1705 = vrcp.pop %v1577
        %v1706 = vmul.f32 %v1577, %v1705
        %v1707 = vsub.f32 1.0, %v1706
        %v1708 = vmul.f32 %v1705, %v1707
        %v1709 = vadd.f32 %v1705, %v1708
        %vm1710 = vweird.f32 %v1577
        %vm1711 = vweird.f32 %v1705
        %vm1712 = vmor %vm1710, %vm1711
        %v1713 = vsel %vm1712, %v1705, %v1709
        %v1714 = vand.u32 2147483647, %v1577
        %vm1715 = vcmp.eq.f32.partialorder %v1714, 8.507059e+37
        %v1716 = vand.u32 %v1577, 2147483648
        %v1717 = vor.u32 1.1754944e-38, %v1716
        %v1718 = vsel %vm1715, %v1717, %v1713
        %v1719 = vmul.f32 1.0, %v1718
        %v1720 = vrcp.pop %v1578
        %v1721 = vmul.f32 %v1578, %v1720
        %v1722 = vsub.f32 1.0, %v1721
        %v1723 = vmul.f32 %v1720, %v1722
        %v1724 = vadd.f32 %v1720, %v1723
        %vm1725 = vweird.f32 %v1578
        %vm1726 = vweird.f32 %v1720
        %vm1727 = vmor %vm1725, %vm1726
        %v1728 = vsel %vm1727, %v1720, %v1724
        %v1729 = vand.u32 2147483647, %v1578
        %vm1730 = vcmp.eq.f32.partialorder %v1729, 8.507059e+37
        %v1731 = vand.u32 %v1578, 2147483648
        %v1732 = vor.u32 1.1754944e-38, %v1731
        %v1733 = vsel %vm1730, %v1732, %v1728
        %v1734 = vmul.f32 1.0, %v1733
        %v1735 = vrcp.pop %v1579
        %v1736 = vmul.f32 %v1579, %v1735
        %v1737 = vsub.f32 1.0, %v1736
        %v1738 = vmul.f32 %v1735, %v1737
        %v1739 = vadd.f32 %v1735, %v1738
        %vm1740 = vweird.f32 %v1579
        %vm1741 = vweird.f32 %v1735
        %vm1742 = vmor %vm1740, %vm1741
        %v1743 = vsel %vm1742, %v1735, %v1739
        %v1744 = vand.u32 2147483647, %v1579
        %vm1745 = vcmp.eq.f32.partialorder %v1744, 8.507059e+37
        %v1746 = vand.u32 %v1579, 2147483648
        %v1747 = vor.u32 1.1754944e-38, %v1746
        %v1748 = vsel %vm1745, %v1747, %v1743
        %v1749 = vmul.f32 1.0, %v1748
        %v1750 = vrcp.pop %v1580
        %v1751 = vmul.f32 %v1580, %v1750
        %v1752 = vsub.f32 1.0, %v1751
        %v1753 = vmul.f32 %v1750, %v1752
        %v1754 = vadd.f32 %v1750, %v1753
        %vm1755 = vweird.f32 %v1580
        %vm1756 = vweird.f32 %v1750
        %vm1757 = vmor %vm1755, %vm1756
        %v1758 = vsel %vm1757, %v1750, %v1754
        %v1759 = vand.u32 2147483647, %v1580
        %vm1760 = vcmp.eq.f32.partialorder %v1759, 8.507059e+37
        %v1761 = vand.u32 %v1580, 2147483648
        %v1762 = vor.u32 1.1754944e-38, %v1761
        %v1763 = vsel %vm1760, %v1762, %v1758
        %v1764 = vmul.f32 1.0, %v1763
        %v1765 = vrcp.pop %v1581
        %v1766 = vmul.f32 %v1581, %v1765
        %v1767 = vsub.f32 1.0, %v1766
        %v1768 = vmul.f32 %v1765, %v1767
        %v1769 = vadd.f32 %v1765, %v1768
        %vm1770 = vweird.f32 %v1581
        %vm1771 = vweird.f32 %v1765
        %vm1772 = vmor %vm1770, %vm1771
        %v1773 = vsel %vm1772, %v1765, %v1769
        %v1774 = vand.u32 2147483647, %v1581
        %vm1775 = vcmp.eq.f32.partialorder %v1774, 8.507059e+37
        %v1776 = vand.u32 %v1581, 2147483648
        %v1777 = vor.u32 1.1754944e-38, %v1776
        %v1778 = vsel %vm1775, %v1777, %v1773
        %v1779 = vmul.f32 1.0, %v1778
        %v1780 = vrcp.pop %v1582
        %v1781 = vmul.f32 %v1582, %v1780
        %v1782 = vsub.f32 1.0, %v1781
        %v1783 = vmul.f32 %v1780, %v1782
        %v1784 = vadd.f32 %v1780, %v1783
        %vm1785 = vweird.f32 %v1582
        %vm1786 = vweird.f32 %v1780
        %vm1787 = vmor %vm1785, %vm1786
        %v1788 = vsel %vm1787, %v1780, %v1784
        %v1789 = vand.u32 2147483647, %v1582
        %vm1790 = vcmp.eq.f32.partialorder %v1789, 8.507059e+37
        %v1791 = vand.u32 %v1582, 2147483648
        %v1792 = vor.u32 1.1754944e-38, %v1791
        %v1793 = vsel %vm1790, %v1792, %v1788
        %v1794 = vmul.f32 1.0, %v1793
        %v1795 = vrcp.pop %v1583
        %v1796 = vmul.f32 %v1583, %v1795
        %v1797 = vsub.f32 1.0, %v1796
        %v1798 = vmul.f32 %v1795, %v1797
        %v1799 = vadd.f32 %v1795, %v1798
        %vm1800 = vweird.f32 %v1583
        %vm1801 = vweird.f32 %v1795
        %vm1802 = vmor %vm1800, %vm1801
        %v1803 = vsel %vm1802, %v1795, %v1799
        %v1804 = vand.u32 2147483647, %v1583
        %vm1805 = vcmp.eq.f32.partialorder %v1804, 8.507059e+37
        %v1806 = vand.u32 %v1583, 2147483648
        %v1807 = vor.u32 1.1754944e-38, %v1806
        %v1808 = vsel %vm1805, %v1807, %v1803
        %v1809 = vmul.f32 1.0, %v1808
        %v1810 = vrcp.pop %v1584
        %v1811 = vmul.f32 %v1584, %v1810
        %v1812 = vsub.f32 1.0, %v1811
        %v1813 = vmul.f32 %v1810, %v1812
        %v1814 = vadd.f32 %v1810, %v1813
        %vm1815 = vweird.f32 %v1584
        %vm1816 = vweird.f32 %v1810
        %vm1817 = vmor %vm1815, %vm1816
        %v1818 = vsel %vm1817, %v1810, %v1814
        %v1819 = vand.u32 2147483647, %v1584
        %vm1820 = vcmp.eq.f32.partialorder %v1819, 8.507059e+37
        %v1821 = vand.u32 %v1584, 2147483648
        %v1822 = vor.u32 1.1754944e-38, %v1821
        %v1823 = vsel %vm1820, %v1822, %v1818
        %v1824 = vmul.f32 1.0, %v1823
        %v1825 = vmul.f32 %v1473, %v1599
        %v1826 = vmul.f32 %v1502, %v1614
        %v1827 = vmul.f32 %v1475, %v1629
        %v1828 = vmul.f32 %v1504, %v1644
        %v1829 = vmul.f32 %v1478, %v1659
        %v1830 = vmul.f32 %v1507, %v1674
        %v1831 = vmul.f32 %v1480, %v1689
        %v1832 = vmul.f32 %v1509, %v1704
        %v1833 = vmul.f32 %v1483, %v1719
        %v1834 = vmul.f32 %v1512, %v1734
        %v1835 = vmul.f32 %v1485, %v1749
        %v1836 = vmul.f32 %v1514, %v1764
        %v1837 = vmul.f32 %v1488, %v1779
        %v1838 = vmul.f32 %v1517, %v1794
        %v1839 = vmul.f32 %v1490, %v1809
        %v1840 = vmul.f32 %v1519, %v1824
        %v1841 = vpack.c.bf16 %v1827, %v1825
        %v1842 = vpack.c.bf16 %v1828, %v1826
        %v1843 = vpack.c.bf16 %v1831, %v1829
        %v1844 = vpack.c.bf16 %v1832, %v1830
        %v1845 = vpack.c.bf16 %v1835, %v1833
        %v1846 = vpack.c.bf16 %v1836, %v1834
        %v1847 = vpack.c.bf16 %v1839, %v1837
        %v1848 = vpack.c.bf16 %v1840, %v1838
        %v1849 = vld [vmem:[%s6] sm:$0xf]
        %v1850 = vld [vmem:[%s6 + $0x4] sm:$0xf]
        %v1851 = vld [vmem:[%s6 + $0x8] sm:$0xf]
        %v1852 = vld [vmem:[%s6 + $0xc] sm:$0xf]
        %v1853 = vld [vmem:[%s6 + $0x10] sm:$0xf]
        %v1854 = vld [vmem:[%s6 + $0x14] sm:$0xf]
        %v1855 = vld [vmem:[%s6 + $0x18] sm:$0xf]
        %v1856 = vld [vmem:[%s6 + $0x1c] sm:$0xf]
        %v1857 = vld [vmem:[%s6 + $0x20] sm:$0xf]
        %v1858 = vld [vmem:[%s6 + $0x24] sm:$0xf]
        %v1859 = vld [vmem:[%s6 + $0x28] sm:$0xf]
        %v1860 = vld [vmem:[%s6 + $0x2c] sm:$0xf]
        %v1861 = vld [vmem:[%s6 + $0x30] sm:$0xf]
        %v1862 = vld [vmem:[%s6 + $0x34] sm:$0xf]
        %v1863 = vld [vmem:[%s6 + $0x38] sm:$0xf]
        %v1864 = vld [vmem:[%s6 + $0x3c] sm:$0xf]
        %v1865 = vld [vmem:[%s6 + $0x40] sm:$0xf]
        %v1866 = vld [vmem:[%s6 + $0x44] sm:$0xf]
        %v1867 = vld [vmem:[%s6 + $0x48] sm:$0xf]
        %v1868 = vld [vmem:[%s6 + $0x4c] sm:$0xf]
        %v1869 = vld [vmem:[%s6 + $0x50] sm:$0xf]
        %v1870 = vld [vmem:[%s6 + $0x54] sm:$0xf]
        %v1871 = vld [vmem:[%s6 + $0x58] sm:$0xf]
        %v1872 = vld [vmem:[%s6 + $0x5c] sm:$0xf]
        %v1873 = vld [vmem:[%s6 + $0x60] sm:$0xf]
        %v1874 = vld [vmem:[%s6 + $0x64] sm:$0xf]
        %v1875 = vld [vmem:[%s6 + $0x68] sm:$0xf]
        %v1876 = vld [vmem:[%s6 + $0x6c] sm:$0xf]
        %v1877 = vld [vmem:[%s6 + $0x70] sm:$0xf]
        %v1878 = vld [vmem:[%s6 + $0x74] sm:$0xf]
        %v1879 = vld [vmem:[%s6 + $0x78] sm:$0xf]
        %v1880 = vld [vmem:[%s6 + $0x7c] sm:$0xf]
        %v1913 = vunpack.c.l.b16 %v1849
        %v1914 = vunpack.c.l.b16 %v1850
        %v1915 = vunpack.c.l.b16 %v1851
        %v1916 = vunpack.c.l.b16 %v1852
        %v1917 = vunpack.c.l.b16 %v1853
        %v1918 = vunpack.c.l.b16 %v1854
        %v1919 = vunpack.c.l.b16 %v1855
        %v1920 = vunpack.c.l.b16 %v1856
        %v1921 = vunpack.c.l.b16 %v1857
        %v1922 = vunpack.c.l.b16 %v1858
        %v1923 = vunpack.c.l.b16 %v1859
        %v1924 = vunpack.c.l.b16 %v1860
        %v1925 = vunpack.c.l.b16 %v1861
        %v1926 = vunpack.c.l.b16 %v1862
        %v1927 = vunpack.c.l.b16 %v1863
        %v1928 = vunpack.c.l.b16 %v1864
        %v1929 = vunpack.c.l.b16 %v1865
        %v1930 = vunpack.c.l.b16 %v1866
        %v1931 = vunpack.c.l.b16 %v1867
        %v1932 = vunpack.c.l.b16 %v1868
        %v1933 = vunpack.c.l.b16 %v1869
        %v1934 = vunpack.c.l.b16 %v1870
        %v1935 = vunpack.c.l.b16 %v1871
        %v1936 = vunpack.c.l.b16 %v1872
        %v1937 = vunpack.c.l.b16 %v1873
        %v1938 = vunpack.c.l.b16 %v1874
        %v1939 = vunpack.c.l.b16 %v1875
        %v1940 = vunpack.c.l.b16 %v1876
        %v1941 = vunpack.c.l.b16 %v1877
        %v1942 = vunpack.c.l.b16 %v1878
        %v1943 = vunpack.c.l.b16 %v1879
        %v1944 = vunpack.c.l.b16 %v1880
        %v1945 = vpack.c.b16 %v1914, %v1913
        %v1946 = vpack.c.b16 %v1916, %v1915
        %v1947 = vpack.c.b16 %v1918, %v1917
        %v1948 = vpack.c.b16 %v1920, %v1919
        %v1949 = vpack.c.b16 %v1922, %v1921
        %v1950 = vpack.c.b16 %v1924, %v1923
        %v1951 = vpack.c.b16 %v1926, %v1925
        %v1952 = vpack.c.b16 %v1928, %v1927
        %v1953 = vpack.c.b16 %v1930, %v1929
        %v1954 = vpack.c.b16 %v1932, %v1931
        %v1955 = vpack.c.b16 %v1934, %v1933
        %v1956 = vpack.c.b16 %v1936, %v1935
        %v1957 = vpack.c.b16 %v1938, %v1937
        %v1958 = vpack.c.b16 %v1940, %v1939
        %v1959 = vpack.c.b16 %v1942, %v1941
        %v1960 = vpack.c.b16 %v1944, %v1943
        %1977 = vmatpush.bf16.msra.mxu0 %v1952
        %1978 = vmatpush.bf16.msra.mxu0 %v1951
        %1979 = vmatpush.bf16.msra.mxu0 %v1950
        %1980 = vmatpush.bf16.msra.mxu0 %v1949
        %1981 = vmatpush.bf16.msra.mxu0 %v1948
        %1982 = vmatpush.bf16.msra.mxu0 %v1947
        %1983 = vmatpush.bf16.msra.mxu0 %v1946
        %1984 = vmatpush.bf16.msra.mxu0 %v1945
        %1985 = vmatmul.bf16.gmra.mxu0 %v1841
        %v1986 = vpop.f32.mrf.mxu0
        %v1987 = vadd.f32 0.0, %v1986
        %v1988 = vpop.f32.mrf.mxu0
        %v1989 = vadd.f32 0.0, %v1988
        %1990 = vmatmul.bf16.gmra.mxu0 %v1843
        %v1991 = vpop.f32.mrf.mxu0
        %v1992 = vadd.f32 0.0, %v1991
        %v1993 = vpop.f32.mrf.mxu0
        %v1994 = vadd.f32 0.0, %v1993
        %1995 = vmatmul.bf16.gmra.mxu0 %v1845
        %v1996 = vpop.f32.mrf.mxu0
        %v1997 = vadd.f32 0.0, %v1996
        %v1998 = vpop.f32.mrf.mxu0
        %v1999 = vadd.f32 0.0, %v1998
        %2000 = vmatmul.bf16.gmra.mxu0 %v1847
        %v2001 = vpop.f32.mrf.mxu0
        %v2002 = vadd.f32 0.0, %v2001
        %v2003 = vpop.f32.mrf.mxu0
        %v2004 = vadd.f32 0.0, %v2003
        %2005 = vdwg.mxu0
        %2006 = vmatpush.bf16.msra.mxu0 %v1960
        %2007 = vmatpush.bf16.msra.mxu0 %v1959
        %2008 = vmatpush.bf16.msra.mxu0 %v1958
        %2009 = vmatpush.bf16.msra.mxu0 %v1957
        %2010 = vmatpush.bf16.msra.mxu0 %v1956
        %2011 = vmatpush.bf16.msra.mxu0 %v1955
        %2012 = vmatpush.bf16.msra.mxu0 %v1954
        %2013 = vmatpush.bf16.msra.mxu0 %v1953
        %2014 = vmatmul.bf16.gmra.mxu0 %v1842
        %v2015 = vpop.f32.mrf.mxu0
        %v2016 = vadd.f32 %v1987, %v2015
        %v2017 = vpop.f32.mrf.mxu0
        %v2018 = vadd.f32 %v1989, %v2017
        %2019 = vmatmul.bf16.gmra.mxu0 %v1844
        %v2020 = vpop.f32.mrf.mxu0
        %v2021 = vadd.f32 %v1992, %v2020
        %v2022 = vpop.f32.mrf.mxu0
        %v2023 = vadd.f32 %v1994, %v2022
        %2024 = vmatmul.bf16.gmra.mxu0 %v1846
        %v2025 = vpop.f32.mrf.mxu0
        %v2026 = vadd.f32 %v1997, %v2025
        %v2027 = vpop.f32.mrf.mxu0
        %v2028 = vadd.f32 %v1999, %v2027
        %2029 = vmatmul.bf16.gmra.mxu0 %v1848
        %v2030 = vpop.f32.mrf.mxu0
        %v2031 = vadd.f32 %v2002, %v2030
        %v2032 = vpop.f32.mrf.mxu0
        %v2033 = vadd.f32 %v2004, %v2032
        %2034 = vdwg.mxu0
        %v2035 = vadd.f32 %v1373, %v2016
        %v2036 = vadd.f32 %v1374, %v2018
        %v2037 = vadd.f32 %v1375, %v2021
        %v2038 = vadd.f32 %v1376, %v2023
        %v2039 = vadd.f32 %v1377, %v2026
        %v2040 = vadd.f32 %v1378, %v2028
        %v2041 = vadd.f32 %v1379, %v2031
        %v2042 = vadd.f32 %v1380, %v2033
        %2043 = vst.msk [vmem:[%s318] sm:$0xff] %vm346, %v2035
        %2044 = vst.msk [vmem:[%s318 + $0x8] sm:$0xff] %vm346, %v2036
        %2045 = vst.msk [vmem:[%s318 + $0x10] sm:$0xff] %vm346, %v2037
        %2046 = vst.msk [vmem:[%s318 + $0x18] sm:$0xff] %vm346, %v2038
        %2047 = vst.msk [vmem:[%s318 + $0x20] sm:$0xff] %vm346, %v2039
        %2048 = vst.msk [vmem:[%s318 + $0x28] sm:$0xff] %vm346, %v2040
        %2049 = vst.msk [vmem:[%s318 + $0x30] sm:$0xff] %vm346, %v2041
        %2050 = vst.msk [vmem:[%s318 + $0x38] sm:$0xff] %vm346, %v2042
        %s2051 = sand.u32 %s188, 1
        %s2052 = scalar_lea.sflag [#allocation7], %s2051
        %s2053 = sand.u32 %s188, 1
        %s2054 = smul.addr %s2053, 64
        %s2055 = scalar_lea.vmem [#allocation10], %s2054
        // Predicated region
        $region71: #{tpu_custom_call.1} parent=47 // pred_check
          %p2056 = pneg %p198
        $region72: #{tpu_custom_call.1} parent=47 // pred_check_branch
          %2058 = sbr.rel (%p2056) target = $region74
        $region73: #{tpu_custom_call.1} parent=47 // pred_region
          %2060 = vsyncadd %s2052, 0
          %s2061 = smul.addr %s23, 8
          %s2062 = smul.addr %s2061, 8
          %s2063 = scalar_lea.hbm %s7, %s2062
          %s2064 = sshll.u32 %s2055, 4
          %s2065 = int_to_ptr.vmem [resolvable:$true] %s2064
          %s2066 = sshll.u32 %s2063, 4
          %s2067 = int_to_ptr.hbm [resolvable:$true] %s2066
          %2072 = dma.vmem_to_hbm [thread:$0]  %s2065, 1024, %s2067, %s2052, 128, 128, 8
        $region74: #{tpu_custom_call.1} parent=47 // pred_fallthru
          _
      $region48: #{tpu_custom_call.1} parent=5 // pred_fallthru
        _
      %p2073 = scmp.le.s32.totalorder 2, %s18
      // Predicated region
      $region75: #{tpu_custom_call.1} parent=5 // pred_check
        %p2074 = pneg %p2073
      $region76: #{tpu_custom_call.1} parent=5 // pred_check_branch
        %2076 = sbr.rel (%p2074) target = $region78
      $region77: #{tpu_custom_call.1} parent=5 // pred_region
        %s2077 = ssub.s32 %s18, 2
        // Predicated region
        $region79: #{tpu_custom_call.1} parent=77 // pred_check
          %p2078 = pneg %p204
        $region80: #{tpu_custom_call.1} parent=77 // pred_check_branch
          %2080 = sbr.rel (%p2078) target = $region82
        $region81: #{tpu_custom_call.1} parent=77 // pred_region
          %s2081 = sand.u32 %s189, 1
          %s2082 = scalar_lea.sflag [#allocation7], %s2081
          %s2083 = sand.u32 %s189, 1
          %s2084 = smul.addr %s2083, 64
          %s2085 = scalar_lea.vmem [#allocation10], %s2084
          %2087 = dma.done %s2082, 1024
        $region82: #{tpu_custom_call.1} parent=77 // pred_fallthru
          _
      $region78: #{tpu_custom_call.1} parent=5 // pred_fallthru
        _
    $region6: #{tpu_custom_call.1} parent=1 // loop_footer
      %s22 = sadd.s32 1, %s18
    $region7: #{tpu_custom_call.1} parent=1 // loop_footer_branch
      %17 = sbr.rel target = $region3
    $region8: #{tpu_custom_call.1} parent=1 // loop_exit
      _
    %2088 = vsyncpa [#allocation6], 1
    %s2089 = scalar_lea.sflag [#allocation6], 1
    %2090 = vsyncpa %s2089, 1
    %2091 = vsyncpa [#allocation9], 1
    %2092 = vsyncpa [#allocation7], 1
    %s2093 = scalar_lea.sflag [#allocation7], 1
    %2094 = vsyncpa %s2093, 1

// kernel: tpu_custom_call.1
$region0: #{tpu_custom_call.1}
  #allocation0 [shape = 'u32[]', space=smem, size = 0x4, offset = 0x4, fixed_abs, tag = 'smem constant byte address 0x4 - core index']
  #allocation1 [shape = 'u32[72,128]{1,0:T(1,128)}', space=vmem, size = 0x9000, scoped, tag = 'internal scratch']
  #allocation2 [shape = 'bf16[64,64]{1,0:T(8,128)(2,1)}', space=vmem, size = 0x4000, scoped, tag = 'scratch operand']
  #allocation3 [shape = 'bf16[2,3,64,32]{3,2,1,0:T(8,128)(2,1)}', space=vmem, size = 0x18000, scoped, tag = 'scratch operand']
  #allocation4 [shape = 'f32[64,64]{1,0:T(8,128)}', space=vmem, size = 0x8000, scoped, tag = 'scratch operand']
  %s0 = inlined_call_operand.vmem [shape: f32[2,64,64], index: 0, kind: input, shape index: {}]
  %s1 = inlined_call_operand.vmem [shape: f32[2,4,64], index: 1, kind: input, shape index: {}]
  %s2 = inlined_call_operand.vmem [shape: f32[64,8], index: 2, kind: input, shape index: {}]
  %s3 = inlined_call_operand.vmem [shape: bf16[2,64,96], index: 3, kind: input, shape index: {}]
  %s4 = inlined_call_operand.hbm [shape: bf16[2,32,64], index: 4, kind: input, shape index: {}]
  %s5 = inlined_call_operand.hbm [shape: bf16[64,256], index: 5, kind: input, shape index: {}]
  %s6 = inlined_call_operand.vmem [shape: bf16[256,64], index: 6, kind: input, shape index: {}]
  %s7 = inlined_call_operand.hbm [shape: f32[2,64,64], index: 7, kind: output, shape index: {}]
  %s8 = sld [smem:[#allocation0]]
  $region83: #{tpu_custom_call.1} parent=0
    _
  %s10 = ssub.s32 1, %s8
  %s11 = scalar_select 0, %s10, %s8
  $region1: #{tpu_custom_call.1} parent=0
    #allocation5 [shape = 'u8[16384]{0}', space=vmem, size = 0x4000, scoped, tag = 'input window, operand 4, single buffered']
    #allocation6 [shape = 's32[2]{0}', space=sflag, size = 0x8, scoped, tag = 'scoped memory for tpu_custom_call.1']
    #allocation7 [shape = 's32[2]{0}', space=sflag, size = 0x8, scoped, tag = 'scoped memory for tpu_custom_call.1']
    #allocation8 [shape = 'u8[32768]{0}', space=vmem, size = 0x8000, scoped, tag = 'input window, operand 5, single buffered']
    #allocation9 [shape = 's32[1]{0}', space=sflag, size = 0x4, scoped, tag = 'scoped memory for tpu_custom_call.1']
    #allocation10 [shape = 'u8[65536]{0}', space=vmem, size = 0x10000, scoped, tag = 'output window, operand 0']
    %12 = vsyncpa [#allocation6], 0
    %13 = vsyncpa [#allocation9], 0
    %14 = vsyncpa [#allocation7], 0
    %s15 = scalar_lea.sflag [#allocation7], 1
    %16 = vsyncpa %s15, 0
    loop: start=0, step=1, limit=4
    $region2: #{tpu_custom_call.1} parent=1 // loop_pre_header
      _
    $region3: #{tpu_custom_call.1} parent=1 // loop_header
      %s18 = sphi 0, %s22
      %p19 = scmp.ge.s32.totalorder %s18, 4
      %s28 = sphi 0, %s30
      %s31 = sphi 0, %s28
      %s32 = sphi 0, %s31
      %s48 = sphi 0, %s32
      %s54 = sphi 0, %s56
      %s57 = sphi 0, %s54
      %s58 = sphi 0, %s57
      %s74 = sphi 0, %s58
      %s78 = sphi 0, %s78
      %s80 = sphi 0, %s78
      %s81 = sphi 0, %s80
      %s95 = sphi 0, %s81
      %s99 = sphi 0, %s99
      %s101 = sphi 0, %s99
      %s102 = sphi 0, %s101
      %s116 = sphi 0, %s102
      %s120 = sphi 0, %s120
      %s122 = sphi 0, %s120
      %s123 = sphi 0, %s122
      %s137 = sphi 0, %s123
      %s141 = sphi 0, %s141
      %s143 = sphi 0, %s141
      %s144 = sphi 0, %s143
      %s158 = sphi 0, %s144
      %s162 = sphi 0, %s162
      %s164 = sphi 0, %s162
      %s165 = sphi 0, %s164
      %s179 = sphi 0, %s165
      %s185 = sphi 0, %s187
      %s188 = sphi 0, %s185
      %s189 = sphi 0, %s188
      %s205 = sphi 0, %s189
    $region4: #{tpu_custom_call.1} parent=1 // loop_header_branch
      %21 = sbr.rel (%p19) target = $region8
    $region5: #{tpu_custom_call.1} parent=1 // loop_body
      %s23 = ssub.s32 %s18, 1
      %s24 = ssub.s32 %s18, 2
      %s25 = sadd.s32 %s18, 1
      %s26 = ssub.s32 %s18, %s25
      %p27 = scmp.eq.s32.totalorder %s26, 0
      %s29 = sadd.s32 %s28, 1
      %s30 = scalar_select %p27, %s28, %s29
      %p33 = pneg %p27
      %p34 = scmp.eq.s32.totalorder %s18, 1
      %p35 = por %p33, %p34
      %p36 = scmp.ne.s32.totalorder %s28, %s31
      %p37 = scmp.eq.s32.totalorder %s18, 0
      %p38 = por %p36, %p37
      %p39 = scmp.ne.s32.totalorder %s28, %s31
      %p40 = scmp.eq.s32.totalorder %s23, 1
      %p41 = por %p39, %p40
      %p42 = scmp.ne.s32.totalorder %s31, %s32
      %p43 = scmp.eq.s32.totalorder %s23, 0
      %p44 = por %p42, %p43
      %p45 = scmp.ne.s32.totalorder %s31, %s32
      %p46 = scmp.eq.s32.totalorder %s24, 1
      %p47 = por %p45, %p46
      %p49 = scmp.ne.s32.totalorder %s32, %s48
      %p50 = scmp.eq.s32.totalorder %s24, 0
      %p51 = por %p49, %p50
      %s52 = ssub.s32 %s18, %s25
      %p53 = scmp.eq.s32.totalorder %s52, 0
      %s55 = sadd.s32 %s54, 1
      %s56 = scalar_select %p53, %s54, %s55
      %p59 = pneg %p53
      %p60 = scmp.eq.s32.totalorder %s18, 1
      %p61 = por %p59, %p60
      %p62 = scmp.ne.s32.totalorder %s54, %s57
      %p63 = scmp.eq.s32.totalorder %s18, 0
      %p64 = por %p62, %p63
      %p65 = scmp.ne.s32.totalorder %s54, %s57
      %p66 = scmp.eq.s32.totalorder %s23, 1
      %p67 = por %p65, %p66
      %p68 = scmp.ne.s32.totalorder %s57, %s58
      %p69 = scmp.eq.s32.totalorder %s23, 0
      %p70 = por %p68, %p69
      %p71 = scmp.ne.s32.totalorder %s57, %s58
      %p72 = scmp.eq.s32.totalorder %s24, 1
      %p73 = por %p71, %p72
      %p75 = scmp.ne.s32.totalorder %s58, %s74
      %p76 = scmp.eq.s32.totalorder %s24, 0
      %p77 = por %p75, %p76
      %s79 = sadd.s32 %s78, 1
      %p82 = scmp.eq.s32.totalorder %s18, 1
      %p83 = scmp.ne.s32.totalorder %s78, %s80
      %p84 = scmp.eq.s32.totalorder %s18, 0
      %p85 = por %p83, %p84
      %p86 = scmp.ne.s32.totalorder %s78, %s80
      %p87 = scmp.eq.s32.totalorder %s23, 1
      %p88 = por %p86, %p87
      %p89 = scmp.ne.s32.totalorder %s80, %s81
      %p90 = scmp.eq.s32.totalorder %s23, 0
      %p91 = por %p89, %p90
      %p92 = scmp.ne.s32.totalorder %s80, %s81
      %p93 = scmp.eq.s32.totalorder %s24, 1
      %p94 = por %p92, %p93
      %p96 = scmp.ne.s32.totalorder %s81, %s95
      %p97 = scmp.eq.s32.totalorder %s24, 0
      %p98 = por %p96, %p97
      %s100 = sadd.s32 %s99, 1
      %p103 = scmp.eq.s32.totalorder %s18, 1
      %p104 = scmp.ne.s32.totalorder %s99, %s101
      %p105 = scmp.eq.s32.totalorder %s18, 0
      %p106 = por %p104, %p105
      %p107 = scmp.ne.s32.totalorder %s99, %s101
      %p108 = scmp.eq.s32.totalorder %s23, 1
      %p109 = por %p107, %p108
      %p110 = scmp.ne.s32.totalorder %s101, %s102
      %p111 = scmp.eq.s32.totalorder %s23, 0
      %p112 = por %p110, %p111
      %p113 = scmp.ne.s32.totalorder %s101, %s102
      %p114 = scmp.eq.s32.totalorder %s24, 1
      %p115 = por %p113, %p114
      %p117 = scmp.ne.s32.totalorder %s102, %s116
      %p118 = scmp.eq.s32.totalorder %s24, 0
      %p119 = por %p117, %p118
      %s121 = sadd.s32 %s120, 1
      %p124 = scmp.eq.s32.totalorder %s18, 1
      %p125 = scmp.ne.s32.totalorder %s120, %s122
      %p126 = scmp.eq.s32.totalorder %s18, 0
      %p127 = por %p125, %p126
      %p128 = scmp.ne.s32.totalorder %s120, %s122
      %p129 = scmp.eq.s32.totalorder %s23, 1
      %p130 = por %p128, %p129
      %p131 = scmp.ne.s32.totalorder %s122, %s123
      %p132 = scmp.eq.s32.totalorder %s23, 0
      %p133 = por %p131, %p132
      %p134 = scmp.ne.s32.totalorder %s122, %s123
      %p135 = scmp.eq.s32.totalorder %s24, 1
      %p136 = por %p134, %p135
      %p138 = scmp.ne.s32.totalorder %s123, %s137
      %p139 = scmp.eq.s32.totalorder %s24, 0
      %p140 = por %p138, %p139
      %s142 = sadd.s32 %s141, 1
      %p145 = scmp.eq.s32.totalorder %s18, 1
      %p146 = scmp.ne.s32.totalorder %s141, %s143
      %p147 = scmp.eq.s32.totalorder %s18, 0
      %p148 = por %p146, %p147
      %p149 = scmp.ne.s32.totalorder %s141, %s143
      %p150 = scmp.eq.s32.totalorder %s23, 1
      %p151 = por %p149, %p150
      %p152 = scmp.ne.s32.totalorder %s143, %s144
      %p153 = scmp.eq.s32.totalorder %s23, 0
      %p154 = por %p152, %p153
      %p155 = scmp.ne.s32.totalorder %s143, %s144
      %p156 = scmp.eq.s32.totalorder %s24, 1
      %p157 = por %p155, %p156
      %p159 = scmp.ne.s32.totalorder %s144, %s158
      %p160 = scmp.eq.s32.totalorder %s24, 0
      %p161 = por %p159, %p160
      %s163 = sadd.s32 %s162, 1
      %p166 = scmp.eq.s32.totalorder %s18, 1
      %p167 = scmp.ne.s32.totalorder %s162, %s164
      %p168 = scmp.eq.s32.totalorder %s18, 0
      %p169 = por %p167, %p168
      %p170 = scmp.ne.s32.totalorder %s162, %s164
      %p171 = scmp.eq.s32.totalorder %s23, 1
      %p172 = por %p170, %p171
      %p173 = scmp.ne.s32.totalorder %s164, %s165
      %p174 = scmp.eq.s32.totalorder %s23, 0
      %p175 = por %p173, %p174
      %p176 = scmp.ne.s32.totalorder %s164, %s165
      %p177 = scmp.eq.s32.totalorder %s24, 1
      %p178 = por %p176, %p177
      %p180 = scmp.ne.s32.totalorder %s165, %s179
      %p181 = scmp.eq.s32.totalorder %s24, 0
      %p182 = por %p180, %p181
      %s183 = ssub.s32 %s18, %s25
      %p184 = scmp.eq.s32.totalorder %s183, 0
      %s186 = sadd.s32 %s185, 1
      %s187 = scalar_select %p184, %s185, %s186
      %p190 = pneg %p184
      %p191 = scmp.eq.s32.totalorder %s18, 1
      %p192 = por %p190, %p191
      %p193 = scmp.ne.s32.totalorder %s185, %s188
      %p194 = scmp.eq.s32.totalorder %s18, 0
      %p195 = por %p193, %p194
      %p196 = scmp.ne.s32.totalorder %s185, %s188
      %p197 = scmp.eq.s32.totalorder %s23, 1
      %p198 = por %p196, %p197
      %p199 = scmp.ne.s32.totalorder %s188, %s189
      %p200 = scmp.eq.s32.totalorder %s23, 0
      %p201 = por %p199, %p200
      %p202 = scmp.ne.s32.totalorder %s188, %s189
      %p203 = scmp.eq.s32.totalorder %s24, 1
      %p204 = por %p202, %p203
      %p206 = scmp.ne.s32.totalorder %s189, %s205
      %p207 = scmp.eq.s32.totalorder %s24, 0
      %p208 = por %p206, %p207
      %p209 = scmp.le.s32.totalorder 1, %s18
      %p210 = scmp.lt.s32.totalorder %s18, 3
      %p211 = pnand %p209, %p210
      %p212 = pneg %p211
      // Predicated region
      $region9: #{tpu_custom_call.1} parent=5 // pred_check
        _
      $region10: #{tpu_custom_call.1} parent=5 // pred_check_branch
        %214 = sbr.rel (%p211) target = $region12
      $region11: #{tpu_custom_call.1} parent=5 // pred_region
        %s215 = ssub.s32 %s18, 1
        // Predicated region
        $region13: #{tpu_custom_call.1} parent=11 // pred_check
          %p216 = pneg %p91
        $region14: #{tpu_custom_call.1} parent=11 // pred_check_branch
          %218 = sbr.rel (%p216) target = $region16
        $region15: #{tpu_custom_call.1} parent=11 // pred_region
          _
        $region16: #{tpu_custom_call.1} parent=11 // pred_fallthru
          _
        // Predicated region
        $region17: #{tpu_custom_call.1} parent=11 // pred_check
          %p219 = pneg %p112
        $region18: #{tpu_custom_call.1} parent=11 // pred_check_branch
          %221 = sbr.rel (%p219) target = $region20
        $region19: #{tpu_custom_call.1} parent=11 // pred_region
          _
        $region20: #{tpu_custom_call.1} parent=11 // pred_fallthru
          _
        // Predicated region
        $region21: #{tpu_custom_call.1} parent=11 // pred_check
          %p222 = pneg %p133
        $region22: #{tpu_custom_call.1} parent=11 // pred_check_branch
          %224 = sbr.rel (%p222) target = $region24
        $region23: #{tpu_custom_call.1} parent=11 // pred_region
          %226 = vsyncadd [#allocation6], 0
          %s227 = sshll.u32 %s4, 4
          %s228 = int_to_ptr.hbm [resolvable:$true] %s227
          %s229 = sshll.u32 [#allocation5], 4
          %s230 = int_to_ptr.vmem [resolvable:$true] %s229
          %235 = dma.hbm_to_vmem [thread:$0]  %s228, 512, %s230, [#allocation6], 64, 64, 4
        $region24: #{tpu_custom_call.1} parent=11 // pred_fallthru
          _
        // Predicated region
        $region25: #{tpu_custom_call.1} parent=11 // pred_check
          %p236 = pneg %p154
        $region26: #{tpu_custom_call.1} parent=11 // pred_check_branch
          %238 = sbr.rel (%p236) target = $region28
        $region27: #{tpu_custom_call.1} parent=11 // pred_region
          %240 = vsyncadd [#allocation9], 0
          %s241 = sshll.u32 %s5, 4
          %s242 = int_to_ptr.hbm [resolvable:$true] %s241
          %s243 = sshll.u32 [#allocation8], 4
          %s244 = int_to_ptr.vmem [resolvable:$true] %s243
          %249 = dma.hbm_to_vmem [thread:$0]  %s242, 1024, %s244, [#allocation9], 128, 128, 8
        $region28: #{tpu_custom_call.1} parent=11 // pred_fallthru
          _
        // Predicated region
        $region29: #{tpu_custom_call.1} parent=11 // pred_check
          %p250 = pneg %p175
        $region30: #{tpu_custom_call.1} parent=11 // pred_check_branch
          %252 = sbr.rel (%p250) target = $region32
        $region31: #{tpu_custom_call.1} parent=11 // pred_region
          _
        $region32: #{tpu_custom_call.1} parent=11 // pred_fallthru
          _
      $region12: #{tpu_custom_call.1} parent=5 // pred_fallthru
        _
      %p253 = scmp.lt.s32.totalorder %s18, 2
      // Predicated region
      $region33: #{tpu_custom_call.1} parent=5 // pred_check
        %p254 = pneg %p253
      $region34: #{tpu_custom_call.1} parent=5 // pred_check_branch
        %256 = sbr.rel (%p254) target = $region36
      $region35: #{tpu_custom_call.1} parent=5 // pred_region
        // Predicated region
        $region37: #{tpu_custom_call.1} parent=35 // pred_check
          %p257 = pneg %p38
        $region38: #{tpu_custom_call.1} parent=35 // pred_check_branch
          %259 = sbr.rel (%p257) target = $region40
        $region39: #{tpu_custom_call.1} parent=35 // pred_region
          %p260 = scmp.lt.s32.totalorder %s18, 1
          %s261 = scalar_select %p260, %s18, 1
          %s262 = smul.addr %s261, 8
          %s263 = smul.addr %s262, 8
          %s264 = scalar_lea.vmem %s0, %s263
        $region40: #{tpu_custom_call.1} parent=35 // pred_fallthru
          _
        // Predicated region
        $region41: #{tpu_custom_call.1} parent=35 // pred_check
          %p265 = pneg %p64
        $region42: #{tpu_custom_call.1} parent=35 // pred_check_branch
          %267 = sbr.rel (%p265) target = $region44
        $region43: #{tpu_custom_call.1} parent=35 // pred_region
          %p268 = scmp.lt.s32.totalorder %s18, 1
          %s269 = scalar_select %p268, %s18, 1
          %s270 = smul.addr %s269, 4
          %s271 = scalar_lea.vmem %s1, %s270
        $region44: #{tpu_custom_call.1} parent=35 // pred_fallthru
          _
      $region36: #{tpu_custom_call.1} parent=5 // pred_fallthru
        _
      %p272 = scmp.le.s32.totalorder 1, %s18
      %p273 = scmp.lt.s32.totalorder %s18, 3
      %p274 = pnand %p272, %p273
      %p275 = pneg %p274
      // Predicated region
      $region45: #{tpu_custom_call.1} parent=5 // pred_check
        _
      $region46: #{tpu_custom_call.1} parent=5 // pred_check_branch
        %277 = sbr.rel (%p274) target = $region48
      $region47: #{tpu_custom_call.1} parent=5 // pred_region
        %s278 = ssub.s32 %s18, 1
        // Predicated region
        $region49: #{tpu_custom_call.1} parent=47 // pred_check
          %p279 = pneg %p133
        $region50: #{tpu_custom_call.1} parent=47 // pred_check_branch
          %281 = sbr.rel (%p279) target = $region52
        $region51: #{tpu_custom_call.1} parent=47 // pred_region
          %283 = dma.done [#allocation6], 512
        $region52: #{tpu_custom_call.1} parent=47 // pred_fallthru
          _
        // Predicated region
        $region53: #{tpu_custom_call.1} parent=47 // pred_check
          %p284 = pneg %p154
        $region54: #{tpu_custom_call.1} parent=47 // pred_check_branch
          %286 = sbr.rel (%p284) target = $region56
        $region55: #{tpu_custom_call.1} parent=47 // pred_region
          %288 = dma.done [#allocation9], 1024
        $region56: #{tpu_custom_call.1} parent=47 // pred_fallthru
          _
        %p289 = scmp.lt.s32.totalorder %s23, 1
        %s290 = scalar_select %p289, %s23, 1
        %s291 = smul.addr %s290, 8
        %s292 = smul.addr %s291, 8
        %s293 = scalar_lea.vmem %s0, %s292
        %p294 = pneg %p44
        %p295 = pneg %p41
        %p296 = scmp.lt.s32.totalorder %s23, 1
        %s297 = scalar_select %p296, %s23, 1
        %s298 = smul.addr %s297, 4
        %s299 = scalar_lea.vmem %s1, %s298
        %p300 = pneg %p70
        %p301 = pneg %p67
        %p302 = pneg %p91
        %p303 = pneg %p88
        %p304 = pneg %p112
        %p305 = pneg %p109
        %p306 = pneg %p133
        %p307 = pneg %p130
        %p308 = pneg %p154
        %p309 = pneg %p151
        %p310 = pneg %p175
        %p311 = pneg %p172
        %p312 = pneg %p201
        %p313 = pneg %p198
        %s314 = sand.u32 %s188, 1
        %s315 = scalar_lea.sflag [#allocation7], %s314
        %s316 = sand.u32 %s188, 1
        %s317 = smul.addr %s316, 64
        %s318 = scalar_lea.vmem [#allocation10], %s317
        %p319 = scmp.lt.s32.totalorder %s23, 1
        %s320 = scalar_select %p319, %s23, 1
        %s321 = smul.addr %s320, 8
        %s322 = smul.addr %s321, 8
        %s323 = scalar_lea.vmem %s0, %s322
        %p324 = scmp.lt.s32.totalorder %s23, 1
        %s325 = scalar_select %p324, %s23, 1
        %s326 = smul.addr %s325, 4
        %s327 = scalar_lea.vmem %s1, %s326
        %v329 = vld [vmem:[%s2] sm:$0xff]
        %v330 = vld [vmem:[%s2 + $0x8] sm:$0xff]
        %v331 = vld [vmem:[%s2 + $0x10] sm:$0xff]
        %v332 = vld [vmem:[%s2 + $0x18] sm:$0xff]
        %v333 = vld [vmem:[%s2 + $0x20] sm:$0xff]
        %v334 = vld [vmem:[%s2 + $0x28] sm:$0xff]
        %v335 = vld [vmem:[%s2 + $0x30] sm:$0xff]
        %v336 = vld [vmem:[%s2 + $0x38] sm:$0xff]
        %v337 = vld [vmem:[%s327] sm:$0xf]
        %v338 = vld [vmem:[%s323] sm:$0xff]
        %v339 = vld [vmem:[%s323 + $0x8] sm:$0xff]
        %v340 = vld [vmem:[%s323 + $0x10] sm:$0xff]
        %v341 = vld [vmem:[%s323 + $0x18] sm:$0xff]
        %v342 = vld [vmem:[%s323 + $0x20] sm:$0xff]
        %v343 = vld [vmem:[%s323 + $0x28] sm:$0xff]
        %v344 = vld [vmem:[%s323 + $0x30] sm:$0xff]
        %v345 = vld [vmem:[%s323 + $0x38] sm:$0xff]
        %vm346 = vcmask 523264
        %v347 = vsel %vm346, %v338, 0.0
        %v348 = vsel %vm346, %v339, 0.0
        %v349 = vadd.f32 %v347, %v348
        %v350 = vsel %vm346, %v340, 0.0
        %v351 = vadd.f32 %v349, %v350
        %v352 = vsel %vm346, %v341, 0.0
        %v353 = vadd.f32 %v351, %v352
        %v354 = vsel %vm346, %v342, 0.0
        %v355 = vadd.f32 %v353, %v354
        %v356 = vsel %vm346, %v343, 0.0
        %v357 = vadd.f32 %v355, %v356
        %v358 = vsel %vm346, %v344, 0.0
        %v359 = vadd.f32 %v357, %v358
        %v360 = vsel %vm346, %v345, 0.0
        %v361 = vadd.f32 %v359, %v360
        %v362 = vrot.slane %v361, 4
        %v363 = vadd.f32 %v361, %v362
        %v364 = vrot.slane %v363, 2
        %v365 = vadd.f32 %v363, %v364
        %v366 = vrot.slane %v365, 1
        %v367 = vadd.f32 %v365, %v366
        %v368 = vmul.f32 %v338, %v338
        %v369 = vmul.f32 %v339, %v339
        %v370 = vmul.f32 %v340, %v340
        %v371 = vmul.f32 %v341, %v341
        %v372 = vmul.f32 %v342, %v342
        %v373 = vmul.f32 %v343, %v343
        %v374 = vmul.f32 %v344, %v344
        %v375 = vmul.f32 %v345, %v345
        %v376 = vsel %vm346, %v368, 0.0
        %v377 = vsel %vm346, %v369, 0.0
        %v378 = vadd.f32 %v376, %v377
        %v379 = vsel %vm346, %v370, 0.0
        %v380 = vadd.f32 %v378, %v379
        %v381 = vsel %vm346, %v371, 0.0
        %v382 = vadd.f32 %v380, %v381
        %v383 = vsel %vm346, %v372, 0.0
        %v384 = vadd.f32 %v382, %v383
        %v385 = vsel %vm346, %v373, 0.0
        %v386 = vadd.f32 %v384, %v385
        %v387 = vsel %vm346, %v374, 0.0
        %v388 = vadd.f32 %v386, %v387
        %v389 = vsel %vm346, %v375, 0.0
        %v390 = vadd.f32 %v388, %v389
        %v391 = vrot.slane %v390, 4
        %v392 = vadd.f32 %v390, %v391
        %v393 = vrot.slane %v392, 2
        %v394 = vadd.f32 %v392, %v393
        %v395 = vrot.slane %v394, 1
        %v396 = vadd.f32 %v394, %v395
        %vm397 = vcmask 1040384
        %v398 = vsel %vm397, %v367, %v396
        %v399 = vadd.f32 %v398, 0.0
        %v401 = vsel %vm346, %v399, 0
        %403 = vmatpush.msra.mxu0 0.0
        %404 = vmatpush.msra.mxu0 0.0
        %405 = vmatpush.msra.mxu0 0.0
        %406 = vmatpush.msra.mxu0 0.0
        %407 = vmatpush.msra.mxu0 0.0
        %408 = vmatpush.msra.mxu0 0.0
        %409 = vmatpush.msra.mxu0 0.0
        %410 = vmatpush.msra.mxu0 0.0
        %411 = vmatpush.msra.mxu0 %v336
        %412 = vmatpush.msra.mxu0 %v335
        %413 = vmatpush.msra.mxu0 %v334
        %414 = vmatpush.msra.mxu0 %v333
        %415 = vmatpush.msra.mxu0 %v332
        %416 = vmatpush.msra.mxu0 %v331
        %417 = vmatpush.msra.mxu0 %v330
        %418 = vmatpush.msra.mxu0 %v329
        %419 = vmatmul.f32.gmra.mxu0 %v401
        %v420 = vpop.f32.mrf.mxu0
        %v421 = vadd.f32 0.0, %v420
        %422 = vdwg.mxu0
        %v423 = vmul.f32 %v421, 0.001953125
        %v424 = vmul.f32 %v423, %v423
        %v426 = vrot.slane %v424, 7
        %v428 = vsub.f32 %v423, %v426
        %v429 = vmax.f32 %v428, 0.0
        %v430 = vadd.f32 %v429, 1e-05
        %v431 = vrsqrt.pop %v430
        %v432 = vmul.f32 %v431, %v430
        %v433 = vmul.f32 %v432, %v431
        %v434 = vmul.f32 0.5, %v433
        %v435 = vsub.f32 1.5, %v434
        %v436 = vmul.f32 %v431, %v435
        %vm437 = vweird.f32 %v430
        %vm438 = vweird.f32 %v431
        %vm439 = vmor %vm437, %vm438
        %v440 = vsel %vm439, %v431, %v436
        %v441 = vsel %vm397, %v423, %v440
        %vm442 = vcmask 64512
        %v444 = vsel %vm442, %v441, 0
        %v447 = vsel %vm442, %v329, 0
        %v450 = vsel %vm442, %v330, 0
        %v453 = vsel %vm442, %v331, 0
        %v456 = vsel %vm442, %v332, 0
        %v459 = vsel %vm442, %v333, 0
        %v462 = vsel %vm442, %v334, 0
        %v465 = vsel %vm442, %v335, 0
        %v468 = vsel %vm442, %v336, 0
        %470 = vmatpush.xpose.msra.mxu0 0.0
        %471 = vmatpush.xpose.msra.mxu0 0.0
        %472 = vmatpush.xpose.msra.mxu0 0.0
        %473 = vmatpush.xpose.msra.mxu0 0.0
        %474 = vmatpush.xpose.msra.mxu0 0.0
        %475 = vmatpush.xpose.msra.mxu0 0.0
        %476 = vmatpush.xpose.msra.mxu0 0.0
        %477 = vmatpush.xpose.msra.mxu0 0.0
        %478 = vmatpush.xpose.msra.mxu0 %v468
        %479 = vmatpush.xpose.msra.mxu0 %v465
        %480 = vmatpush.xpose.msra.mxu0 %v462
        %481 = vmatpush.xpose.msra.mxu0 %v459
        %482 = vmatpush.xpose.msra.mxu0 %v456
        %483 = vmatpush.xpose.msra.mxu0 %v453
        %484 = vmatpush.xpose.msra.mxu0 %v450
        %485 = vmatpush.xpose.msra.mxu0 %v447
        %486 = vmatmul.f32.gmra.mxu0 %v444
        %v487 = vpop.f32.mrf.mxu0
        %v488 = vadd.f32 0.0, %v487
        %489 = vdwg.mxu0
        %v490 = vadd.f32 %v337, 1.0
        %v492 = vrot.slane %v490, 7
        %v494 = vmul.f32 %v488, %v492
        %v496 = vrot.slane %v494, 1
        %v498 = vmul.f32 %v488, %v496
        %v500 = vrot.slane %v498, 7
        %v502 = vsub.f32 %v337, %v500
        %v503 = vperm.slane %v494, 1
        %v504 = vmul.f32 %v338, %v503
        %v505 = vmul.f32 %v339, %v503
        %v506 = vmul.f32 %v340, %v503
        %v507 = vmul.f32 %v341, %v503
        %v508 = vmul.f32 %v342, %v503
        %v509 = vmul.f32 %v343, %v503
        %v510 = vmul.f32 %v344, %v503
        %v511 = vmul.f32 %v345, %v503
        %v512 = vperm.slane %v502, 1
        %v513 = vadd.f32 %v504, %v512
        %v514 = vadd.f32 %v505, %v512
        %v515 = vadd.f32 %v506, %v512
        %v516 = vadd.f32 %v507, %v512
        %v517 = vadd.f32 %v508, %v512
        %v518 = vadd.f32 %v509, %v512
        %v519 = vadd.f32 %v510, %v512
        %v520 = vadd.f32 %v511, %v512
        %v521 = vpack.c.bf16 %v513, %v513
        %v522 = vpack.c.bf16 %v514, %v514
        %v523 = vpack.c.bf16 %v515, %v515
        %v524 = vpack.c.bf16 %v516, %v516
        %v525 = vpack.c.bf16 %v517, %v517
        %v526 = vpack.c.bf16 %v518, %v518
        %v527 = vpack.c.bf16 %v519, %v519
        %v528 = vpack.c.bf16 %v520, %v520
        %vm529 = vcmask 519168
        %530 = vst.msk [vmem:[#allocation2] sm:$0xf] %vm529, %v521
        %531 = vst.msk [vmem:[#allocation2 + $0x4] sm:$0xf] %vm529, %v522
        %532 = vst.msk [vmem:[#allocation2 + $0x8] sm:$0xf] %vm529, %v523
        %533 = vst.msk [vmem:[#allocation2 + $0xc] sm:$0xf] %vm529, %v524
        %534 = vst.msk [vmem:[#allocation2 + $0x10] sm:$0xf] %vm529, %v525
        %535 = vst.msk [vmem:[#allocation2 + $0x14] sm:$0xf] %vm529, %v526
        %536 = vst.msk [vmem:[#allocation2 + $0x18] sm:$0xf] %vm529, %v527
        %537 = vst.msk [vmem:[#allocation2 + $0x1c] sm:$0xf] %vm529, %v528
        loop: start=0, step=1, limit=2
        $region57: #{tpu_custom_call.1} parent=47 // loop_pre_header
          _
        $region58: #{tpu_custom_call.1} parent=47 // loop_header
          %s539 = sphi 0, %s543
          %p540 = scmp.ge.s32.totalorder %s539, 2
        $region59: #{tpu_custom_call.1} parent=47 // loop_header_branch
          %542 = sbr.rel (%p540) target = $region63
        $region60: #{tpu_custom_call.1} parent=47 // loop_body
          %v544 = vld [vmem:[#allocation2] sm:$0xf]
          %v545 = vld [vmem:[#allocation2 + $0x4] sm:$0xf]
          %v546 = vld [vmem:[#allocation2 + $0x8] sm:$0xf]
          %v547 = vld [vmem:[#allocation2 + $0xc] sm:$0xf]
          %v548 = vld [vmem:[#allocation2 + $0x10] sm:$0xf]
          %v549 = vld [vmem:[#allocation2 + $0x14] sm:$0xf]
          %v550 = vld [vmem:[#allocation2 + $0x18] sm:$0xf]
          %v551 = vld [vmem:[#allocation2 + $0x1c] sm:$0xf]
          %s552 = smul.u32 %s539, 8
          %s553 = smul.addr %s552, 4
          %s554 = scalar_lea.vmem %s3, %s553
          %v555 = vld [vmem:[%s554] sm:$0xf]
          %v556 = vld [vmem:[%s554 + $0x4] sm:$0xf]
          %v557 = vld [vmem:[%s554 + $0x8] sm:$0xf]
          %v558 = vld [vmem:[%s554 + $0xc] sm:$0xf]
          %v559 = vld [vmem:[%s554 + $0x10] sm:$0xf]
          %v560 = vld [vmem:[%s554 + $0x14] sm:$0xf]
          %v561 = vld [vmem:[%s554 + $0x18] sm:$0xf]
          %v562 = vld [vmem:[%s554 + $0x1c] sm:$0xf]
          %v571 = vunpack.c.l.b16 %v544
          %v572 = vunpack.c.l.b16 %v545
          %v573 = vunpack.c.l.b16 %v546
          %v574 = vunpack.c.l.b16 %v547
          %v575 = vunpack.c.l.b16 %v548
          %v576 = vunpack.c.l.b16 %v549
          %v577 = vunpack.c.l.b16 %v550
          %v578 = vunpack.c.l.b16 %v551
          %v579 = vpack.c.b16 %v572, %v571
          %v580 = vpack.c.b16 %v574, %v573
          %v581 = vpack.c.b16 %v576, %v575
          %v582 = vpack.c.b16 %v578, %v577
          %v591 = vunpack.c.l.b16 %v555
          %v592 = vunpack.c.l.b16 %v556
          %v593 = vunpack.c.l.b16 %v557
          %v594 = vunpack.c.l.b16 %v558
          %v595 = vunpack.c.l.b16 %v559
          %v596 = vunpack.c.l.b16 %v560
          %v597 = vunpack.c.l.b16 %v561
          %v598 = vunpack.c.l.b16 %v562
          %v599 = vpack.c.b16 %v592, %v591
          %v600 = vpack.c.b16 %v594, %v593
          %v601 = vpack.c.b16 %v596, %v595
          %v602 = vpack.c.b16 %v598, %v597
          %v608 = vsel %vm346, %v579, 0
          %v611 = vsel %vm346, %v580, 0
          %v614 = vsel %vm346, %v581, 0
          %v617 = vsel %vm346, %v582, 0
          %619 = vmatpush.bf16.msra.mxu0 0
          %620 = vmatpush.bf16.msra.mxu0 0
          %621 = vmatpush.bf16.msra.mxu0 0
          %622 = vmatpush.bf16.msra.mxu0 0
          %623 = vmatpush.bf16.msra.mxu0 %v602
          %624 = vmatpush.bf16.msra.mxu0 %v601
          %625 = vmatpush.bf16.msra.mxu0 %v600
          %626 = vmatpush.bf16.msra.mxu0 %v599
          %627 = vmatmul.bf16.gmra.mxu0 %v608
          %v628 = vpop.f32.mrf.mxu0
          %v629 = vadd.f32 0.0, %v628
          %v630 = vpop.f32.mrf.mxu0
          %v631 = vadd.f32 0.0, %v630
          %632 = vmatmul.bf16.gmra.mxu0 %v611
          %v633 = vpop.f32.mrf.mxu0
          %v634 = vadd.f32 0.0, %v633
          %v635 = vpop.f32.mrf.mxu0
          %v636 = vadd.f32 0.0, %v635
          %637 = vmatmul.bf16.gmra.mxu0 %v614
          %v638 = vpop.f32.mrf.mxu0
          %v639 = vadd.f32 0.0, %v638
          %v640 = vpop.f32.mrf.mxu0
          %v641 = vadd.f32 0.0, %v640
          %642 = vmatmul.bf16.gmra.mxu0 %v617
          %v643 = vpop.f32.mrf.mxu0
          %v644 = vadd.f32 0.0, %v643
          %v645 = vpop.f32.mrf.mxu0
          %v646 = vadd.f32 0.0, %v645
          %647 = vdwg.mxu0
          %v648 = vpack.c.bf16 %v629, %v629
          %v649 = vpack.c.bf16 %v631, %v631
          %v650 = vpack.c.bf16 %v634, %v634
          %v651 = vpack.c.bf16 %v636, %v636
          %v652 = vpack.c.bf16 %v639, %v639
          %v653 = vpack.c.bf16 %v641, %v641
          %v654 = vpack.c.bf16 %v644, %v644
          %v655 = vpack.c.bf16 %v646, %v646
          %s656 = smul.u32 %s539, 24
          %s657 = smul.addr %s656, 4
          %s658 = scalar_lea.vmem [#allocation3], %s657
          %vm659 = vcmask 257024
          %660 = vst.msk [vmem:[%s658] sm:$0xf] %vm659, %v648
          %661 = vst.msk [vmem:[%s658 + $0x4] sm:$0xf] %vm659, %v649
          %662 = vst.msk [vmem:[%s658 + $0x8] sm:$0xf] %vm659, %v650
          %663 = vst.msk [vmem:[%s658 + $0xc] sm:$0xf] %vm659, %v651
          %664 = vst.msk [vmem:[%s658 + $0x10] sm:$0xf] %vm659, %v652
          %665 = vst.msk [vmem:[%s658 + $0x14] sm:$0xf] %vm659, %v653
          %666 = vst.msk [vmem:[%s658 + $0x18] sm:$0xf] %vm659, %v654
          %667 = vst.msk [vmem:[%s658 + $0x1c] sm:$0xf] %vm659, %v655
          %676 = vrot.lane.b32.xlu0 %v648, 96
          %v677 = vpop.permute.xlu0 %676
          %678 = vrot.lane.b32.xlu0 %v649, 96
          %v679 = vpop.permute.xlu0 %678
          %680 = vrot.lane.b32.xlu0 %v650, 96
          %v681 = vpop.permute.xlu0 %680
          %682 = vrot.lane.b32.xlu0 %v651, 96
          %v683 = vpop.permute.xlu0 %682
          %684 = vrot.lane.b32.xlu0 %v652, 96
          %v685 = vpop.permute.xlu0 %684
          %686 = vrot.lane.b32.xlu0 %v653, 96
          %v687 = vpop.permute.xlu0 %686
          %688 = vrot.lane.b32.xlu0 %v654, 96
          %v689 = vpop.permute.xlu0 %688
          %690 = vrot.lane.b32.xlu0 %v655, 96
          %v691 = vpop.permute.xlu0 %690
          %s700 = sadd.s32 8, %s656
          %s701 = smul.addr %s700, 4
          %s702 = scalar_lea.vmem [#allocation3], %s701
          %703 = vst.msk [vmem:[%s702] sm:$0xf] %vm659, %v677
          %704 = vst.msk [vmem:[%s702 + $0x4] sm:$0xf] %vm659, %v679
          %705 = vst.msk [vmem:[%s702 + $0x8] sm:$0xf] %vm659, %v681
          %706 = vst.msk [vmem:[%s702 + $0xc] sm:$0xf] %vm659, %v683
          %707 = vst.msk [vmem:[%s702 + $0x10] sm:$0xf] %vm659, %v685
          %708 = vst.msk [vmem:[%s702 + $0x14] sm:$0xf] %vm659, %v687
          %709 = vst.msk [vmem:[%s702 + $0x18] sm:$0xf] %vm659, %v689
          %710 = vst.msk [vmem:[%s702 + $0x1c] sm:$0xf] %vm659, %v691
          %711 = vrot.lane.b32.xlu0 %v648, 64
          %v712 = vpop.permute.xlu0 %711
          %713 = vrot.lane.b32.xlu0 %v649, 64
          %v714 = vpop.permute.xlu0 %713
          %715 = vrot.lane.b32.xlu0 %v650, 64
          %v716 = vpop.permute.xlu0 %715
          %717 = vrot.lane.b32.xlu0 %v651, 64
          %v718 = vpop.permute.xlu0 %717
          %719 = vrot.lane.b32.xlu0 %v652, 64
          %v720 = vpop.permute.xlu0 %719
          %721 = vrot.lane.b32.xlu0 %v653, 64
          %v722 = vpop.permute.xlu0 %721
          %723 = vrot.lane.b32.xlu0 %v654, 64
          %v724 = vpop.permute.xlu0 %723
          %725 = vrot.lane.b32.xlu0 %v655, 64
          %v726 = vpop.permute.xlu0 %725
          %s735 = sadd.s32 16, %s656
          %s736 = smul.addr %s735, 4
          %s737 = scalar_lea.vmem [#allocation3], %s736
          %738 = vst.msk [vmem:[%s737] sm:$0xf] %vm659, %v712
          %739 = vst.msk [vmem:[%s737 + $0x4] sm:$0xf] %vm659, %v714
          %740 = vst.msk [vmem:[%s737 + $0x8] sm:$0xf] %vm659, %v716
          %741 = vst.msk [vmem:[%s737 + $0xc] sm:$0xf] %vm659, %v718
          %742 = vst.msk [vmem:[%s737 + $0x10] sm:$0xf] %vm659, %v720
          %743 = vst.msk [vmem:[%s737 + $0x14] sm:$0xf] %vm659, %v722
          %744 = vst.msk [vmem:[%s737 + $0x18] sm:$0xf] %vm659, %v724
          %745 = vst.msk [vmem:[%s737 + $0x1c] sm:$0xf] %vm659, %v726
        $region61: #{tpu_custom_call.1} parent=47 // loop_footer
          %s543 = sadd.s32 1, %s539
        $region62: #{tpu_custom_call.1} parent=47 // loop_footer_branch
          %538 = sbr.rel target = $region58
        $region63: #{tpu_custom_call.1} parent=47 // loop_exit
          _
        %v746 = vld [vmem:[%s323] sm:$0xff]
        %v747 = vld [vmem:[%s323 + $0x8] sm:$0xff]
        %v748 = vld [vmem:[%s323 + $0x10] sm:$0xff]
        %v749 = vld [vmem:[%s323 + $0x18] sm:$0xff]
        %v750 = vld [vmem:[%s323 + $0x20] sm:$0xff]
        %v751 = vld [vmem:[%s323 + $0x28] sm:$0xff]
        %v752 = vld [vmem:[%s323 + $0x30] sm:$0xff]
        %v753 = vld [vmem:[%s323 + $0x38] sm:$0xff]
        loop: start=0, step=1, limit=2
        $region64: #{tpu_custom_call.1} parent=47 // loop_pre_header
          _
        $region65: #{tpu_custom_call.1} parent=47 // loop_header
          %s755 = sphi 0, %s759
          %p756 = scmp.ge.s32.totalorder %s755, 2
          %v760 = vphi 0.0, %v1221
          %v761 = vphi 0.0, %v1222
          %v762 = vphi 0.0, %v1223
          %v763 = vphi 0.0, %v1224
          %v764 = vphi 0.0, %v1225
          %v765 = vphi 0.0, %v1226
          %v766 = vphi 0.0, %v1227
          %v767 = vphi 0.0, %v1228
        $region66: #{tpu_custom_call.1} parent=47 // loop_header_branch
          %758 = sbr.rel (%p756) target = $region70
        $region67: #{tpu_custom_call.1} parent=47 // loop_body
          %s768 = smul.u32 %s755, 24
          %s769 = sadd.s32 0, %s768
          %s770 = smul.addr %s769, 4
          %s771 = scalar_lea.vmem [#allocation3], %s770
          %v772 = vld [vmem:[%s771] sm:$0xf]
          %v773 = vld [vmem:[%s771 + $0x4] sm:$0xf]
          %v774 = vld [vmem:[%s771 + $0x8] sm:$0xf]
          %v775 = vld [vmem:[%s771 + $0xc] sm:$0xf]
          %v776 = vld [vmem:[%s771 + $0x10] sm:$0xf]
          %v777 = vld [vmem:[%s771 + $0x14] sm:$0xf]
          %v778 = vld [vmem:[%s771 + $0x18] sm:$0xf]
          %v779 = vld [vmem:[%s771 + $0x1c] sm:$0xf]
          %s780 = sadd.s32 8, %s768
          %s781 = smul.addr %s780, 4
          %s782 = scalar_lea.vmem [#allocation3], %s781
          %v783 = vld [vmem:[%s782] sm:$0xf]
          %v784 = vld [vmem:[%s782 + $0x4] sm:$0xf]
          %v785 = vld [vmem:[%s782 + $0x8] sm:$0xf]
          %v786 = vld [vmem:[%s782 + $0xc] sm:$0xf]
          %v787 = vld [vmem:[%s782 + $0x10] sm:$0xf]
          %v788 = vld [vmem:[%s782 + $0x14] sm:$0xf]
          %v789 = vld [vmem:[%s782 + $0x18] sm:$0xf]
          %v790 = vld [vmem:[%s782 + $0x1c] sm:$0xf]
          %v799 = vunpack.c.l.b16 %v772
          %v800 = vunpack.c.l.b16 %v773
          %v801 = vunpack.c.l.b16 %v774
          %v802 = vunpack.c.l.b16 %v775
          %v803 = vunpack.c.l.b16 %v776
          %v804 = vunpack.c.l.b16 %v777
          %v805 = vunpack.c.l.b16 %v778
          %v806 = vunpack.c.l.b16 %v779
          %v807 = vpack.c.b16 %v800, %v799
          %v808 = vpack.c.b16 %v802, %v801
          %v809 = vpack.c.b16 %v804, %v803
          %v810 = vpack.c.b16 %v806, %v805
          %v819 = vunpack.c.l.b16 %v783
          %v820 = vunpack.c.l.b16 %v784
          %v821 = vunpack.c.l.b16 %v785
          %v822 = vunpack.c.l.b16 %v786
          %v823 = vunpack.c.l.b16 %v787
          %v824 = vunpack.c.l.b16 %v788
          %v825 = vunpack.c.l.b16 %v789
          %v826 = vunpack.c.l.b16 %v790
          %v827 = vpack.c.b16 %v820, %v819
          %v828 = vpack.c.b16 %v822, %v821
          %v829 = vpack.c.b16 %v824, %v823
          %v830 = vpack.c.b16 %v826, %v825
          %vm831 = vcmask 261120
          %v833 = vsel %vm831, %v807, 0
          %v836 = vsel %vm831, %v808, 0
          %v839 = vsel %vm831, %v809, 0
          %v842 = vsel %vm831, %v810, 0
          %v845 = vsel %vm831, %v827, 0
          %v848 = vsel %vm831, %v828, 0
          %v851 = vsel %vm831, %v829, 0
          %v854 = vsel %vm831, %v830, 0
          %856 = vmatpush.bf16.xpose.msra.mxu0 0
          %857 = vmatpush.bf16.xpose.msra.mxu0 0
          %858 = vmatpush.bf16.xpose.msra.mxu0 0
          %859 = vmatpush.bf16.xpose.msra.mxu0 0
          %860 = vmatpush.bf16.xpose.msra.mxu0 %v854
          %861 = vmatpush.bf16.xpose.msra.mxu0 %v851
          %862 = vmatpush.bf16.xpose.msra.mxu0 %v848
          %863 = vmatpush.bf16.xpose.msra.mxu0 %v845
          %864 = vmatmul.bf16.gmra.mxu0 %v833
          %v865 = vpop.f32.mrf.mxu0
          %v866 = vadd.f32 0.0, %v865
          %v867 = vpop.f32.mrf.mxu0
          %v868 = vadd.f32 0.0, %v867
          %869 = vmatmul.bf16.gmra.mxu0 %v836
          %v870 = vpop.f32.mrf.mxu0
          %v871 = vadd.f32 0.0, %v870
          %v872 = vpop.f32.mrf.mxu0
          %v873 = vadd.f32 0.0, %v872
          %874 = vmatmul.bf16.gmra.mxu0 %v839
          %v875 = vpop.f32.mrf.mxu0
          %v876 = vadd.f32 0.0, %v875
          %v877 = vpop.f32.mrf.mxu0
          %v878 = vadd.f32 0.0, %v877
          %879 = vmatmul.bf16.gmra.mxu0 %v842
          %v880 = vpop.f32.mrf.mxu0
          %v881 = vadd.f32 0.0, %v880
          %v882 = vpop.f32.mrf.mxu0
          %v883 = vadd.f32 0.0, %v882
          %884 = vdwg.mxu0
          %v885 = vsel %vm346, %v866, -inf
          %886 = vmax.xlane.f32.xlu0 %v885
          %v887 = vpop.xlane.xlu0 %886
          %v888 = vsel %vm346, %v868, -inf
          %889 = vmax.xlane.f32.xlu0 %v888
          %v890 = vpop.xlane.xlu0 %889
          %v891 = vsel %vm346, %v871, -inf
          %892 = vmax.xlane.f32.xlu0 %v891
          %v893 = vpop.xlane.xlu0 %892
          %v894 = vsel %vm346, %v873, -inf
          %895 = vmax.xlane.f32.xlu0 %v894
          %v896 = vpop.xlane.xlu0 %895
          %v897 = vsel %vm346, %v876, -inf
          %898 = vmax.xlane.f32.xlu0 %v897
          %v899 = vpop.xlane.xlu0 %898
          %v900 = vsel %vm346, %v878, -inf
          %901 = vmax.xlane.f32.xlu0 %v900
          %v902 = vpop.xlane.xlu0 %901
          %v903 = vsel %vm346, %v881, -inf
          %904 = vmax.xlane.f32.xlu0 %v903
          %v905 = vpop.xlane.xlu0 %904
          %v906 = vsel %vm346, %v883, -inf
          %907 = vmax.xlane.f32.xlu0 %v906
          %v908 = vpop.xlane.xlu0 %907
          %v909 = vsub.f32 %v866, %v887
          %v910 = vsub.f32 %v868, %v890
          %v911 = vsub.f32 %v871, %v893
          %v912 = vsub.f32 %v873, %v896
          %v913 = vsub.f32 %v876, %v899
          %v914 = vsub.f32 %v878, %v902
          %v915 = vsub.f32 %v881, %v905
          %v916 = vsub.f32 %v883, %v908
          %v917 = vmul.f32 %v909, 1.442695
          %v918 = vpow.pop %v917
          %v919 = vmul.f32 %v910, 1.442695
          %v920 = vpow.pop %v919
          %v921 = vmul.f32 %v911, 1.442695
          %v922 = vpow.pop %v921
          %v923 = vmul.f32 %v912, 1.442695
          %v924 = vpow.pop %v923
          %v925 = vmul.f32 %v913, 1.442695
          %v926 = vpow.pop %v925
          %v927 = vmul.f32 %v914, 1.442695
          %v928 = vpow.pop %v927
          %v929 = vmul.f32 %v915, 1.442695
          %v930 = vpow.pop %v929
          %v931 = vmul.f32 %v916, 1.442695
          %v932 = vpow.pop %v931
          %v933 = vsel %vm346, %v918, 0.0
          %934 = vadd.xlane.f32.xlu0 %v933
          %v935 = vpop.xlane.xlu0 %934
          %v936 = vsel %vm346, %v920, 0.0
          %937 = vadd.xlane.f32.xlu0 %v936
          %v938 = vpop.xlane.xlu0 %937
          %v939 = vsel %vm346, %v922, 0.0
          %940 = vadd.xlane.f32.xlu0 %v939
          %v941 = vpop.xlane.xlu0 %940
          %v942 = vsel %vm346, %v924, 0.0
          %943 = vadd.xlane.f32.xlu0 %v942
          %v944 = vpop.xlane.xlu0 %943
          %v945 = vsel %vm346, %v926, 0.0
          %946 = vadd.xlane.f32.xlu0 %v945
          %v947 = vpop.xlane.xlu0 %946
          %v948 = vsel %vm346, %v928, 0.0
          %949 = vadd.xlane.f32.xlu0 %v948
          %v950 = vpop.xlane.xlu0 %949
          %v951 = vsel %vm346, %v930, 0.0
          %952 = vadd.xlane.f32.xlu0 %v951
          %v953 = vpop.xlane.xlu0 %952
          %v954 = vsel %vm346, %v932, 0.0
          %955 = vadd.xlane.f32.xlu0 %v954
          %v956 = vpop.xlane.xlu0 %955
          %v957 = vpack.c.bf16 %v920, %v918
          %v958 = vpack.c.bf16 %v924, %v922
          %v959 = vpack.c.bf16 %v928, %v926
          %v960 = vpack.c.bf16 %v932, %v930
          %s961 = sadd.s32 16, %s768
          %s962 = smul.addr %s961, 4
          %s963 = scalar_lea.vmem [#allocation3], %s962
          %v964 = vld [vmem:[%s963] sm:$0xf]
          %v965 = vld [vmem:[%s963 + $0x4] sm:$0xf]
          %v966 = vld [vmem:[%s963 + $0x8] sm:$0xf]
          %v967 = vld [vmem:[%s963 + $0xc] sm:$0xf]
          %v968 = vld [vmem:[%s963 + $0x10] sm:$0xf]
          %v969 = vld [vmem:[%s963 + $0x14] sm:$0xf]
          %v970 = vld [vmem:[%s963 + $0x18] sm:$0xf]
          %v971 = vld [vmem:[%s963 + $0x1c] sm:$0xf]
          %v980 = vunpack.c.l.b16 %v964
          %v981 = vunpack.c.l.b16 %v965
          %v982 = vunpack.c.l.b16 %v966
          %v983 = vunpack.c.l.b16 %v967
          %v984 = vunpack.c.l.b16 %v968
          %v985 = vunpack.c.l.b16 %v969
          %v986 = vunpack.c.l.b16 %v970
          %v987 = vunpack.c.l.b16 %v971
          %v988 = vpack.c.b16 %v981, %v980
          %v989 = vpack.c.b16 %v983, %v982
          %v990 = vpack.c.b16 %v985, %v984
          %v991 = vpack.c.b16 %v987, %v986
          %v997 = vsel %vm346, %v957, 0
          %v1000 = vsel %vm346, %v958, 0
          %v1003 = vsel %vm346, %v959, 0
          %v1006 = vsel %vm346, %v960, 0
          %1008 = vmatpush.bf16.msra.mxu0 0
          %1009 = vmatpush.bf16.msra.mxu0 0
          %1010 = vmatpush.bf16.msra.mxu0 0
          %1011 = vmatpush.bf16.msra.mxu0 0
          %1012 = vmatpush.bf16.msra.mxu0 %v991
          %1013 = vmatpush.bf16.msra.mxu0 %v990
          %1014 = vmatpush.bf16.msra.mxu0 %v989
          %1015 = vmatpush.bf16.msra.mxu0 %v988
          %1016 = vmatmul.bf16.gmra.mxu0 %v997
          %v1017 = vpop.f32.mrf.mxu0
          %v1018 = vadd.f32 0.0, %v1017
          %v1019 = vpop.f32.mrf.mxu0
          %v1020 = vadd.f32 0.0, %v1019
          %1021 = vmatmul.bf16.gmra.mxu0 %v1000
          %v1022 = vpop.f32.mrf.mxu0
          %v1023 = vadd.f32 0.0, %v1022
          %v1024 = vpop.f32.mrf.mxu0
          %v1025 = vadd.f32 0.0, %v1024
          %1026 = vmatmul.bf16.gmra.mxu0 %v1003
          %v1027 = vpop.f32.mrf.mxu0
          %v1028 = vadd.f32 0.0, %v1027
          %v1029 = vpop.f32.mrf.mxu0
          %v1030 = vadd.f32 0.0, %v1029
          %1031 = vmatmul.bf16.gmra.mxu0 %v1006
          %v1032 = vpop.f32.mrf.mxu0
          %v1033 = vadd.f32 0.0, %v1032
          %v1034 = vpop.f32.mrf.mxu0
          %v1035 = vadd.f32 0.0, %v1034
          %1036 = vdwg.mxu0
          %v1037 = vrcp.pop %v935
          %v1038 = vmul.f32 %v935, %v1037
          %v1039 = vsub.f32 1.0, %v1038
          %v1040 = vmul.f32 %v1037, %v1039
          %v1041 = vadd.f32 %v1037, %v1040
          %vm1042 = vweird.f32 %v935
          %vm1043 = vweird.f32 %v1037
          %vm1044 = vmor %vm1042, %vm1043
          %v1045 = vsel %vm1044, %v1037, %v1041
          %v1046 = vand.u32 2147483647, %v935
          %vm1047 = vcmp.eq.f32.partialorder %v1046, 8.507059e+37
          %v1048 = vand.u32 %v935, 2147483648
          %v1049 = vor.u32 1.1754944e-38, %v1048
          %v1050 = vsel %vm1047, %v1049, %v1045
          %v1051 = vmul.f32 %v1018, %v1050
          %v1052 = vrcp.pop %v938
          %v1053 = vmul.f32 %v938, %v1052
          %v1054 = vsub.f32 1.0, %v1053
          %v1055 = vmul.f32 %v1052, %v1054
          %v1056 = vadd.f32 %v1052, %v1055
          %vm1057 = vweird.f32 %v938
          %vm1058 = vweird.f32 %v1052
          %vm1059 = vmor %vm1057, %vm1058
          %v1060 = vsel %vm1059, %v1052, %v1056
          %v1061 = vand.u32 2147483647, %v938
          %vm1062 = vcmp.eq.f32.partialorder %v1061, 8.507059e+37
          %v1063 = vand.u32 %v938, 2147483648
          %v1064 = vor.u32 1.1754944e-38, %v1063
          %v1065 = vsel %vm1062, %v1064, %v1060
          %v1066 = vmul.f32 %v1020, %v1065
          %v1067 = vrcp.pop %v941
          %v1068 = vmul.f32 %v941, %v1067
          %v1069 = vsub.f32 1.0, %v1068
          %v1070 = vmul.f32 %v1067, %v1069
          %v1071 = vadd.f32 %v1067, %v1070
          %vm1072 = vweird.f32 %v941
          %vm1073 = vweird.f32 %v1067
          %vm1074 = vmor %vm1072, %vm1073
          %v1075 = vsel %vm1074, %v1067, %v1071
          %v1076 = vand.u32 2147483647, %v941
          %vm1077 = vcmp.eq.f32.partialorder %v1076, 8.507059e+37
          %v1078 = vand.u32 %v941, 2147483648
          %v1079 = vor.u32 1.1754944e-38, %v1078
          %v1080 = vsel %vm1077, %v1079, %v1075
          %v1081 = vmul.f32 %v1023, %v1080
          %v1082 = vrcp.pop %v944
          %v1083 = vmul.f32 %v944, %v1082
          %v1084 = vsub.f32 1.0, %v1083
          %v1085 = vmul.f32 %v1082, %v1084
          %v1086 = vadd.f32 %v1082, %v1085
          %vm1087 = vweird.f32 %v944
          %vm1088 = vweird.f32 %v1082
          %vm1089 = vmor %vm1087, %vm1088
          %v1090 = vsel %vm1089, %v1082, %v1086
          %v1091 = vand.u32 2147483647, %v944
          %vm1092 = vcmp.eq.f32.partialorder %v1091, 8.507059e+37
          %v1093 = vand.u32 %v944, 2147483648
          %v1094 = vor.u32 1.1754944e-38, %v1093
          %v1095 = vsel %vm1092, %v1094, %v1090
          %v1096 = vmul.f32 %v1025, %v1095
          %v1097 = vrcp.pop %v947
          %v1098 = vmul.f32 %v947, %v1097
          %v1099 = vsub.f32 1.0, %v1098
          %v1100 = vmul.f32 %v1097, %v1099
          %v1101 = vadd.f32 %v1097, %v1100
          %vm1102 = vweird.f32 %v947
          %vm1103 = vweird.f32 %v1097
          %vm1104 = vmor %vm1102, %vm1103
          %v1105 = vsel %vm1104, %v1097, %v1101
          %v1106 = vand.u32 2147483647, %v947
          %vm1107 = vcmp.eq.f32.partialorder %v1106, 8.507059e+37
          %v1108 = vand.u32 %v947, 2147483648
          %v1109 = vor.u32 1.1754944e-38, %v1108
          %v1110 = vsel %vm1107, %v1109, %v1105
          %v1111 = vmul.f32 %v1028, %v1110
          %v1112 = vrcp.pop %v950
          %v1113 = vmul.f32 %v950, %v1112
          %v1114 = vsub.f32 1.0, %v1113
          %v1115 = vmul.f32 %v1112, %v1114
          %v1116 = vadd.f32 %v1112, %v1115
          %vm1117 = vweird.f32 %v950
          %vm1118 = vweird.f32 %v1112
          %vm1119 = vmor %vm1117, %vm1118
          %v1120 = vsel %vm1119, %v1112, %v1116
          %v1121 = vand.u32 2147483647, %v950
          %vm1122 = vcmp.eq.f32.partialorder %v1121, 8.507059e+37
          %v1123 = vand.u32 %v950, 2147483648
          %v1124 = vor.u32 1.1754944e-38, %v1123
          %v1125 = vsel %vm1122, %v1124, %v1120
          %v1126 = vmul.f32 %v1030, %v1125
          %v1127 = vrcp.pop %v953
          %v1128 = vmul.f32 %v953, %v1127
          %v1129 = vsub.f32 1.0, %v1128
          %v1130 = vmul.f32 %v1127, %v1129
          %v1131 = vadd.f32 %v1127, %v1130
          %vm1132 = vweird.f32 %v953
          %vm1133 = vweird.f32 %v1127
          %vm1134 = vmor %vm1132, %vm1133
          %v1135 = vsel %vm1134, %v1127, %v1131
          %v1136 = vand.u32 2147483647, %v953
          %vm1137 = vcmp.eq.f32.partialorder %v1136, 8.507059e+37
          %v1138 = vand.u32 %v953, 2147483648
          %v1139 = vor.u32 1.1754944e-38, %v1138
          %v1140 = vsel %vm1137, %v1139, %v1135
          %v1141 = vmul.f32 %v1033, %v1140
          %v1142 = vrcp.pop %v956
          %v1143 = vmul.f32 %v956, %v1142
          %v1144 = vsub.f32 1.0, %v1143
          %v1145 = vmul.f32 %v1142, %v1144
          %v1146 = vadd.f32 %v1142, %v1145
          %vm1147 = vweird.f32 %v956
          %vm1148 = vweird.f32 %v1142
          %vm1149 = vmor %vm1147, %vm1148
          %v1150 = vsel %vm1149, %v1142, %v1146
          %v1151 = vand.u32 2147483647, %v956
          %vm1152 = vcmp.eq.f32.partialorder %v1151, 8.507059e+37
          %v1153 = vand.u32 %v956, 2147483648
          %v1154 = vor.u32 1.1754944e-38, %v1153
          %v1155 = vsel %vm1152, %v1154, %v1150
          %v1156 = vmul.f32 %v1035, %v1155
          %v1157 = vpack.c.bf16 %v1066, %v1051
          %v1158 = vpack.c.bf16 %v1096, %v1081
          %v1159 = vpack.c.bf16 %v1126, %v1111
          %v1160 = vpack.c.bf16 %v1156, %v1141
          %s1161 = smul.u32 %s755, 4
          %s1162 = smul.addr %s1161, 4
          %s1163 = scalar_lea.vmem [#allocation5], %s1162
          %v1164 = vld [vmem:[%s1163] sm:$0xf]
          %v1165 = vld [vmem:[%s1163 + $0x4] sm:$0xf]
          %v1166 = vld [vmem:[%s1163 + $0x8] sm:$0xf]
          %v1167 = vld [vmem:[%s1163 + $0xc] sm:$0xf]
          %v1172 = vunpack.c.l.b16 %v1164
          %v1173 = vunpack.c.l.b16 %v1165
          %v1174 = vunpack.c.l.b16 %v1166
          %v1175 = vunpack.c.l.b16 %v1167
          %v1176 = vpack.c.b16 %v1173, %v1172
          %v1177 = vpack.c.b16 %v1175, %v1174
          %v1181 = vsel %vm831, %v1157, 0
          %v1184 = vsel %vm831, %v1158, 0
          %v1187 = vsel %vm831, %v1159, 0
          %v1190 = vsel %vm831, %v1160, 0
          %1192 = vmatpush.bf16.msra.mxu0 0
          %1193 = vmatpush.bf16.msra.mxu0 0
          %1194 = vmatpush.bf16.msra.mxu0 0
          %1195 = vmatpush.bf16.msra.mxu0 0
          %1196 = vmatpush.bf16.msra.mxu0 0
          %1197 = vmatpush.bf16.msra.mxu0 0
          %1198 = vmatpush.bf16.msra.mxu0 %v1177
          %1199 = vmatpush.bf16.msra.mxu0 %v1176
          %1200 = vmatmul.bf16.gmra.mxu0 %v1181
          %v1201 = vpop.f32.mrf.mxu0
          %v1202 = vadd.f32 0.0, %v1201
          %v1203 = vpop.f32.mrf.mxu0
          %v1204 = vadd.f32 0.0, %v1203
          %1205 = vmatmul.bf16.gmra.mxu0 %v1184
          %v1206 = vpop.f32.mrf.mxu0
          %v1207 = vadd.f32 0.0, %v1206
          %v1208 = vpop.f32.mrf.mxu0
          %v1209 = vadd.f32 0.0, %v1208
          %1210 = vmatmul.bf16.gmra.mxu0 %v1187
          %v1211 = vpop.f32.mrf.mxu0
          %v1212 = vadd.f32 0.0, %v1211
          %v1213 = vpop.f32.mrf.mxu0
          %v1214 = vadd.f32 0.0, %v1213
          %1215 = vmatmul.bf16.gmra.mxu0 %v1190
          %v1216 = vpop.f32.mrf.mxu0
          %v1217 = vadd.f32 0.0, %v1216
          %v1218 = vpop.f32.mrf.mxu0
          %v1219 = vadd.f32 0.0, %v1218
          %1220 = vdwg.mxu0
          %v1221 = vadd.f32 %v760, %v1202
          %v1222 = vadd.f32 %v761, %v1204
          %v1223 = vadd.f32 %v762, %v1207
          %v1224 = vadd.f32 %v763, %v1209
          %v1225 = vadd.f32 %v764, %v1212
          %v1226 = vadd.f32 %v765, %v1214
          %v1227 = vadd.f32 %v766, %v1217
          %v1228 = vadd.f32 %v767, %v1219
        $region68: #{tpu_custom_call.1} parent=47 // loop_footer
          %s759 = sadd.s32 1, %s755
        $region69: #{tpu_custom_call.1} parent=47 // loop_footer_branch
          %754 = sbr.rel target = $region65
        $region70: #{tpu_custom_call.1} parent=47 // loop_exit
          _
        %v1229 = vadd.f32 %v746, %v760
        %v1230 = vadd.f32 %v747, %v761
        %v1231 = vadd.f32 %v748, %v762
        %v1232 = vadd.f32 %v749, %v763
        %v1233 = vadd.f32 %v750, %v764
        %v1234 = vadd.f32 %v751, %v765
        %v1235 = vadd.f32 %v752, %v766
        %v1236 = vadd.f32 %v753, %v767
        %1237 = vst.msk [vmem:[#allocation4] sm:$0xff] %vm346, %v1229
        %1238 = vst.msk [vmem:[#allocation4 + $0x8] sm:$0xff] %vm346, %v1230
        %1239 = vst.msk [vmem:[#allocation4 + $0x10] sm:$0xff] %vm346, %v1231
        %1240 = vst.msk [vmem:[#allocation4 + $0x18] sm:$0xff] %vm346, %v1232
        %1241 = vst.msk [vmem:[#allocation4 + $0x20] sm:$0xff] %vm346, %v1233
        %1242 = vst.msk [vmem:[#allocation4 + $0x28] sm:$0xff] %vm346, %v1234
        %1243 = vst.msk [vmem:[#allocation4 + $0x30] sm:$0xff] %vm346, %v1235
        %1244 = vst.msk [vmem:[#allocation4 + $0x38] sm:$0xff] %vm346, %v1236
        %v1245 = vsel %vm346, %v1229, 0.0
        %v1246 = vsel %vm346, %v1230, 0.0
        %v1247 = vadd.f32 %v1245, %v1246
        %v1248 = vsel %vm346, %v1231, 0.0
        %v1249 = vadd.f32 %v1247, %v1248
        %v1250 = vsel %vm346, %v1232, 0.0
        %v1251 = vadd.f32 %v1249, %v1250
        %v1252 = vsel %vm346, %v1233, 0.0
        %v1253 = vadd.f32 %v1251, %v1252
        %v1254 = vsel %vm346, %v1234, 0.0
        %v1255 = vadd.f32 %v1253, %v1254
        %v1256 = vsel %vm346, %v1235, 0.0
        %v1257 = vadd.f32 %v1255, %v1256
        %v1258 = vsel %vm346, %v1236, 0.0
        %v1259 = vadd.f32 %v1257, %v1258
        %v1260 = vrot.slane %v1259, 4
        %v1261 = vadd.f32 %v1259, %v1260
        %v1262 = vrot.slane %v1261, 2
        %v1263 = vadd.f32 %v1261, %v1262
        %v1264 = vrot.slane %v1263, 1
        %v1265 = vadd.f32 %v1263, %v1264
        %v1266 = vmul.f32 %v1229, %v1229
        %v1267 = vmul.f32 %v1230, %v1230
        %v1268 = vmul.f32 %v1231, %v1231
        %v1269 = vmul.f32 %v1232, %v1232
        %v1270 = vmul.f32 %v1233, %v1233
        %v1271 = vmul.f32 %v1234, %v1234
        %v1272 = vmul.f32 %v1235, %v1235
        %v1273 = vmul.f32 %v1236, %v1236
        %v1274 = vsel %vm346, %v1266, 0.0
        %v1275 = vsel %vm346, %v1267, 0.0
        %v1276 = vadd.f32 %v1274, %v1275
        %v1277 = vsel %vm346, %v1268, 0.0
        %v1278 = vadd.f32 %v1276, %v1277
        %v1279 = vsel %vm346, %v1269, 0.0
        %v1280 = vadd.f32 %v1278, %v1279
        %v1281 = vsel %vm346, %v1270, 0.0
        %v1282 = vadd.f32 %v1280, %v1281
        %v1283 = vsel %vm346, %v1271, 0.0
        %v1284 = vadd.f32 %v1282, %v1283
        %v1285 = vsel %vm346, %v1272, 0.0
        %v1286 = vadd.f32 %v1284, %v1285
        %v1287 = vsel %vm346, %v1273, 0.0
        %v1288 = vadd.f32 %v1286, %v1287
        %v1289 = vrot.slane %v1288, 4
        %v1290 = vadd.f32 %v1288, %v1289
        %v1291 = vrot.slane %v1290, 2
        %v1292 = vadd.f32 %v1290, %v1291
        %v1293 = vrot.slane %v1292, 1
        %v1294 = vadd.f32 %v1292, %v1293
        %v1295 = vsel %vm397, %v1265, %v1294
        %v1296 = vadd.f32 %v1295, 0.0
        %v1298 = vsel %vm346, %v1296, 0
        %1300 = vmatpush.msra.mxu0 0.0
        %1301 = vmatpush.msra.mxu0 0.0
        %1302 = vmatpush.msra.mxu0 0.0
        %1303 = vmatpush.msra.mxu0 0.0
        %1304 = vmatpush.msra.mxu0 0.0
        %1305 = vmatpush.msra.mxu0 0.0
        %1306 = vmatpush.msra.mxu0 0.0
        %1307 = vmatpush.msra.mxu0 0.0
        %1308 = vmatpush.msra.mxu0 %v336
        %1309 = vmatpush.msra.mxu0 %v335
        %1310 = vmatpush.msra.mxu0 %v334
        %1311 = vmatpush.msra.mxu0 %v333
        %1312 = vmatpush.msra.mxu0 %v332
        %1313 = vmatpush.msra.mxu0 %v331
        %1314 = vmatpush.msra.mxu0 %v330
        %1315 = vmatpush.msra.mxu0 %v329
        %1316 = vmatmul.f32.gmra.mxu0 %v1298
        %v1317 = vpop.f32.mrf.mxu0
        %v1318 = vadd.f32 0.0, %v1317
        %1319 = vdwg.mxu0
        %v1320 = vmul.f32 %v1318, 0.001953125
        %v1321 = vmul.f32 %v1320, %v1320
        %v1323 = vrot.slane %v1321, 7
        %v1325 = vsub.f32 %v1320, %v1323
        %v1326 = vmax.f32 %v1325, 0.0
        %v1327 = vadd.f32 %v1326, 1e-05
        %v1328 = vrsqrt.pop %v1327
        %v1329 = vmul.f32 %v1328, %v1327
        %v1330 = vmul.f32 %v1329, %v1328
        %v1331 = vmul.f32 0.5, %v1330
        %v1332 = vsub.f32 1.5, %v1331
        %v1333 = vmul.f32 %v1328, %v1332
        %vm1334 = vweird.f32 %v1327
        %vm1335 = vweird.f32 %v1328
        %vm1336 = vmor %vm1334, %vm1335
        %v1337 = vsel %vm1336, %v1328, %v1333
        %v1338 = vsel %vm397, %v1320, %v1337
        %v1340 = vsel %vm442, %v1338, 0
        %1342 = vmatpush.xpose.msra.mxu0 0.0
        %1343 = vmatpush.xpose.msra.mxu0 0.0
        %1344 = vmatpush.xpose.msra.mxu0 0.0
        %1345 = vmatpush.xpose.msra.mxu0 0.0
        %1346 = vmatpush.xpose.msra.mxu0 0.0
        %1347 = vmatpush.xpose.msra.mxu0 0.0
        %1348 = vmatpush.xpose.msra.mxu0 0.0
        %1349 = vmatpush.xpose.msra.mxu0 0.0
        %1350 = vmatpush.xpose.msra.mxu0 %v468
        %1351 = vmatpush.xpose.msra.mxu0 %v465
        %1352 = vmatpush.xpose.msra.mxu0 %v462
        %1353 = vmatpush.xpose.msra.mxu0 %v459
        %1354 = vmatpush.xpose.msra.mxu0 %v456
        %1355 = vmatpush.xpose.msra.mxu0 %v453
        %1356 = vmatpush.xpose.msra.mxu0 %v450
        %1357 = vmatpush.xpose.msra.mxu0 %v447
        %1358 = vmatmul.f32.gmra.mxu0 %v1340
        %v1359 = vpop.f32.mrf.mxu0
        %v1360 = vadd.f32 0.0, %v1359
        %1361 = vdwg.mxu0
        %v1362 = vrot.slane %v490, 1
        %v1364 = vmul.f32 %v1360, %v1362
        %v1366 = vrot.slane %v1364, 1
        %v1368 = vmul.f32 %v1360, %v1366
        %v1370 = vrot.slane %v1368, 5
        %v1372 = vsub.f32 %v337, %v1370
        %v1373 = vld [vmem:[#allocation4] sm:$0xff]
        %v1374 = vld [vmem:[#allocation4 + $0x8] sm:$0xff]
        %v1375 = vld [vmem:[#allocation4 + $0x10] sm:$0xff]
        %v1376 = vld [vmem:[#allocation4 + $0x18] sm:$0xff]
        %v1377 = vld [vmem:[#allocation4 + $0x20] sm:$0xff]
        %v1378 = vld [vmem:[#allocation4 + $0x28] sm:$0xff]
        %v1379 = vld [vmem:[#allocation4 + $0x30] sm:$0xff]
        %v1380 = vld [vmem:[#allocation4 + $0x38] sm:$0xff]
        %v1381 = vperm.slane %v1364, 1
        %v1382 = vmul.f32 %v1373, %v1381
        %v1383 = vmul.f32 %v1374, %v1381
        %v1384 = vmul.f32 %v1375, %v1381
        %v1385 = vmul.f32 %v1376, %v1381
        %v1386 = vmul.f32 %v1377, %v1381
        %v1387 = vmul.f32 %v1378, %v1381
        %v1388 = vmul.f32 %v1379, %v1381
        %v1389 = vmul.f32 %v1380, %v1381
        %v1390 = vperm.slane %v1372, 3
        %v1391 = vadd.f32 %v1382, %v1390
        %v1392 = vadd.f32 %v1383, %v1390
        %v1393 = vadd.f32 %v1384, %v1390
        %v1394 = vadd.f32 %v1385, %v1390
        %v1395 = vadd.f32 %v1386, %v1390
        %v1396 = vadd.f32 %v1387, %v1390
        %v1397 = vadd.f32 %v1388, %v1390
        %v1398 = vadd.f32 %v1389, %v1390
        %v1399 = vpack.c.bf16 %v1392, %v1391
        %v1400 = vpack.c.bf16 %v1394, %v1393
        %v1401 = vpack.c.bf16 %v1396, %v1395
        %v1402 = vpack.c.bf16 %v1398, %v1397
        %v1403 = vld [vmem:[#allocation8] sm:$0xff]
        %v1404 = vld [vmem:[#allocation8 + $0x8] sm:$0xff]
        %v1405 = vld [vmem:[#allocation8 + $0x10] sm:$0xff]
        %v1406 = vld [vmem:[#allocation8 + $0x18] sm:$0xff]
        %v1407 = vld [vmem:[#allocation8 + $0x20] sm:$0xff]
        %v1408 = vld [vmem:[#allocation8 + $0x28] sm:$0xff]
        %v1409 = vld [vmem:[#allocation8 + $0x30] sm:$0xff]
        %v1410 = vld [vmem:[#allocation8 + $0x38] sm:$0xff]
        %v1419 = vunpack.c.l.b16 %v1403
        %v1420 = vunpack.c.h.b16 %v1403
        %v1421 = vunpack.c.l.b16 %v1404
        %v1422 = vunpack.c.h.b16 %v1404
        %v1423 = vunpack.c.l.b16 %v1405
        %v1424 = vunpack.c.h.b16 %v1405
        %v1425 = vunpack.c.l.b16 %v1406
        %v1426 = vunpack.c.h.b16 %v1406
        %v1427 = vunpack.c.l.b16 %v1407
        %v1428 = vunpack.c.h.b16 %v1407
        %v1429 = vunpack.c.l.b16 %v1408
        %v1430 = vunpack.c.h.b16 %v1408
        %v1431 = vunpack.c.l.b16 %v1409
        %v1432 = vunpack.c.h.b16 %v1409
        %v1433 = vunpack.c.l.b16 %v1410
        %v1434 = vunpack.c.h.b16 %v1410
        %v1435 = vpack.c.b16 %v1421, %v1419
        %v1436 = vpack.c.b16 %v1422, %v1420
        %v1437 = vpack.c.b16 %v1425, %v1423
        %v1438 = vpack.c.b16 %v1426, %v1424
        %v1439 = vpack.c.b16 %v1429, %v1427
        %v1440 = vpack.c.b16 %v1430, %v1428
        %v1441 = vpack.c.b16 %v1433, %v1431
        %v1442 = vpack.c.b16 %v1434, %v1432
        %v1452 = vsel %vm346, %v1399, 0
        %v1455 = vsel %vm346, %v1400, 0
        %v1458 = vsel %vm346, %v1401, 0
        %v1461 = vsel %vm346, %v1402, 0
        %1463 = vmatpush.bf16.msra.mxu0 0
        %1464 = vmatpush.bf16.msra.mxu0 0
        %1465 = vmatpush.bf16.msra.mxu0 0
        %1466 = vmatpush.bf16.msra.mxu0 0
        %1467 = vmatpush.bf16.msra.mxu0 %v1441
        %1468 = vmatpush.bf16.msra.mxu0 %v1439
        %1469 = vmatpush.bf16.msra.mxu0 %v1437
        %1470 = vmatpush.bf16.msra.mxu0 %v1435
        %1471 = vmatmul.bf16.gmra.mxu0 %v1452
        %v1472 = vpop.f32.mrf.mxu0
        %v1473 = vadd.f32 0.0, %v1472
        %v1474 = vpop.f32.mrf.mxu0
        %v1475 = vadd.f32 0.0, %v1474
        %1476 = vmatmul.bf16.gmra.mxu0 %v1455
        %v1477 = vpop.f32.mrf.mxu0
        %v1478 = vadd.f32 0.0, %v1477
        %v1479 = vpop.f32.mrf.mxu0
        %v1480 = vadd.f32 0.0, %v1479
        %1481 = vmatmul.bf16.gmra.mxu0 %v1458
        %v1482 = vpop.f32.mrf.mxu0
        %v1483 = vadd.f32 0.0, %v1482
        %v1484 = vpop.f32.mrf.mxu0
        %v1485 = vadd.f32 0.0, %v1484
        %1486 = vmatmul.bf16.gmra.mxu0 %v1461
        %v1487 = vpop.f32.mrf.mxu0
        %v1488 = vadd.f32 0.0, %v1487
        %v1489 = vpop.f32.mrf.mxu0
        %v1490 = vadd.f32 0.0, %v1489
        %1491 = vdwg.mxu0
        %1492 = vmatpush.bf16.msra.mxu0 0
        %1493 = vmatpush.bf16.msra.mxu0 0
        %1494 = vmatpush.bf16.msra.mxu0 0
        %1495 = vmatpush.bf16.msra.mxu0 0
        %1496 = vmatpush.bf16.msra.mxu0 %v1442
        %1497 = vmatpush.bf16.msra.mxu0 %v1440
        %1498 = vmatpush.bf16.msra.mxu0 %v1438
        %1499 = vmatpush.bf16.msra.mxu0 %v1436
        %1500 = vmatmul.bf16.gmra.mxu0 %v1452
        %v1501 = vpop.f32.mrf.mxu0
        %v1502 = vadd.f32 0.0, %v1501
        %v1503 = vpop.f32.mrf.mxu0
        %v1504 = vadd.f32 0.0, %v1503
        %1505 = vmatmul.bf16.gmra.mxu0 %v1455
        %v1506 = vpop.f32.mrf.mxu0
        %v1507 = vadd.f32 0.0, %v1506
        %v1508 = vpop.f32.mrf.mxu0
        %v1509 = vadd.f32 0.0, %v1508
        %1510 = vmatmul.bf16.gmra.mxu0 %v1458
        %v1511 = vpop.f32.mrf.mxu0
        %v1512 = vadd.f32 0.0, %v1511
        %v1513 = vpop.f32.mrf.mxu0
        %v1514 = vadd.f32 0.0, %v1513
        %1515 = vmatmul.bf16.gmra.mxu0 %v1461
        %v1516 = vpop.f32.mrf.mxu0
        %v1517 = vadd.f32 0.0, %v1516
        %v1518 = vpop.f32.mrf.mxu0
        %v1519 = vadd.f32 0.0, %v1518
        %1520 = vdwg.mxu0
        %v1521 = vxor.u32 %v1473, 2147483648
        %v1522 = vxor.u32 %v1502, 2147483648
        %v1523 = vxor.u32 %v1475, 2147483648
        %v1524 = vxor.u32 %v1504, 2147483648
        %v1525 = vxor.u32 %v1478, 2147483648
        %v1526 = vxor.u32 %v1507, 2147483648
        %v1527 = vxor.u32 %v1480, 2147483648
        %v1528 = vxor.u32 %v1509, 2147483648
        %v1529 = vxor.u32 %v1483, 2147483648
        %v1530 = vxor.u32 %v1512, 2147483648
        %v1531 = vxor.u32 %v1485, 2147483648
        %v1532 = vxor.u32 %v1514, 2147483648
        %v1533 = vxor.u32 %v1488, 2147483648
        %v1534 = vxor.u32 %v1517, 2147483648
        %v1535 = vxor.u32 %v1490, 2147483648
        %v1536 = vxor.u32 %v1519, 2147483648
        %v1537 = vmul.f32 %v1521, 1.442695
        %v1538 = vpow.pop %v1537
        %v1539 = vmul.f32 %v1522, 1.442695
        %v1540 = vpow.pop %v1539
        %v1541 = vmul.f32 %v1523, 1.442695
        %v1542 = vpow.pop %v1541
        %v1543 = vmul.f32 %v1524, 1.442695
        %v1544 = vpow.pop %v1543
        %v1545 = vmul.f32 %v1525, 1.442695
        %v1546 = vpow.pop %v1545
        %v1547 = vmul.f32 %v1526, 1.442695
        %v1548 = vpow.pop %v1547
        %v1549 = vmul.f32 %v1527, 1.442695
        %v1550 = vpow.pop %v1549
        %v1551 = vmul.f32 %v1528, 1.442695
        %v1552 = vpow.pop %v1551
        %v1553 = vmul.f32 %v1529, 1.442695
        %v1554 = vpow.pop %v1553
        %v1555 = vmul.f32 %v1530, 1.442695
        %v1556 = vpow.pop %v1555
        %v1557 = vmul.f32 %v1531, 1.442695
        %v1558 = vpow.pop %v1557
        %v1559 = vmul.f32 %v1532, 1.442695
        %v1560 = vpow.pop %v1559
        %v1561 = vmul.f32 %v1533, 1.442695
        %v1562 = vpow.pop %v1561
        %v1563 = vmul.f32 %v1534, 1.442695
        %v1564 = vpow.pop %v1563
        %v1565 = vmul.f32 %v1535, 1.442695
        %v1566 = vpow.pop %v1565
        %v1567 = vmul.f32 %v1536, 1.442695
        %v1568 = vpow.pop %v1567
        %v1569 = vadd.f32 %v1538, 1.0
        %v1570 = vadd.f32 %v1540, 1.0
        %v1571 = vadd.f32 %v1542, 1.0
        %v1572 = vadd.f32 %v1544, 1.0
        %v1573 = vadd.f32 %v1546, 1.0
        %v1574 = vadd.f32 %v1548, 1.0
        %v1575 = vadd.f32 %v1550, 1.0
        %v1576 = vadd.f32 %v1552, 1.0
        %v1577 = vadd.f32 %v1554, 1.0
        %v1578 = vadd.f32 %v1556, 1.0
        %v1579 = vadd.f32 %v1558, 1.0
        %v1580 = vadd.f32 %v1560, 1.0
        %v1581 = vadd.f32 %v1562, 1.0
        %v1582 = vadd.f32 %v1564, 1.0
        %v1583 = vadd.f32 %v1566, 1.0
        %v1584 = vadd.f32 %v1568, 1.0
        %v1585 = vrcp.pop %v1569
        %v1586 = vmul.f32 %v1569, %v1585
        %v1587 = vsub.f32 1.0, %v1586
        %v1588 = vmul.f32 %v1585, %v1587
        %v1589 = vadd.f32 %v1585, %v1588
        %vm1590 = vweird.f32 %v1569
        %vm1591 = vweird.f32 %v1585
        %vm1592 = vmor %vm1590, %vm1591
        %v1593 = vsel %vm1592, %v1585, %v1589
        %v1594 = vand.u32 2147483647, %v1569
        %vm1595 = vcmp.eq.f32.partialorder %v1594, 8.507059e+37
        %v1596 = vand.u32 %v1569, 2147483648
        %v1597 = vor.u32 1.1754944e-38, %v1596
        %v1598 = vsel %vm1595, %v1597, %v1593
        %v1599 = vmul.f32 1.0, %v1598
        %v1600 = vrcp.pop %v1570
        %v1601 = vmul.f32 %v1570, %v1600
        %v1602 = vsub.f32 1.0, %v1601
        %v1603 = vmul.f32 %v1600, %v1602
        %v1604 = vadd.f32 %v1600, %v1603
        %vm1605 = vweird.f32 %v1570
        %vm1606 = vweird.f32 %v1600
        %vm1607 = vmor %vm1605, %vm1606
        %v1608 = vsel %vm1607, %v1600, %v1604
        %v1609 = vand.u32 2147483647, %v1570
        %vm1610 = vcmp.eq.f32.partialorder %v1609, 8.507059e+37
        %v1611 = vand.u32 %v1570, 2147483648
        %v1612 = vor.u32 1.1754944e-38, %v1611
        %v1613 = vsel %vm1610, %v1612, %v1608
        %v1614 = vmul.f32 1.0, %v1613
        %v1615 = vrcp.pop %v1571
        %v1616 = vmul.f32 %v1571, %v1615
        %v1617 = vsub.f32 1.0, %v1616
        %v1618 = vmul.f32 %v1615, %v1617
        %v1619 = vadd.f32 %v1615, %v1618
        %vm1620 = vweird.f32 %v1571
        %vm1621 = vweird.f32 %v1615
        %vm1622 = vmor %vm1620, %vm1621
        %v1623 = vsel %vm1622, %v1615, %v1619
        %v1624 = vand.u32 2147483647, %v1571
        %vm1625 = vcmp.eq.f32.partialorder %v1624, 8.507059e+37
        %v1626 = vand.u32 %v1571, 2147483648
        %v1627 = vor.u32 1.1754944e-38, %v1626
        %v1628 = vsel %vm1625, %v1627, %v1623
        %v1629 = vmul.f32 1.0, %v1628
        %v1630 = vrcp.pop %v1572
        %v1631 = vmul.f32 %v1572, %v1630
        %v1632 = vsub.f32 1.0, %v1631
        %v1633 = vmul.f32 %v1630, %v1632
        %v1634 = vadd.f32 %v1630, %v1633
        %vm1635 = vweird.f32 %v1572
        %vm1636 = vweird.f32 %v1630
        %vm1637 = vmor %vm1635, %vm1636
        %v1638 = vsel %vm1637, %v1630, %v1634
        %v1639 = vand.u32 2147483647, %v1572
        %vm1640 = vcmp.eq.f32.partialorder %v1639, 8.507059e+37
        %v1641 = vand.u32 %v1572, 2147483648
        %v1642 = vor.u32 1.1754944e-38, %v1641
        %v1643 = vsel %vm1640, %v1642, %v1638
        %v1644 = vmul.f32 1.0, %v1643
        %v1645 = vrcp.pop %v1573
        %v1646 = vmul.f32 %v1573, %v1645
        %v1647 = vsub.f32 1.0, %v1646
        %v1648 = vmul.f32 %v1645, %v1647
        %v1649 = vadd.f32 %v1645, %v1648
        %vm1650 = vweird.f32 %v1573
        %vm1651 = vweird.f32 %v1645
        %vm1652 = vmor %vm1650, %vm1651
        %v1653 = vsel %vm1652, %v1645, %v1649
        %v1654 = vand.u32 2147483647, %v1573
        %vm1655 = vcmp.eq.f32.partialorder %v1654, 8.507059e+37
        %v1656 = vand.u32 %v1573, 2147483648
        %v1657 = vor.u32 1.1754944e-38, %v1656
        %v1658 = vsel %vm1655, %v1657, %v1653
        %v1659 = vmul.f32 1.0, %v1658
        %v1660 = vrcp.pop %v1574
        %v1661 = vmul.f32 %v1574, %v1660
        %v1662 = vsub.f32 1.0, %v1661
        %v1663 = vmul.f32 %v1660, %v1662
        %v1664 = vadd.f32 %v1660, %v1663
        %vm1665 = vweird.f32 %v1574
        %vm1666 = vweird.f32 %v1660
        %vm1667 = vmor %vm1665, %vm1666
        %v1668 = vsel %vm1667, %v1660, %v1664
        %v1669 = vand.u32 2147483647, %v1574
        %vm1670 = vcmp.eq.f32.partialorder %v1669, 8.507059e+37
        %v1671 = vand.u32 %v1574, 2147483648
        %v1672 = vor.u32 1.1754944e-38, %v1671
        %v1673 = vsel %vm1670, %v1672, %v1668
        %v1674 = vmul.f32 1.0, %v1673
        %v1675 = vrcp.pop %v1575
        %v1676 = vmul.f32 %v1575, %v1675
        %v1677 = vsub.f32 1.0, %v1676
        %v1678 = vmul.f32 %v1675, %v1677
        %v1679 = vadd.f32 %v1675, %v1678
        %vm1680 = vweird.f32 %v1575
        %vm1681 = vweird.f32 %v1675
        %vm1682 = vmor %vm1680, %vm1681
        %v1683 = vsel %vm1682, %v1675, %v1679
        %v1684 = vand.u32 2147483647, %v1575
        %vm1685 = vcmp.eq.f32.partialorder %v1684, 8.507059e+37
        %v1686 = vand.u32 %v1575, 2147483648
        %v1687 = vor.u32 1.1754944e-38, %v1686
        %v1688 = vsel %vm1685, %v1687, %v1683
        %v1689 = vmul.f32 1.0, %v1688
        %v1690 = vrcp.pop %v1576
        %v1691 = vmul.f32 %v1576, %v1690
        %v1692 = vsub.f32 1.0, %v1691
        %v1693 = vmul.f32 %v1690, %v1692
        %v1694 = vadd.f32 %v1690, %v1693
        %vm1695 = vweird.f32 %v1576
        %vm1696 = vweird.f32 %v1690
        %vm1697 = vmor %vm1695, %vm1696
        %v1698 = vsel %vm1697, %v1690, %v1694
        %v1699 = vand.u32 2147483647, %v1576
        %vm1700 = vcmp.eq.f32.partialorder %v1699, 8.507059e+37
        %v1701 = vand.u32 %v1576, 2147483648
        %v1702 = vor.u32 1.1754944e-38, %v1701
        %v1703 = vsel %vm1700, %v1702, %v1698
        %v1704 = vmul.f32 1.0, %v1703
        %v1705 = vrcp.pop %v1577
        %v1706 = vmul.f32 %v1577, %v1705
        %v1707 = vsub.f32 1.0, %v1706
        %v1708 = vmul.f32 %v1705, %v1707
        %v1709 = vadd.f32 %v1705, %v1708
        %vm1710 = vweird.f32 %v1577
        %vm1711 = vweird.f32 %v1705
        %vm1712 = vmor %vm1710, %vm1711
        %v1713 = vsel %vm1712, %v1705, %v1709
        %v1714 = vand.u32 2147483647, %v1577
        %vm1715 = vcmp.eq.f32.partialorder %v1714, 8.507059e+37
        %v1716 = vand.u32 %v1577, 2147483648
        %v1717 = vor.u32 1.1754944e-38, %v1716
        %v1718 = vsel %vm1715, %v1717, %v1713
        %v1719 = vmul.f32 1.0, %v1718
        %v1720 = vrcp.pop %v1578
        %v1721 = vmul.f32 %v1578, %v1720
        %v1722 = vsub.f32 1.0, %v1721
        %v1723 = vmul.f32 %v1720, %v1722
        %v1724 = vadd.f32 %v1720, %v1723
        %vm1725 = vweird.f32 %v1578
        %vm1726 = vweird.f32 %v1720
        %vm1727 = vmor %vm1725, %vm1726
        %v1728 = vsel %vm1727, %v1720, %v1724
        %v1729 = vand.u32 2147483647, %v1578
        %vm1730 = vcmp.eq.f32.partialorder %v1729, 8.507059e+37
        %v1731 = vand.u32 %v1578, 2147483648
        %v1732 = vor.u32 1.1754944e-38, %v1731
        %v1733 = vsel %vm1730, %v1732, %v1728
        %v1734 = vmul.f32 1.0, %v1733
        %v1735 = vrcp.pop %v1579
        %v1736 = vmul.f32 %v1579, %v1735
        %v1737 = vsub.f32 1.0, %v1736
        %v1738 = vmul.f32 %v1735, %v1737
        %v1739 = vadd.f32 %v1735, %v1738
        %vm1740 = vweird.f32 %v1579
        %vm1741 = vweird.f32 %v1735
        %vm1742 = vmor %vm1740, %vm1741
        %v1743 = vsel %vm1742, %v1735, %v1739
        %v1744 = vand.u32 2147483647, %v1579
        %vm1745 = vcmp.eq.f32.partialorder %v1744, 8.507059e+37
        %v1746 = vand.u32 %v1579, 2147483648
        %v1747 = vor.u32 1.1754944e-38, %v1746
        %v1748 = vsel %vm1745, %v1747, %v1743
        %v1749 = vmul.f32 1.0, %v1748
        %v1750 = vrcp.pop %v1580
        %v1751 = vmul.f32 %v1580, %v1750
        %v1752 = vsub.f32 1.0, %v1751
        %v1753 = vmul.f32 %v1750, %v1752
        %v1754 = vadd.f32 %v1750, %v1753
        %vm1755 = vweird.f32 %v1580
        %vm1756 = vweird.f32 %v1750
        %vm1757 = vmor %vm1755, %vm1756
        %v1758 = vsel %vm1757, %v1750, %v1754
        %v1759 = vand.u32 2147483647, %v1580
        %vm1760 = vcmp.eq.f32.partialorder %v1759, 8.507059e+37
        %v1761 = vand.u32 %v1580, 2147483648
        %v1762 = vor.u32 1.1754944e-38, %v1761
        %v1763 = vsel %vm1760, %v1762, %v1758
        %v1764 = vmul.f32 1.0, %v1763
        %v1765 = vrcp.pop %v1581
        %v1766 = vmul.f32 %v1581, %v1765
        %v1767 = vsub.f32 1.0, %v1766
        %v1768 = vmul.f32 %v1765, %v1767
        %v1769 = vadd.f32 %v1765, %v1768
        %vm1770 = vweird.f32 %v1581
        %vm1771 = vweird.f32 %v1765
        %vm1772 = vmor %vm1770, %vm1771
        %v1773 = vsel %vm1772, %v1765, %v1769
        %v1774 = vand.u32 2147483647, %v1581
        %vm1775 = vcmp.eq.f32.partialorder %v1774, 8.507059e+37
        %v1776 = vand.u32 %v1581, 2147483648
        %v1777 = vor.u32 1.1754944e-38, %v1776
        %v1778 = vsel %vm1775, %v1777, %v1773
        %v1779 = vmul.f32 1.0, %v1778
        %v1780 = vrcp.pop %v1582
        %v1781 = vmul.f32 %v1582, %v1780
        %v1782 = vsub.f32 1.0, %v1781
        %v1783 = vmul.f32 %v1780, %v1782
        %v1784 = vadd.f32 %v1780, %v1783
        %vm1785 = vweird.f32 %v1582
        %vm1786 = vweird.f32 %v1780
        %vm1787 = vmor %vm1785, %vm1786
        %v1788 = vsel %vm1787, %v1780, %v1784
        %v1789 = vand.u32 2147483647, %v1582
        %vm1790 = vcmp.eq.f32.partialorder %v1789, 8.507059e+37
        %v1791 = vand.u32 %v1582, 2147483648
        %v1792 = vor.u32 1.1754944e-38, %v1791
        %v1793 = vsel %vm1790, %v1792, %v1788
        %v1794 = vmul.f32 1.0, %v1793
        %v1795 = vrcp.pop %v1583
        %v1796 = vmul.f32 %v1583, %v1795
        %v1797 = vsub.f32 1.0, %v1796
        %v1798 = vmul.f32 %v1795, %v1797
        %v1799 = vadd.f32 %v1795, %v1798
        %vm1800 = vweird.f32 %v1583
        %vm1801 = vweird.f32 %v1795
        %vm1802 = vmor %vm1800, %vm1801
        %v1803 = vsel %vm1802, %v1795, %v1799
        %v1804 = vand.u32 2147483647, %v1583
        %vm1805 = vcmp.eq.f32.partialorder %v1804, 8.507059e+37
        %v1806 = vand.u32 %v1583, 2147483648
        %v1807 = vor.u32 1.1754944e-38, %v1806
        %v1808 = vsel %vm1805, %v1807, %v1803
        %v1809 = vmul.f32 1.0, %v1808
        %v1810 = vrcp.pop %v1584
        %v1811 = vmul.f32 %v1584, %v1810
        %v1812 = vsub.f32 1.0, %v1811
        %v1813 = vmul.f32 %v1810, %v1812
        %v1814 = vadd.f32 %v1810, %v1813
        %vm1815 = vweird.f32 %v1584
        %vm1816 = vweird.f32 %v1810
        %vm1817 = vmor %vm1815, %vm1816
        %v1818 = vsel %vm1817, %v1810, %v1814
        %v1819 = vand.u32 2147483647, %v1584
        %vm1820 = vcmp.eq.f32.partialorder %v1819, 8.507059e+37
        %v1821 = vand.u32 %v1584, 2147483648
        %v1822 = vor.u32 1.1754944e-38, %v1821
        %v1823 = vsel %vm1820, %v1822, %v1818
        %v1824 = vmul.f32 1.0, %v1823
        %v1825 = vmul.f32 %v1473, %v1599
        %v1826 = vmul.f32 %v1502, %v1614
        %v1827 = vmul.f32 %v1475, %v1629
        %v1828 = vmul.f32 %v1504, %v1644
        %v1829 = vmul.f32 %v1478, %v1659
        %v1830 = vmul.f32 %v1507, %v1674
        %v1831 = vmul.f32 %v1480, %v1689
        %v1832 = vmul.f32 %v1509, %v1704
        %v1833 = vmul.f32 %v1483, %v1719
        %v1834 = vmul.f32 %v1512, %v1734
        %v1835 = vmul.f32 %v1485, %v1749
        %v1836 = vmul.f32 %v1514, %v1764
        %v1837 = vmul.f32 %v1488, %v1779
        %v1838 = vmul.f32 %v1517, %v1794
        %v1839 = vmul.f32 %v1490, %v1809
        %v1840 = vmul.f32 %v1519, %v1824
        %v1841 = vpack.c.bf16 %v1827, %v1825
        %v1842 = vpack.c.bf16 %v1828, %v1826
        %v1843 = vpack.c.bf16 %v1831, %v1829
        %v1844 = vpack.c.bf16 %v1832, %v1830
        %v1845 = vpack.c.bf16 %v1835, %v1833
        %v1846 = vpack.c.bf16 %v1836, %v1834
        %v1847 = vpack.c.bf16 %v1839, %v1837
        %v1848 = vpack.c.bf16 %v1840, %v1838
        %v1849 = vld [vmem:[%s6] sm:$0xf]
        %v1850 = vld [vmem:[%s6 + $0x4] sm:$0xf]
        %v1851 = vld [vmem:[%s6 + $0x8] sm:$0xf]
        %v1852 = vld [vmem:[%s6 + $0xc] sm:$0xf]
        %v1853 = vld [vmem:[%s6 + $0x10] sm:$0xf]
        %v1854 = vld [vmem:[%s6 + $0x14] sm:$0xf]
        %v1855 = vld [vmem:[%s6 + $0x18] sm:$0xf]
        %v1856 = vld [vmem:[%s6 + $0x1c] sm:$0xf]
        %v1857 = vld [vmem:[%s6 + $0x20] sm:$0xf]
        %v1858 = vld [vmem:[%s6 + $0x24] sm:$0xf]
        %v1859 = vld [vmem:[%s6 + $0x28] sm:$0xf]
        %v1860 = vld [vmem:[%s6 + $0x2c] sm:$0xf]
        %v1861 = vld [vmem:[%s6 + $0x30] sm:$0xf]
        %v1862 = vld [vmem:[%s6 + $0x34] sm:$0xf]
        %v1863 = vld [vmem:[%s6 + $0x38] sm:$0xf]
        %v1864 = vld [vmem:[%s6 + $0x3c] sm:$0xf]
        %v1865 = vld [vmem:[%s6 + $0x40] sm:$0xf]
        %v1866 = vld [vmem:[%s6 + $0x44] sm:$0xf]
        %v1867 = vld [vmem:[%s6 + $0x48] sm:$0xf]
        %v1868 = vld [vmem:[%s6 + $0x4c] sm:$0xf]
        %v1869 = vld [vmem:[%s6 + $0x50] sm:$0xf]
        %v1870 = vld [vmem:[%s6 + $0x54] sm:$0xf]
        %v1871 = vld [vmem:[%s6 + $0x58] sm:$0xf]
        %v1872 = vld [vmem:[%s6 + $0x5c] sm:$0xf]
        %v1873 = vld [vmem:[%s6 + $0x60] sm:$0xf]
        %v1874 = vld [vmem:[%s6 + $0x64] sm:$0xf]
        %v1875 = vld [vmem:[%s6 + $0x68] sm:$0xf]
        %v1876 = vld [vmem:[%s6 + $0x6c] sm:$0xf]
        %v1877 = vld [vmem:[%s6 + $0x70] sm:$0xf]
        %v1878 = vld [vmem:[%s6 + $0x74] sm:$0xf]
        %v1879 = vld [vmem:[%s6 + $0x78] sm:$0xf]
        %v1880 = vld [vmem:[%s6 + $0x7c] sm:$0xf]
        %v1913 = vunpack.c.l.b16 %v1849
        %v1914 = vunpack.c.l.b16 %v1850
        %v1915 = vunpack.c.l.b16 %v1851
        %v1916 = vunpack.c.l.b16 %v1852
        %v1917 = vunpack.c.l.b16 %v1853
        %v1918 = vunpack.c.l.b16 %v1854
        %v1919 = vunpack.c.l.b16 %v1855
        %v1920 = vunpack.c.l.b16 %v1856
        %v1921 = vunpack.c.l.b16 %v1857
        %v1922 = vunpack.c.l.b16 %v1858
        %v1923 = vunpack.c.l.b16 %v1859
        %v1924 = vunpack.c.l.b16 %v1860
        %v1925 = vunpack.c.l.b16 %v1861
        %v1926 = vunpack.c.l.b16 %v1862
        %v1927 = vunpack.c.l.b16 %v1863
        %v1928 = vunpack.c.l.b16 %v1864
        %v1929 = vunpack.c.l.b16 %v1865
        %v1930 = vunpack.c.l.b16 %v1866
        %v1931 = vunpack.c.l.b16 %v1867
        %v1932 = vunpack.c.l.b16 %v1868
        %v1933 = vunpack.c.l.b16 %v1869
        %v1934 = vunpack.c.l.b16 %v1870
        %v1935 = vunpack.c.l.b16 %v1871
        %v1936 = vunpack.c.l.b16 %v1872
        %v1937 = vunpack.c.l.b16 %v1873
        %v1938 = vunpack.c.l.b16 %v1874
        %v1939 = vunpack.c.l.b16 %v1875
        %v1940 = vunpack.c.l.b16 %v1876
        %v1941 = vunpack.c.l.b16 %v1877
        %v1942 = vunpack.c.l.b16 %v1878
        %v1943 = vunpack.c.l.b16 %v1879
        %v1944 = vunpack.c.l.b16 %v1880
        %v1945 = vpack.c.b16 %v1914, %v1913
        %v1946 = vpack.c.b16 %v1916, %v1915
        %v1947 = vpack.c.b16 %v1918, %v1917
        %v1948 = vpack.c.b16 %v1920, %v1919
        %v1949 = vpack.c.b16 %v1922, %v1921
        %v1950 = vpack.c.b16 %v1924, %v1923
        %v1951 = vpack.c.b16 %v1926, %v1925
        %v1952 = vpack.c.b16 %v1928, %v1927
        %v1953 = vpack.c.b16 %v1930, %v1929
        %v1954 = vpack.c.b16 %v1932, %v1931
        %v1955 = vpack.c.b16 %v1934, %v1933
        %v1956 = vpack.c.b16 %v1936, %v1935
        %v1957 = vpack.c.b16 %v1938, %v1937
        %v1958 = vpack.c.b16 %v1940, %v1939
        %v1959 = vpack.c.b16 %v1942, %v1941
        %v1960 = vpack.c.b16 %v1944, %v1943
        %1977 = vmatpush.bf16.msra.mxu0 %v1952
        %1978 = vmatpush.bf16.msra.mxu0 %v1951
        %1979 = vmatpush.bf16.msra.mxu0 %v1950
        %1980 = vmatpush.bf16.msra.mxu0 %v1949
        %1981 = vmatpush.bf16.msra.mxu0 %v1948
        %1982 = vmatpush.bf16.msra.mxu0 %v1947
        %1983 = vmatpush.bf16.msra.mxu0 %v1946
        %1984 = vmatpush.bf16.msra.mxu0 %v1945
        %1985 = vmatmul.bf16.gmra.mxu0 %v1841
        %v1986 = vpop.f32.mrf.mxu0
        %v1987 = vadd.f32 0.0, %v1986
        %v1988 = vpop.f32.mrf.mxu0
        %v1989 = vadd.f32 0.0, %v1988
        %1990 = vmatmul.bf16.gmra.mxu0 %v1843
        %v1991 = vpop.f32.mrf.mxu0
        %v1992 = vadd.f32 0.0, %v1991
        %v1993 = vpop.f32.mrf.mxu0
        %v1994 = vadd.f32 0.0, %v1993
        %1995 = vmatmul.bf16.gmra.mxu0 %v1845
        %v1996 = vpop.f32.mrf.mxu0
        %v1997 = vadd.f32 0.0, %v1996
        %v1998 = vpop.f32.mrf.mxu0
        %v1999 = vadd.f32 0.0, %v1998
        %2000 = vmatmul.bf16.gmra.mxu0 %v1847
        %v2001 = vpop.f32.mrf.mxu0
        %v2002 = vadd.f32 0.0, %v2001
        %v2003 = vpop.f32.mrf.mxu0
        %v2004 = vadd.f32 0.0, %v2003
        %2005 = vdwg.mxu0
        %2006 = vmatpush.bf16.msra.mxu0 %v1960
        %2007 = vmatpush.bf16.msra.mxu0 %v1959
        %2008 = vmatpush.bf16.msra.mxu0 %v1958
        %2009 = vmatpush.bf16.msra.mxu0 %v1957
        %2010 = vmatpush.bf16.msra.mxu0 %v1956
        %2011 = vmatpush.bf16.msra.mxu0 %v1955
        %2012 = vmatpush.bf16.msra.mxu0 %v1954
        %2013 = vmatpush.bf16.msra.mxu0 %v1953
        %2014 = vmatmul.bf16.gmra.mxu0 %v1842
        %v2015 = vpop.f32.mrf.mxu0
        %v2016 = vadd.f32 %v1987, %v2015
        %v2017 = vpop.f32.mrf.mxu0
        %v2018 = vadd.f32 %v1989, %v2017
        %2019 = vmatmul.bf16.gmra.mxu0 %v1844
        %v2020 = vpop.f32.mrf.mxu0
        %v2021 = vadd.f32 %v1992, %v2020
        %v2022 = vpop.f32.mrf.mxu0
        %v2023 = vadd.f32 %v1994, %v2022
        %2024 = vmatmul.bf16.gmra.mxu0 %v1846
        %v2025 = vpop.f32.mrf.mxu0
        %v2026 = vadd.f32 %v1997, %v2025
        %v2027 = vpop.f32.mrf.mxu0
        %v2028 = vadd.f32 %v1999, %v2027
        %2029 = vmatmul.bf16.gmra.mxu0 %v1848
        %v2030 = vpop.f32.mrf.mxu0
        %v2031 = vadd.f32 %v2002, %v2030
        %v2032 = vpop.f32.mrf.mxu0
        %v2033 = vadd.f32 %v2004, %v2032
        %2034 = vdwg.mxu0
        %v2035 = vadd.f32 %v1373, %v2016
        %v2036 = vadd.f32 %v1374, %v2018
        %v2037 = vadd.f32 %v1375, %v2021
        %v2038 = vadd.f32 %v1376, %v2023
        %v2039 = vadd.f32 %v1377, %v2026
        %v2040 = vadd.f32 %v1378, %v2028
        %v2041 = vadd.f32 %v1379, %v2031
        %v2042 = vadd.f32 %v1380, %v2033
        %2043 = vst.msk [vmem:[%s318] sm:$0xff] %vm346, %v2035
        %2044 = vst.msk [vmem:[%s318 + $0x8] sm:$0xff] %vm346, %v2036
        %2045 = vst.msk [vmem:[%s318 + $0x10] sm:$0xff] %vm346, %v2037
        %2046 = vst.msk [vmem:[%s318 + $0x18] sm:$0xff] %vm346, %v2038
        %2047 = vst.msk [vmem:[%s318 + $0x20] sm:$0xff] %vm346, %v2039
        %2048 = vst.msk [vmem:[%s318 + $0x28] sm:$0xff] %vm346, %v2040
        %2049 = vst.msk [vmem:[%s318 + $0x30] sm:$0xff] %vm346, %v2041
        %2050 = vst.msk [vmem:[%s318 + $0x38] sm:$0xff] %vm346, %v2042
        %s2051 = sand.u32 %s188, 1
        %s2052 = scalar_lea.sflag [#allocation7], %s2051
        %s2053 = sand.u32 %s188, 1
        %s2054 = smul.addr %s2053, 64
        %s2055 = scalar_lea.vmem [#allocation10], %s2054
        // Predicated region
        $region71: #{tpu_custom_call.1} parent=47 // pred_check
          %p2056 = pneg %p198
        $region72: #{tpu_custom_call.1} parent=47 // pred_check_branch
          %2058 = sbr.rel (%p2056) target = $region74
        $region73: #{tpu_custom_call.1} parent=47 // pred_region
          %2060 = vsyncadd %s2052, 0
          %s2061 = smul.addr %s23, 8
          %s2062 = smul.addr %s2061, 8
          %s2063 = scalar_lea.hbm %s7, %s2062
          %s2064 = sshll.u32 %s2055, 4
          %s2065 = int_to_ptr.vmem [resolvable:$true] %s2064
          %s2066 = sshll.u32 %s2063, 4
          %s2067 = int_to_ptr.hbm [resolvable:$true] %s2066
          %2072 = dma.vmem_to_hbm [thread:$0]  %s2065, 1024, %s2067, %s2052, 128, 128, 8
        $region74: #{tpu_custom_call.1} parent=47 // pred_fallthru
          _
      $region48: #{tpu_custom_call.1} parent=5 // pred_fallthru
        _
      %p2073 = scmp.le.s32.totalorder 2, %s18
      // Predicated region
      $region75: #{tpu_custom_call.1} parent=5 // pred_check
        %p2074 = pneg %p2073
      $region76: #{tpu_custom_call.1} parent=5 // pred_check_branch
        %2076 = sbr.rel (%p2074) target = $region78
      $region77: #{tpu_custom_call.1} parent=5 // pred_region
        %s2077 = ssub.s32 %s18, 2
        // Predicated region
        $region79: #{tpu_custom_call.1} parent=77 // pred_check
          %p2078 = pneg %p204
        $region80: #{tpu_custom_call.1} parent=77 // pred_check_branch
          %2080 = sbr.rel (%p2078) target = $region82
        $region81: #{tpu_custom_call.1} parent=77 // pred_region
          %s2081 = sand.u32 %s189, 1
          %s2082 = scalar_lea.sflag [#allocation7], %s2081
          %s2083 = sand.u32 %s189, 1
          %s2084 = smul.addr %s2083, 64
          %s2085 = scalar_lea.vmem [#allocation10], %s2084
          %2087 = dma.done %s2082, 1024
        $region82: #{tpu_custom_call.1} parent=77 // pred_fallthru
          _
      $region78: #{tpu_custom_call.1} parent=5 // pred_fallthru
        _
    $region6: #{tpu_custom_call.1} parent=1 // loop_footer
      %s22 = sadd.s32 1, %s18
    $region7: #{tpu_custom_call.1} parent=1 // loop_footer_branch
      %17 = sbr.rel target = $region3
    $region8: #{tpu_custom_call.1} parent=1 // loop_exit
      _
    %2088 = vsyncpa [#allocation6], 1
    %s2089 = scalar_lea.sflag [#allocation6], 1
    %2090 = vsyncpa %s2089, 1
    %2091 = vsyncpa [#allocation9], 1
    %2092 = vsyncpa [#allocation7], 1
    %s2093 = scalar_lea.sflag [#allocation7], 1
    %2094 = vsyncpa %s2093, 1

</llo_original>
